<compile_context>
chip_gen: v7x
topology: tpu7x:2x2x1
jax: 0.10.0
libtpu: 0.0.40
codegen_flags: <defaults>
</compile_context>

<pallas_src>
import math

import jax
import jax.numpy as jnp
from jax.experimental import pallas as pl
from jax.experimental.pallas import tpu as pltpu


def _round_up(x, m):
    return ((x + m - 1) // m) * m


# --------------------------------------------------------------------------- kernel
def gate_cross_pred_kernel(x_ref, wcat_ref, b_ref, wp_ref, bp_ref, o_ref):
    """One batch tile of GateCorssLayer + pred_layer.

    x_ref   : (TB, Dp)       f32 padded input tile
    wcat_ref: (L, Dp, 2*Dp)  fused [W^T | Wg^T] weights (matmul dtype, e.g. bf16)
    b_ref   : (L, 1, Dp)     f32 per-layer bias
    wp_ref  : (Dp, 1)        pred-layer weight, transposed (matmul dtype)
    bp_ref  : (1, 1)         f32 pred-layer bias
    o_ref   : (TB, 1)        prediction tile
    """
    dp = x_ref.shape[1]
    n_layers = wcat_ref.shape[0]
    mm_dtype = wcat_ref.dtype

    x0 = x_ref[...].astype(jnp.float32)
    x = x0
    for i in range(n_layers):  # static unroll: cn_layers is small and fixed
        # One fused MXU matmul per layer: [x @ W^T | x @ Wg^T]; bf16 operands,
        # f32 accumulation.
        z = jnp.dot(x.astype(mm_dtype), wcat_ref[i],
                    preferred_element_type=jnp.float32)        # (TB, 2*Dp)
        xw = z[:, :dp]
        gate_logits = z[:, dp:]
        # sigmoid(z) = 1 / (1 + exp(-z)); exp and the approximate reciprocal both
        # run on the EUP slot instead of a VPU divide.
        xg = pl.reciprocal(1.0 + jnp.exp(-gate_logits), approx=True)
        x = x0 * (xw + b_ref[i]) * xg + x                       # elementwise in f32

    pred = jnp.dot(x.astype(mm_dtype), wp_ref[...],
                   preferred_element_type=jnp.float32)          # (TB, 1)
    o_ref[...] = (pred + bp_ref[...]).astype(o_ref.dtype)


# ------------------------------------------------------------------ param preprocessing
def prepare_cross_params(w, wg, b, w_pred, b_pred, *,
                         matmul_dtype=jnp.bfloat16, lane_multiple=128):
    """One-time weight preprocessing (transpose / zero-pad / fuse / cast).

    Hoisted out of the per-call forward path so no HBM transpose happens per call.
      w, wg : (L, D, D) torch-style (out, in) weights
      b     : (L, D)    biases
      w_pred: (1, D), b_pred: (1,)
    """
    L, D, _ = w.shape
    Dp = _round_up(D, lane_multiple)
    pad = Dp - D

    w_t = jnp.transpose(w, (0, 2, 1))    # (L, in, out) so the kernel does x @ W^T
    wg_t = jnp.transpose(wg, (0, 2, 1))
    if pad:
        w_t = jnp.pad(w_t, ((0, 0), (0, pad), (0, pad)))
        wg_t = jnp.pad(wg_t, ((0, 0), (0, pad), (0, pad)))
    # Fuse the two (Dp, Dp) weights into one (Dp, 2*Dp) RHS: one MXU matmul per
    # layer with a lane-dense result.
    w_cat = jnp.concatenate([w_t, wg_t], axis=-1).astype(matmul_dtype)

    b_p = jnp.pad(b, ((0, 0), (0, pad))) if pad else b
    b_p = b_p.reshape(L, 1, Dp).astype(jnp.float32)

    wp = jnp.transpose(w_pred)           # (D, 1)
    if pad:
        wp = jnp.pad(wp, ((0, pad), (0, 0)))
    wp = wp.astype(matmul_dtype)
    bp = jnp.asarray(b_pred, jnp.float32).reshape(1, 1)

    return {"w_cat": w_cat, "b": b_p, "w_pred": wp, "b_pred": bp,
            "d_in": D, "d_pad": Dp}


# ---------------------------------------------------------------------------- wrapper
def gate_cross_pred(x, cross, *, max_tb=256, weight_buffer_count=None):
    """Pallas forward of GateCorssLayer + pred_layer. x: (B, D) f32."""
    B, D = x.shape
    assert D == cross["d_in"]
    Dp = cross["d_pad"]
    L = cross["w_cat"].shape[0]
    if Dp != D:
        x = jnp.pad(x, ((0, 0), (0, Dp - D)))   # exact: padded lanes stay zero

    assert B % 8 == 0, "batch must be a multiple of 8 (sublane packing)"
    tb = min(max_tb, B)
    while B % tb:
        tb -= 8
    grid = (B // tb,)

    # Weight / bias blocks are grid-invariant; optionally single-buffer them so
    # large production D also fits v7x's smaller VMEM.
    if weight_buffer_count is not None:
        w_kwargs = dict(pipeline_mode=pl.Buffered(weight_buffer_count))
    else:
        w_kwargs = {}

    itemsize = cross["w_cat"].dtype.itemsize
    flops = L * (2 * B * Dp * (2 * Dp) + 6 * B * Dp) + 2 * B * Dp
    bytes_accessed = (x.size * 4
                      + cross["w_cat"].size * itemsize
                      + cross["b"].size * 4
                      + cross["w_pred"].size * itemsize
                      + B * 4)

    return pl.pallas_call(
        gate_cross_pred_kernel,
        out_shape=jax.ShapeDtypeStruct((B, 1), x.dtype),
        grid_spec=pltpu.PrefetchScalarGridSpec(
            num_scalar_prefetch=0,
            grid=grid,
            in_specs=[
                pl.BlockSpec((tb, Dp), lambda i: (i, 0)),
                pl.BlockSpec((L, Dp, 2 * Dp), lambda i: (0, 0, 0), **w_kwargs),
                pl.BlockSpec((L, 1, Dp), lambda i: (0, 0, 0), **w_kwargs),
                pl.BlockSpec((Dp, 1), lambda i: (0, 0), **w_kwargs),
                pl.BlockSpec((1, 1), lambda i: (0, 0), **w_kwargs),
            ],
            out_specs=pl.BlockSpec((tb, 1), lambda i: (i, 0)),
        ),
        compiler_params=pltpu.CompilerParams(
            dimension_semantics=("parallel",),
            vmem_limit_bytes=48 * 1024 * 1024,
        ),
        cost_estimate=pl.CostEstimate(
            flops=flops,
            transcendentals=L * B * Dp,
            bytes_accessed=bytes_accessed,
        ),
    )(x, cross["w_cat"], cross["b"], cross["w_pred"], cross["b_pred"])


def embedding_forward(emb_tables, bn, x_num, x_cat):
    """EmbeddingLayer forward (inference).

    TODO(synk): embedding gathers, Dropout (identity at inference) and the
    BatchNorm1d running-stat normalization are kept in plain JAX; the Pallas
    kernel covers the gated cross network + prediction head (where the FLOPs are).
    """
    parts = [tbl[x_cat[:, i]] for i, tbl in enumerate(emb_tables)]
    if bn is not None:
        x_cont = ((x_num - bn["mean"]) * jax.lax.rsqrt(bn["var"] + 1e-5)
                  * bn["gamma"] + bn["beta"])
        parts.append(x_cont)
    return jnp.concatenate(parts, axis=1)


def adapted_gate_cross_forward(params, x_num, x_cat, **kw):
    x = embedding_forward(params["emb_tables"], params["bn"], x_num, x_cat)
    return gate_cross_pred(x, params["cross"], **kw)


# --------------------------------------------------------------------------- reference
def reference_forward(raw, x_num, x_cat):
    """Pure-JAX f32 reference mirroring the PyTorch forward (eval mode)."""
    parts = [tbl[x_cat[:, i]] for i, tbl in enumerate(raw["emb_tables"])]
    bn = raw["bn"]
    x_cont = ((x_num - bn["mean"]) * jax.lax.rsqrt(bn["var"] + 1e-5)
              * bn["gamma"] + bn["beta"])
    x = jnp.concatenate(parts + [x_cont], axis=1).astype(jnp.float32)
    x0 = x
    for i in range(raw["w"].shape[0]):
        xw = x @ raw["w"][i].T
        xg = jax.nn.sigmoid(x @ raw["wg"][i].T)
        x = x0 * (xw + raw["b"][i]) * xg + x
    return x @ raw["w_pred"].T + raw["b_pred"]


if __name__ == "__main__":
    # Small config consistent with the module:
    #   4 categorical features with emb dims 8+8+6+4 = 26, 6 numerical -> input_dim 32.
    emb_dims = [(10, 8), (12, 8), (7, 6), (5, 4)]
    no_of_numerical = 6
    cn_layers = 3
    B = 512  # two batch tiles of 256 -> grid of 2 steps (keeps both v7x TCs busy)

    D = sum(y for _, y in emb_dims) + no_of_numerical  # 32

    key = jax.random.PRNGKey(0)
    keys = jax.random.split(key, 16)

    emb_tables = [
        jax.random.normal(keys[i], (card, dim), dtype=jnp.float32) * 0.1
        for i, (card, dim) in enumerate(emb_dims)
    ]
    x_cat = jnp.stack(
        [jax.random.randint(keys[4 + i], (B,), 0, card)
         for i, (card, _) in enumerate(emb_dims)], axis=1)
    x_num = jax.random.normal(keys[8], (B, no_of_numerical), dtype=jnp.float32)

    bn = {  # eval-mode BatchNorm1d affine params + running stats
        "gamma": jnp.ones((no_of_numerical,), jnp.float32),
        "beta": jnp.zeros((no_of_numerical,), jnp.float32),
        "mean": jnp.zeros((no_of_numerical,), jnp.float32),
        "var": jnp.ones((no_of_numerical,), jnp.float32),
    }

    bound = 1.0 / math.sqrt(D)
    w = jax.random.uniform(keys[9], (cn_layers, D, D), minval=-bound, maxval=bound)
    wg = jax.random.uniform(keys[10], (cn_layers, D, D), minval=-bound, maxval=bound)
    b = jax.random.uniform(keys[11], (cn_layers, D), minval=0.0, maxval=1.0)
    w_pred = jax.random.uniform(keys[12], (1, D), minval=-bound, maxval=bound)
    b_pred = jax.random.uniform(keys[13], (1,), minval=-bound, maxval=bound)

    params = {
        "emb_tables": emb_tables,
        "bn": bn,
        "cross": prepare_cross_params(w, wg, b, w_pred, b_pred,
                                      matmul_dtype=jnp.bfloat16),
    }

    # Prefer single-buffered grid-invariant weight blocks (matters for big D on
    # v7x's 64 MiB VMEM); fall back to default double-buffering if this JAX build
    # rejects pipeline_mode on pallas_call BlockSpecs.
    try:
        out = adapted_gate_cross_forward(params, x_num, x_cat,
                                         max_tb=256, weight_buffer_count=1)
        out = jax.block_until_ready(out)
    except Exception:
        out = adapted_gate_cross_forward(params, x_num, x_cat, max_tb=256)
        out = jax.block_until_ready(out)

    raw = {"emb_tables": emb_tables, "bn": bn, "w": w, "wg": wg, "b": b,
           "w_pred": w_pred, "b_pred": b_pred}
    ref = reference_forward(raw, x_num, x_cat)

    assert out.shape == (B, 1)
    # bf16 MXU operands + approx-reciprocal sigmoid => loose tolerance vs the
    # pure-f32 reference.
    assert jnp.allclose(out, ref, atol=5e-2, rtol=5e-2), "mismatch vs reference"

    print("KERNEL_OK")
</pallas_src>

<mosaic_0001>
module attributes {stable_mosaic.version = 11 : i64} {
  func.func @gate_cross_pred_kernel(%arg0: i32, %arg1: memref<256x128xf32, #tpu.memory_space<vmem>>, %arg2: memref<3x128x256xbf16, #tpu.memory_space<vmem>>, %arg3: memref<3x1x128xf32, #tpu.memory_space<vmem>>, %arg4: memref<128x1xbf16, #tpu.memory_space<vmem>>, %arg5: memref<1x1xf32, #tpu.memory_space<vmem>>, %arg6: memref<256x1xf32, #tpu.memory_space<vmem>>) attributes {dimension_semantics = [#tpu.dimension_semantics<parallel>], iteration_bounds = array<i64: 2>, scalar_prefetch = 0 : i64, scratch_operands = 0 : i64, tpu.core_type = #tpu.core_type<tc>, window_params = [{transform_indices = @transform_0, window_bounds = array<i64: 256, 128>}, {pipeline_mode = #tpu.pipeline_mode<synchronous>, transform_indices = @transform_1, window_bounds = array<i64: 3, 128, 256>}, {pipeline_mode = #tpu.pipeline_mode<synchronous>, transform_indices = @transform_2, window_bounds = array<i64: 3, 1, 128>}, {pipeline_mode = #tpu.pipeline_mode<synchronous>, transform_indices = @transform_3, window_bounds = array<i64: 128, 1>}, {pipeline_mode = #tpu.pipeline_mode<synchronous>, transform_indices = @transform_4, window_bounds = array<i64: 1, 1>}, {transform_indices = @transform_5, window_bounds = array<i64: 256, 1>}]} {
    %c0 = arith.constant 0 : index
    %c0_0 = arith.constant 0 : index
    %0 = vector.load %arg1[%c0, %c0_0] : memref<256x128xf32, #tpu.memory_space<vmem>>, vector<256x128xf32>
    %1 = arith.truncf %0 : vector<256x128xf32> to vector<256x128xbf16>
    %c0_1 = arith.constant 0 : index
    %c0_2 = arith.constant 0 : index
    %c0_3 = arith.constant 0 : index
    %2 = vector.load %arg2[%c0_1, %c0_2, %c0_3] : memref<3x128x256xbf16, #tpu.memory_space<vmem>>, vector<1x128x256xbf16>
    %3 = vector.shape_cast %2 : vector<1x128x256xbf16> to vector<128x256xbf16>
    %cst = arith.constant dense<0.000000e+00> : vector<256x256xf32>
    %4 = tpu.matmul %1, %3, %cst {dimension_numbers = #tpu.dot_dimension_numbers<[1], [0], [0], [1], [0, 0, 1, 1], [], []>} : vector<256x128xbf16>, vector<128x256xbf16>, vector<256x256xf32> -> vector<256x256xf32>
    %5 = vector.extract_strided_slice %4 {offsets = [0, 0], sizes = [256, 128], strides = [1, 1]} : vector<256x256xf32> to vector<256x128xf32>
    %6 = vector.extract_strided_slice %4 {offsets = [0, 128], sizes = [256, 128], strides = [1, 1]} : vector<256x256xf32> to vector<256x128xf32>
    %cst_4 = arith.constant 0.000000e+00 : f32
    %7 = vector.broadcast %cst_4 : f32 to vector<256x128xf32>
    %8 = arith.subf %7, %6 : vector<256x128xf32>
    %9 = math.exp %8 : vector<256x128xf32>
    %cst_5 = arith.constant 1.000000e+00 : f32
    %10 = vector.broadcast %cst_5 : f32 to vector<256x128xf32>
    %11 = arith.addf %10, %9 : vector<256x128xf32>
    %12 = tpu.reciprocal %11 {approx = true} : vector<256x128xf32> -> vector<256x128xf32>
    %c0_6 = arith.constant 0 : index
    %c0_7 = arith.constant 0 : index
    %c0_8 = arith.constant 0 : index
    %13 = vector.load %arg3[%c0_6, %c0_7, %c0_8] : memref<3x1x128xf32, #tpu.memory_space<vmem>>, vector<1x1x128xf32>
    %14 = vector.shape_cast %13 : vector<1x1x128xf32> to vector<1x128xf32>
    %15 = vector.broadcast %14 : vector<1x128xf32> to vector<256x128xf32>
    %16 = arith.addf %5, %15 : vector<256x128xf32>
    %17 = arith.mulf %0, %16 : vector<256x128xf32>
    %18 = arith.mulf %17, %12 : vector<256x128xf32>
    %19 = arith.addf %18, %0 : vector<256x128xf32>
    %20 = arith.truncf %19 : vector<256x128xf32> to vector<256x128xbf16>
    %c1 = arith.constant 1 : index
    %c0_9 = arith.constant 0 : index
    %c0_10 = arith.constant 0 : index
    %21 = vector.load %arg2[%c1, %c0_9, %c0_10] : memref<3x128x256xbf16, #tpu.memory_space<vmem>>, vector<1x128x256xbf16>
    %22 = vector.shape_cast %21 : vector<1x128x256xbf16> to vector<128x256xbf16>
    %cst_11 = arith.constant dense<0.000000e+00> : vector<256x256xf32>
    %23 = tpu.matmul %20, %22, %cst_11 {dimension_numbers = #tpu.dot_dimension_numbers<[1], [0], [0], [1], [0, 0, 1, 1], [], []>} : vector<256x128xbf16>, vector<128x256xbf16>, vector<256x256xf32> -> vector<256x256xf32>
    %24 = vector.extract_strided_slice %23 {offsets = [0, 0], sizes = [256, 128], strides = [1, 1]} : vector<256x256xf32> to vector<256x128xf32>
    %25 = vector.extract_strided_slice %23 {offsets = [0, 128], sizes = [256, 128], strides = [1, 1]} : vector<256x256xf32> to vector<256x128xf32>
    %cst_12 = arith.constant 0.000000e+00 : f32
    %26 = vector.broadcast %cst_12 : f32 to vector<256x128xf32>
    %27 = arith.subf %26, %25 : vector<256x128xf32>
    %28 = math.exp %27 : vector<256x128xf32>
    %cst_13 = arith.constant 1.000000e+00 : f32
    %29 = vector.broadcast %cst_13 : f32 to vector<256x128xf32>
    %30 = arith.addf %29, %28 : vector<256x128xf32>
    %31 = tpu.reciprocal %30 {approx = true} : vector<256x128xf32> -> vector<256x128xf32>
    %c1_14 = arith.constant 1 : index
    %c0_15 = arith.constant 0 : index
    %c0_16 = arith.constant 0 : index
    %32 = vector.load %arg3[%c1_14, %c0_15, %c0_16] : memref<3x1x128xf32, #tpu.memory_space<vmem>>, vector<1x1x128xf32>
    %33 = vector.shape_cast %32 : vector<1x1x128xf32> to vector<1x128xf32>
    %34 = vector.broadcast %33 : vector<1x128xf32> to vector<256x128xf32>
    %35 = arith.addf %24, %34 : vector<256x128xf32>
    %36 = arith.mulf %0, %35 : vector<256x128xf32>
    %37 = arith.mulf %36, %31 : vector<256x128xf32>
    %38 = arith.addf %37, %19 : vector<256x128xf32>
    %39 = arith.truncf %38 : vector<256x128xf32> to vector<256x128xbf16>
    %c2 = arith.constant 2 : index
    %c0_17 = arith.constant 0 : index
    %c0_18 = arith.constant 0 : index
    %40 = vector.load %arg2[%c2, %c0_17, %c0_18] : memref<3x128x256xbf16, #tpu.memory_space<vmem>>, vector<1x128x256xbf16>
    %41 = vector.shape_cast %40 : vector<1x128x256xbf16> to vector<128x256xbf16>
    %cst_19 = arith.constant dense<0.000000e+00> : vector<256x256xf32>
    %42 = tpu.matmul %39, %41, %cst_19 {dimension_numbers = #tpu.dot_dimension_numbers<[1], [0], [0], [1], [0, 0, 1, 1], [], []>} : vector<256x128xbf16>, vector<128x256xbf16>, vector<256x256xf32> -> vector<256x256xf32>
    %43 = vector.extract_strided_slice %42 {offsets = [0, 0], sizes = [256, 128], strides = [1, 1]} : vector<256x256xf32> to vector<256x128xf32>
    %44 = vector.extract_strided_slice %42 {offsets = [0, 128], sizes = [256, 128], strides = [1, 1]} : vector<256x256xf32> to vector<256x128xf32>
    %cst_20 = arith.constant 0.000000e+00 : f32
    %45 = vector.broadcast %cst_20 : f32 to vector<256x128xf32>
    %46 = arith.subf %45, %44 : vector<256x128xf32>
    %47 = math.exp %46 : vector<256x128xf32>
    %cst_21 = arith.constant 1.000000e+00 : f32
    %48 = vector.broadcast %cst_21 : f32 to vector<256x128xf32>
    %49 = arith.addf %48, %47 : vector<256x128xf32>
    %50 = tpu.reciprocal %49 {approx = true} : vector<256x128xf32> -> vector<256x128xf32>
    %c2_22 = arith.constant 2 : index
    %c0_23 = arith.constant 0 : index
    %c0_24 = arith.constant 0 : index
    %51 = vector.load %arg3[%c2_22, %c0_23, %c0_24] : memref<3x1x128xf32, #tpu.memory_space<vmem>>, vector<1x1x128xf32>
    %52 = vector.shape_cast %51 : vector<1x1x128xf32> to vector<1x128xf32>
    %53 = vector.broadcast %52 : vector<1x128xf32> to vector<256x128xf32>
    %54 = arith.addf %43, %53 : vector<256x128xf32>
    %55 = arith.mulf %0, %54 : vector<256x128xf32>
    %56 = arith.mulf %55, %50 : vector<256x128xf32>
    %57 = arith.addf %56, %38 : vector<256x128xf32>
    %58 = arith.truncf %57 : vector<256x128xf32> to vector<256x128xbf16>
    %c0_25 = arith.constant 0 : index
    %c0_26 = arith.constant 0 : index
    %59 = vector.load %arg4[%c0_25, %c0_26] : memref<128x1xbf16, #tpu.memory_space<vmem>>, vector<128x1xbf16>
    %cst_27 = arith.constant dense<0.000000e+00> : vector<256x1xf32>
    %60 = tpu.matmul %58, %59, %cst_27 {dimension_numbers = #tpu.dot_dimension_numbers<[1], [0], [0], [1], [0, 0, 1, 1], [], []>} : vector<256x128xbf16>, vector<128x1xbf16>, vector<256x1xf32> -> vector<256x1xf32>
    %c0_28 = arith.constant 0 : index
    %c0_29 = arith.constant 0 : index
    %61 = vector.load %arg5[%c0_28, %c0_29] : memref<1x1xf32, #tpu.memory_space<vmem>>, vector<1x1xf32>
    %62 = vector.broadcast %61 : vector<1x1xf32> to vector<256x1xf32>
    %63 = arith.addf %60, %62 : vector<256x1xf32>
    %c0_30 = arith.constant 0 : index
    %c0_31 = arith.constant 0 : index
    %64 = vector.load %arg6[%c0_30, %c0_31] : memref<256x1xf32, #tpu.memory_space<vmem>>, vector<256x1xf32>
    tpu.vector_store %arg6[%c0_30, %c0_31], %63 {strides = array<i32>} : memref<256x1xf32, #tpu.memory_space<vmem>>, vector<256x1xf32>,
    return
  }
  func.func @transform_0(%arg0: i32) -> (i32, i32) {
    %c0_i32 = arith.constant 0 : i32
    %c0_i32_0 = arith.constant 0 : i32
    return %arg0, %c0_i32 : i32, i32
  }
  func.func @transform_1(%arg0: i32) -> (i32, i32, i32) {
    %c0_i32 = arith.constant 0 : i32
    %c0_i32_0 = arith.constant 0 : i32
    %c0_i32_1 = arith.constant 0 : i32
    %c0_i32_2 = arith.constant 0 : i32
    return %c0_i32, %c0_i32_0, %c0_i32_1 : i32, i32, i32
  }
  func.func @transform_2(%arg0: i32) -> (i32, i32, i32) {
    %c0_i32 = arith.constant 0 : i32
    %c0_i32_0 = arith.constant 0 : i32
    %c0_i32_1 = arith.constant 0 : i32
    %c0_i32_2 = arith.constant 0 : i32
    return %c0_i32, %c0_i32_0, %c0_i32_1 : i32, i32, i32
  }
  func.func @transform_3(%arg0: i32) -> (i32, i32) {
    %c0_i32 = arith.constant 0 : i32
    %c0_i32_0 = arith.constant 0 : i32
    %c0_i32_1 = arith.constant 0 : i32
    return %c0_i32, %c0_i32_0 : i32, i32
  }
  func.func @transform_4(%arg0: i32) -> (i32, i32) {
    %c0_i32 = arith.constant 0 : i32
    %c0_i32_0 = arith.constant 0 : i32
    %c0_i32_1 = arith.constant 0 : i32
    return %c0_i32, %c0_i32_0 : i32, i32
  }
  func.func @transform_5(%arg0: i32) -> (i32, i32) {
    %c0_i32 = arith.constant 0 : i32
    %c0_i32_0 = arith.constant 0 : i32
    return %arg0, %c0_i32 : i32, i32
  }
}

module attributes {stable_mosaic.version = 11 : i64} {
  func.func @gate_cross_pred_kernel(%arg0: i32, %arg1: memref<256x128xf32, #tpu.memory_space<vmem>>, %arg2: memref<3x128x256xbf16, #tpu.memory_space<vmem>>, %arg3: memref<3x1x128xf32, #tpu.memory_space<vmem>>, %arg4: memref<128x1xbf16, #tpu.memory_space<vmem>>, %arg5: memref<1x1xf32, #tpu.memory_space<vmem>>, %arg6: memref<256x1xf32, #tpu.memory_space<vmem>>) attributes {dimension_semantics = [#tpu.dimension_semantics<parallel>], iteration_bounds = array<i64: 2>, scalar_prefetch = 0 : i64, scratch_operands = 0 : i64, tpu.core_type = #tpu.core_type<tc>, window_params = [{transform_indices = @transform_0, window_bounds = array<i64: 256, 128>}, {pipeline_mode = #tpu.pipeline_mode<synchronous>, transform_indices = @transform_1, window_bounds = array<i64: 3, 128, 256>}, {pipeline_mode = #tpu.pipeline_mode<synchronous>, transform_indices = @transform_2, window_bounds = array<i64: 3, 1, 128>}, {pipeline_mode = #tpu.pipeline_mode<synchronous>, transform_indices = @transform_3, window_bounds = array<i64: 128, 1>}, {pipeline_mode = #tpu.pipeline_mode<synchronous>, transform_indices = @transform_4, window_bounds = array<i64: 1, 1>}, {transform_indices = @transform_5, window_bounds = array<i64: 256, 1>}]} {
    %c0 = arith.constant 0 : index
    %c0_0 = arith.constant 0 : index
    %0 = vector.load %arg1[%c0, %c0_0] : memref<256x128xf32, #tpu.memory_space<vmem>>, vector<256x128xf32>
    %1 = arith.truncf %0 : vector<256x128xf32> to vector<256x128xbf16>
    %c0_1 = arith.constant 0 : index
    %c0_2 = arith.constant 0 : index
    %c0_3 = arith.constant 0 : index
    %2 = vector.load %arg2[%c0_1, %c0_2, %c0_3] : memref<3x128x256xbf16, #tpu.memory_space<vmem>>, vector<1x128x256xbf16>
    %3 = vector.shape_cast %2 : vector<1x128x256xbf16> to vector<128x256xbf16>
    %cst = arith.constant dense<0.000000e+00> : vector<256x256xf32>
    %4 = tpu.matmul %1, %3, %cst {dimension_numbers = #tpu.dot_dimension_numbers<[1], [0], [0], [1], [0, 0, 1, 1], [], []>} : vector<256x128xbf16>, vector<128x256xbf16>, vector<256x256xf32> -> vector<256x256xf32>
    %5 = vector.extract_strided_slice %4 {offsets = [0, 0], sizes = [256, 128], strides = [1, 1]} : vector<256x256xf32> to vector<256x128xf32>
    %6 = vector.extract_strided_slice %4 {offsets = [0, 128], sizes = [256, 128], strides = [1, 1]} : vector<256x256xf32> to vector<256x128xf32>
    %cst_4 = arith.constant 0.000000e+00 : f32
    %7 = vector.broadcast %cst_4 : f32 to vector<256x128xf32>
    %8 = arith.subf %7, %6 : vector<256x128xf32>
    %9 = math.exp %8 : vector<256x128xf32>
    %cst_5 = arith.constant 1.000000e+00 : f32
    %10 = vector.broadcast %cst_5 : f32 to vector<256x128xf32>
    %11 = arith.addf %10, %9 : vector<256x128xf32>
    %12 = tpu.reciprocal %11 {approx = true} : vector<256x128xf32> -> vector<256x128xf32>
    %c0_6 = arith.constant 0 : index
    %c0_7 = arith.constant 0 : index
    %c0_8 = arith.constant 0 : index
    %13 = vector.load %arg3[%c0_6, %c0_7, %c0_8] : memref<3x1x128xf32, #tpu.memory_space<vmem>>, vector<1x1x128xf32>
    %14 = vector.shape_cast %13 : vector<1x1x128xf32> to vector<1x128xf32>
    %15 = vector.broadcast %14 : vector<1x128xf32> to vector<256x128xf32>
    %16 = arith.addf %5, %15 : vector<256x128xf32>
    %17 = arith.mulf %0, %16 : vector<256x128xf32>
    %18 = arith.mulf %17, %12 : vector<256x128xf32>
    %19 = arith.addf %18, %0 : vector<256x128xf32>
    %20 = arith.truncf %19 : vector<256x128xf32> to vector<256x128xbf16>
    %c1 = arith.constant 1 : index
    %c0_9 = arith.constant 0 : index
    %c0_10 = arith.constant 0 : index
    %21 = vector.load %arg2[%c1, %c0_9, %c0_10] : memref<3x128x256xbf16, #tpu.memory_space<vmem>>, vector<1x128x256xbf16>
    %22 = vector.shape_cast %21 : vector<1x128x256xbf16> to vector<128x256xbf16>
    %cst_11 = arith.constant dense<0.000000e+00> : vector<256x256xf32>
    %23 = tpu.matmul %20, %22, %cst_11 {dimension_numbers = #tpu.dot_dimension_numbers<[1], [0], [0], [1], [0, 0, 1, 1], [], []>} : vector<256x128xbf16>, vector<128x256xbf16>, vector<256x256xf32> -> vector<256x256xf32>
    %24 = vector.extract_strided_slice %23 {offsets = [0, 0], sizes = [256, 128], strides = [1, 1]} : vector<256x256xf32> to vector<256x128xf32>
    %25 = vector.extract_strided_slice %23 {offsets = [0, 128], sizes = [256, 128], strides = [1, 1]} : vector<256x256xf32> to vector<256x128xf32>
    %cst_12 = arith.constant 0.000000e+00 : f32
    %26 = vector.broadcast %cst_12 : f32 to vector<256x128xf32>
    %27 = arith.subf %26, %25 : vector<256x128xf32>
    %28 = math.exp %27 : vector<256x128xf32>
    %cst_13 = arith.constant 1.000000e+00 : f32
    %29 = vector.broadcast %cst_13 : f32 to vector<256x128xf32>
    %30 = arith.addf %29, %28 : vector<256x128xf32>
    %31 = tpu.reciprocal %30 {approx = true} : vector<256x128xf32> -> vector<256x128xf32>
    %c1_14 = arith.constant 1 : index
    %c0_15 = arith.constant 0 : index
    %c0_16 = arith.constant 0 : index
    %32 = vector.load %arg3[%c1_14, %c0_15, %c0_16] : memref<3x1x128xf32, #tpu.memory_space<vmem>>, vector<1x1x128xf32>
    %33 = vector.shape_cast %32 : vector<1x1x128xf32> to vector<1x128xf32>
    %34 = vector.broadcast %33 : vector<1x128xf32> to vector<256x128xf32>
    %35 = arith.addf %24, %34 : vector<256x128xf32>
    %36 = arith.mulf %0, %35 : vector<256x128xf32>
    %37 = arith.mulf %36, %31 : vector<256x128xf32>
    %38 = arith.addf %37, %19 : vector<256x128xf32>
    %39 = arith.truncf %38 : vector<256x128xf32> to vector<256x128xbf16>
    %c2 = arith.constant 2 : index
    %c0_17 = arith.constant 0 : index
    %c0_18 = arith.constant 0 : index
    %40 = vector.load %arg2[%c2, %c0_17, %c0_18] : memref<3x128x256xbf16, #tpu.memory_space<vmem>>, vector<1x128x256xbf16>
    %41 = vector.shape_cast %40 : vector<1x128x256xbf16> to vector<128x256xbf16>
    %cst_19 = arith.constant dense<0.000000e+00> : vector<256x256xf32>
    %42 = tpu.matmul %39, %41, %cst_19 {dimension_numbers = #tpu.dot_dimension_numbers<[1], [0], [0], [1], [0, 0, 1, 1], [], []>} : vector<256x128xbf16>, vector<128x256xbf16>, vector<256x256xf32> -> vector<256x256xf32>
    %43 = vector.extract_strided_slice %42 {offsets = [0, 0], sizes = [256, 128], strides = [1, 1]} : vector<256x256xf32> to vector<256x128xf32>
    %44 = vector.extract_strided_slice %42 {offsets = [0, 128], sizes = [256, 128], strides = [1, 1]} : vector<256x256xf32> to vector<256x128xf32>
    %cst_20 = arith.constant 0.000000e+00 : f32
    %45 = vector.broadcast %cst_20 : f32 to vector<256x128xf32>
    %46 = arith.subf %45, %44 : vector<256x128xf32>
    %47 = math.exp %46 : vector<256x128xf32>
    %cst_21 = arith.constant 1.000000e+00 : f32
    %48 = vector.broadcast %cst_21 : f32 to vector<256x128xf32>
    %49 = arith.addf %48, %47 : vector<256x128xf32>
    %50 = tpu.reciprocal %49 {approx = true} : vector<256x128xf32> -> vector<256x128xf32>
    %c2_22 = arith.constant 2 : index
    %c0_23 = arith.constant 0 : index
    %c0_24 = arith.constant 0 : index
    %51 = vector.load %arg3[%c2_22, %c0_23, %c0_24] : memref<3x1x128xf32, #tpu.memory_space<vmem>>, vector<1x1x128xf32>
    %52 = vector.shape_cast %51 : vector<1x1x128xf32> to vector<1x128xf32>
    %53 = vector.broadcast %52 : vector<1x128xf32> to vector<256x128xf32>
    %54 = arith.addf %43, %53 : vector<256x128xf32>
    %55 = arith.mulf %0, %54 : vector<256x128xf32>
    %56 = arith.mulf %55, %50 : vector<256x128xf32>
    %57 = arith.addf %56, %38 : vector<256x128xf32>
    %58 = arith.truncf %57 : vector<256x128xf32> to vector<256x128xbf16>
    %c0_25 = arith.constant 0 : index
    %c0_26 = arith.constant 0 : index
    %59 = vector.load %arg4[%c0_25, %c0_26] : memref<128x1xbf16, #tpu.memory_space<vmem>>, vector<128x1xbf16>
    %cst_27 = arith.constant dense<0.000000e+00> : vector<256x1xf32>
    %60 = tpu.matmul %58, %59, %cst_27 {dimension_numbers = #tpu.dot_dimension_numbers<[1], [0], [0], [1], [0, 0, 1, 1], [], []>} : vector<256x128xbf16>, vector<128x1xbf16>, vector<256x1xf32> -> vector<256x1xf32>
    %c0_28 = arith.constant 0 : index
    %c0_29 = arith.constant 0 : index
    %61 = vector.load %arg5[%c0_28, %c0_29] : memref<1x1xf32, #tpu.memory_space<vmem>>, vector<1x1xf32>
    %62 = vector.broadcast %61 : vector<1x1xf32> to vector<256x1xf32>
    %63 = arith.addf %60, %62 : vector<256x1xf32>
    %c0_30 = arith.constant 0 : index
    %c0_31 = arith.constant 0 : index
    %64 = vector.load %arg6[%c0_30, %c0_31] : memref<256x1xf32, #tpu.memory_space<vmem>>, vector<256x1xf32>
    tpu.vector_store %arg6[%c0_30, %c0_31], %63 {strides = array<i32>} : memref<256x1xf32, #tpu.memory_space<vmem>>, vector<256x1xf32>,
    return
  }
  func.func @transform_0(%arg0: i32) -> (i32, i32) {
    %c0_i32 = arith.constant 0 : i32
    %c0_i32_0 = arith.constant 0 : i32
    return %arg0, %c0_i32 : i32, i32
  }
  func.func @transform_1(%arg0: i32) -> (i32, i32, i32) {
    %c0_i32 = arith.constant 0 : i32
    %c0_i32_0 = arith.constant 0 : i32
    %c0_i32_1 = arith.constant 0 : i32
    %c0_i32_2 = arith.constant 0 : i32
    return %c0_i32, %c0_i32_0, %c0_i32_1 : i32, i32, i32
  }
  func.func @transform_2(%arg0: i32) -> (i32, i32, i32) {
    %c0_i32 = arith.constant 0 : i32
    %c0_i32_0 = arith.constant 0 : i32
    %c0_i32_1 = arith.constant 0 : i32
    %c0_i32_2 = arith.constant 0 : i32
    return %c0_i32, %c0_i32_0, %c0_i32_1 : i32, i32, i32
  }
  func.func @transform_3(%arg0: i32) -> (i32, i32) {
    %c0_i32 = arith.constant 0 : i32
    %c0_i32_0 = arith.constant 0 : i32
    %c0_i32_1 = arith.constant 0 : i32
    return %c0_i32, %c0_i32_0 : i32, i32
  }
  func.func @transform_4(%arg0: i32) -> (i32, i32) {
    %c0_i32 = arith.constant 0 : i32
    %c0_i32_0 = arith.constant 0 : i32
    %c0_i32_1 = arith.constant 0 : i32
    return %c0_i32, %c0_i32_0 : i32, i32
  }
  func.func @transform_5(%arg0: i32) -> (i32, i32) {
    %c0_i32 = arith.constant 0 : i32
    %c0_i32_0 = arith.constant 0 : i32
    return %arg0, %c0_i32 : i32, i32
  }
}

</mosaic_0001>

<llo_original>
// kernel: tpu_custom_call.1
$region0: #{tpu_custom_call.1}
  #allocation0 [shape = 'u32[]', space=smem, size = 0x4, offset = 0x4, fixed_abs, tag = 'smem constant byte address 0x4 - core index']
  #allocation1 [shape = 'u32[144,128]{1,0:T(1,128)}', space=vmem, size = 0x12000, scoped, tag = 'internal scratch']
  #allocation2 [shape = 'f32[1,1]{1,0:T(1,128)S(1)}', space=vmem, size = 0x200, scoped, tag = 'scoped memory for tpu_custom_call.1']
  %s0 = inlined_call_operand.hbm [shape: f32[512,128], index: 0, kind: input, shape index: {}]
  %s1 = inlined_call_operand.hbm [shape: bf16[3,128,256], index: 1, kind: input, shape index: {}]
  %s2 = inlined_call_operand.vmem [shape: f32[3,1,128], index: 2, kind: input, shape index: {}]
  %s3 = inlined_call_operand.vmem [shape: bf16[128,1], index: 3, kind: input, shape index: {}]
  %s4 = inlined_call_operand.<no memory space> [shape: f32[1,1], index: 4, kind: input, shape index: {}]
  %s5 = inlined_call_operand.vmem [shape: f32[512,1], index: 5, kind: output, shape index: {}]
  %s6 = sld [smem:[#allocation0]]
  $region61: #{tpu_custom_call.1} parent=0
    _
  %s8 = ssub.s32 1, %s6
  %s9 = scalar_select 0, %s8, %s6
  %v10 = vstv %s4
  %11 = vst [vmem:[#allocation2] sm:$0x1] %v10
  $region1: #{tpu_custom_call.1} parent=0
    #allocation3 [shape = 'u8[262144]{0}', space=vmem, size = 0x40000, scoped, tag = 'input window, operand 0']
    #allocation4 [shape = 's32[2]{0}', space=sflag, size = 0x8, scoped, tag = 'scoped memory for tpu_custom_call.1']
    #allocation5 [shape = 'u8[196608]{0}', space=vmem, size = 0x30000, scoped, tag = 'input window, operand 1, single buffered']
    #allocation6 [shape = 's32[1]{0}', space=sflag, size = 0x4, scoped, tag = 'scoped memory for tpu_custom_call.1']
    %12 = vsyncpa [#allocation4], 0
    %s13 = scalar_lea.sflag [#allocation4], 1
    %14 = vsyncpa %s13, 0
    %15 = vsyncpa [#allocation6], 0
    loop: start=0, step=1, limit=4
    $region2: #{tpu_custom_call.1} parent=1 // loop_pre_header
      _
    $region3: #{tpu_custom_call.1} parent=1 // loop_header
      %s17 = sphi 0, %s21
      %p18 = scmp.ge.s32.totalorder %s17, 4
      %s27 = sphi 0, %s29
      %s30 = sphi 0, %s27
      %s31 = sphi 0, %s30
      %s47 = sphi 0, %s31
      %s51 = sphi 0, %s51
      %s53 = sphi 0, %s51
      %s54 = sphi 0, %s53
      %s68 = sphi 0, %s54
      %s72 = sphi 0, %s72
      %s74 = sphi 0, %s72
      %s75 = sphi 0, %s74
      %s89 = sphi 0, %s75
      %s93 = sphi 0, %s93
      %s95 = sphi 0, %s93
      %s96 = sphi 0, %s95
      %s110 = sphi 0, %s96
      %s114 = sphi 0, %s114
      %s116 = sphi 0, %s114
      %s117 = sphi 0, %s116
      %s131 = sphi 0, %s117
      %s137 = sphi 0, %s139
      %s140 = sphi 0, %s137
      %s141 = sphi 0, %s140
      %s157 = sphi 0, %s141
    $region4: #{tpu_custom_call.1} parent=1 // loop_header_branch
      %20 = sbr.rel (%p18) target = $region8
    $region5: #{tpu_custom_call.1} parent=1 // loop_body
      %s22 = ssub.s32 %s17, 1
      %s23 = ssub.s32 %s17, 2
      %s24 = sadd.s32 %s17, 1
      %s25 = ssub.s32 %s17, %s24
      %p26 = scmp.eq.s32.totalorder %s25, 0
      %s28 = sadd.s32 %s27, 1
      %s29 = scalar_select %p26, %s27, %s28
      %p32 = pneg %p26
      %p33 = scmp.eq.s32.totalorder %s17, 1
      %p34 = por %p32, %p33
      %p35 = scmp.ne.s32.totalorder %s27, %s30
      %p36 = scmp.eq.s32.totalorder %s17, 0
      %p37 = por %p35, %p36
      %p38 = scmp.ne.s32.totalorder %s27, %s30
      %p39 = scmp.eq.s32.totalorder %s22, 1
      %p40 = por %p38, %p39
      %p41 = scmp.ne.s32.totalorder %s30, %s31
      %p42 = scmp.eq.s32.totalorder %s22, 0
      %p43 = por %p41, %p42
      %p44 = scmp.ne.s32.totalorder %s30, %s31
      %p45 = scmp.eq.s32.totalorder %s23, 1
      %p46 = por %p44, %p45
      %p48 = scmp.ne.s32.totalorder %s31, %s47
      %p49 = scmp.eq.s32.totalorder %s23, 0
      %p50 = por %p48, %p49
      %s52 = sadd.s32 %s51, 1
      %p55 = scmp.eq.s32.totalorder %s17, 1
      %p56 = scmp.ne.s32.totalorder %s51, %s53
      %p57 = scmp.eq.s32.totalorder %s17, 0
      %p58 = por %p56, %p57
      %p59 = scmp.ne.s32.totalorder %s51, %s53
      %p60 = scmp.eq.s32.totalorder %s22, 1
      %p61 = por %p59, %p60
      %p62 = scmp.ne.s32.totalorder %s53, %s54
      %p63 = scmp.eq.s32.totalorder %s22, 0
      %p64 = por %p62, %p63
      %p65 = scmp.ne.s32.totalorder %s53, %s54
      %p66 = scmp.eq.s32.totalorder %s23, 1
      %p67 = por %p65, %p66
      %p69 = scmp.ne.s32.totalorder %s54, %s68
      %p70 = scmp.eq.s32.totalorder %s23, 0
      %p71 = por %p69, %p70
      %s73 = sadd.s32 %s72, 1
      %p76 = scmp.eq.s32.totalorder %s17, 1
      %p77 = scmp.ne.s32.totalorder %s72, %s74
      %p78 = scmp.eq.s32.totalorder %s17, 0
      %p79 = por %p77, %p78
      %p80 = scmp.ne.s32.totalorder %s72, %s74
      %p81 = scmp.eq.s32.totalorder %s22, 1
      %p82 = por %p80, %p81
      %p83 = scmp.ne.s32.totalorder %s74, %s75
      %p84 = scmp.eq.s32.totalorder %s22, 0
      %p85 = por %p83, %p84
      %p86 = scmp.ne.s32.totalorder %s74, %s75
      %p87 = scmp.eq.s32.totalorder %s23, 1
      %p88 = por %p86, %p87
      %p90 = scmp.ne.s32.totalorder %s75, %s89
      %p91 = scmp.eq.s32.totalorder %s23, 0
      %p92 = por %p90, %p91
      %s94 = sadd.s32 %s93, 1
      %p97 = scmp.eq.s32.totalorder %s17, 1
      %p98 = scmp.ne.s32.totalorder %s93, %s95
      %p99 = scmp.eq.s32.totalorder %s17, 0
      %p100 = por %p98, %p99
      %p101 = scmp.ne.s32.totalorder %s93, %s95
      %p102 = scmp.eq.s32.totalorder %s22, 1
      %p103 = por %p101, %p102
      %p104 = scmp.ne.s32.totalorder %s95, %s96
      %p105 = scmp.eq.s32.totalorder %s22, 0
      %p106 = por %p104, %p105
      %p107 = scmp.ne.s32.totalorder %s95, %s96
      %p108 = scmp.eq.s32.totalorder %s23, 1
      %p109 = por %p107, %p108
      %p111 = scmp.ne.s32.totalorder %s96, %s110
      %p112 = scmp.eq.s32.totalorder %s23, 0
      %p113 = por %p111, %p112
      %s115 = sadd.s32 %s114, 1
      %p118 = scmp.eq.s32.totalorder %s17, 1
      %p119 = scmp.ne.s32.totalorder %s114, %s116
      %p120 = scmp.eq.s32.totalorder %s17, 0
      %p121 = por %p119, %p120
      %p122 = scmp.ne.s32.totalorder %s114, %s116
      %p123 = scmp.eq.s32.totalorder %s22, 1
      %p124 = por %p122, %p123
      %p125 = scmp.ne.s32.totalorder %s116, %s117
      %p126 = scmp.eq.s32.totalorder %s22, 0
      %p127 = por %p125, %p126
      %p128 = scmp.ne.s32.totalorder %s116, %s117
      %p129 = scmp.eq.s32.totalorder %s23, 1
      %p130 = por %p128, %p129
      %p132 = scmp.ne.s32.totalorder %s117, %s131
      %p133 = scmp.eq.s32.totalorder %s23, 0
      %p134 = por %p132, %p133
      %s135 = ssub.s32 %s17, %s24
      %p136 = scmp.eq.s32.totalorder %s135, 0
      %s138 = sadd.s32 %s137, 1
      %s139 = scalar_select %p136, %s137, %s138
      %p142 = pneg %p136
      %p143 = scmp.eq.s32.totalorder %s17, 1
      %p144 = por %p142, %p143
      %p145 = scmp.ne.s32.totalorder %s137, %s140
      %p146 = scmp.eq.s32.totalorder %s17, 0
      %p147 = por %p145, %p146
      %p148 = scmp.ne.s32.totalorder %s137, %s140
      %p149 = scmp.eq.s32.totalorder %s22, 1
      %p150 = por %p148, %p149
      %p151 = scmp.ne.s32.totalorder %s140, %s141
      %p152 = scmp.eq.s32.totalorder %s22, 0
      %p153 = por %p151, %p152
      %p154 = scmp.ne.s32.totalorder %s140, %s141
      %p155 = scmp.eq.s32.totalorder %s23, 1
      %p156 = por %p154, %p155
      %p158 = scmp.ne.s32.totalorder %s141, %s157
      %p159 = scmp.eq.s32.totalorder %s23, 0
      %p160 = por %p158, %p159
      %p161 = scmp.le.s32.totalorder 1, %s17
      %p162 = scmp.lt.s32.totalorder %s17, 3
      %p163 = pnand %p161, %p162
      %p164 = pneg %p163
      // Predicated region
      $region9: #{tpu_custom_call.1} parent=5 // pred_check
        _
      $region10: #{tpu_custom_call.1} parent=5 // pred_check_branch
        %166 = sbr.rel (%p163) target = $region12
      $region11: #{tpu_custom_call.1} parent=5 // pred_region
        %s167 = ssub.s32 %s17, 1
        // Predicated region
        $region13: #{tpu_custom_call.1} parent=11 // pred_check
          %p168 = pneg %p64
        $region14: #{tpu_custom_call.1} parent=11 // pred_check_branch
          %170 = sbr.rel (%p168) target = $region16
        $region15: #{tpu_custom_call.1} parent=11 // pred_region
          %s172 = ssub.s32 6144, 6144
          %173 = vsyncadd [#allocation6], %s172
          %s174 = sshll.u32 [#allocation5], 4
          %s175 = int_to_ptr.vmem [resolvable:$true] %s174
          %180 = dma.hbm_to_vmem [thread:$0]  %s1, 6144, %s175, [#allocation6], 128, 128, 8
        $region16: #{tpu_custom_call.1} parent=11 // pred_fallthru
          _
        // Predicated region
        $region17: #{tpu_custom_call.1} parent=11 // pred_check
          %p181 = pneg %p85
        $region18: #{tpu_custom_call.1} parent=11 // pred_check_branch
          %183 = sbr.rel (%p181) target = $region20
        $region19: #{tpu_custom_call.1} parent=11 // pred_region
          _
        $region20: #{tpu_custom_call.1} parent=11 // pred_fallthru
          _
        // Predicated region
        $region21: #{tpu_custom_call.1} parent=11 // pred_check
          %p184 = pneg %p106
        $region22: #{tpu_custom_call.1} parent=11 // pred_check_branch
          %186 = sbr.rel (%p184) target = $region24
        $region23: #{tpu_custom_call.1} parent=11 // pred_region
          _
        $region24: #{tpu_custom_call.1} parent=11 // pred_fallthru
          _
        // Predicated region
        $region25: #{tpu_custom_call.1} parent=11 // pred_check
          %p187 = pneg %p127
        $region26: #{tpu_custom_call.1} parent=11 // pred_check_branch
          %189 = sbr.rel (%p187) target = $region28
        $region27: #{tpu_custom_call.1} parent=11 // pred_region
          _
        $region28: #{tpu_custom_call.1} parent=11 // pred_fallthru
          _
      $region12: #{tpu_custom_call.1} parent=5 // pred_fallthru
        _
      %p190 = scmp.lt.s32.totalorder %s17, 2
      // Predicated region
      $region29: #{tpu_custom_call.1} parent=5 // pred_check
        %p191 = pneg %p190
      $region30: #{tpu_custom_call.1} parent=5 // pred_check_branch
        %193 = sbr.rel (%p191) target = $region32
      $region31: #{tpu_custom_call.1} parent=5 // pred_region
        // Predicated region
        $region33: #{tpu_custom_call.1} parent=31 // pred_check
          %p194 = pneg %p37
        $region34: #{tpu_custom_call.1} parent=31 // pred_check_branch
          %196 = sbr.rel (%p194) target = $region36
        $region35: #{tpu_custom_call.1} parent=31 // pred_region
          %s197 = sand.u32 %s27, 1
          %s198 = scalar_lea.sflag [#allocation4], %s197
          %s199 = sand.u32 %s27, 1
          %s200 = smul.addr %s199, 256
          %s201 = scalar_lea.vmem [#allocation3], %s200
          %s202 = smul.u32 32, %s17
          %s204 = ssub.s32 4096, 4096
          %205 = vsyncadd %s198, %s204
          %s206 = smul.addr %s202, 128
          %s207 = scalar_lea.hbm %s0, %s206
          %s208 = sshll.u32 %s201, 4
          %s209 = int_to_ptr.vmem [resolvable:$true] %s208
          %214 = dma.hbm_to_vmem [thread:$0]  %s207, 4096, %s209, %s198, 128, 128, 8
        $region36: #{tpu_custom_call.1} parent=31 // pred_fallthru
          _
      $region32: #{tpu_custom_call.1} parent=5 // pred_fallthru
        _
      %p215 = scmp.le.s32.totalorder 1, %s17
      %p216 = scmp.lt.s32.totalorder %s17, 3
      %p217 = pnand %p215, %p216
      %p218 = pneg %p217
      // Predicated region
      $region37: #{tpu_custom_call.1} parent=5 // pred_check
        _
      $region38: #{tpu_custom_call.1} parent=5 // pred_check_branch
        %220 = sbr.rel (%p217) target = $region40
      $region39: #{tpu_custom_call.1} parent=5 // pred_region
        %s221 = ssub.s32 %s17, 1
        %s222 = sand.u32 %s30, 1
        %s223 = scalar_lea.sflag [#allocation4], %s222
        %s224 = sand.u32 %s30, 1
        %s225 = smul.addr %s224, 256
        %s226 = scalar_lea.vmem [#allocation3], %s225
        // Predicated region
        $region41: #{tpu_custom_call.1} parent=39 // pred_check
          %p227 = pneg %p43
        $region42: #{tpu_custom_call.1} parent=39 // pred_check_branch
          %229 = sbr.rel (%p227) target = $region44
        $region43: #{tpu_custom_call.1} parent=39 // pred_region
          %230 = dma.done %s223, 4096
        $region44: #{tpu_custom_call.1} parent=39 // pred_fallthru
          _
        // Predicated region
        $region45: #{tpu_custom_call.1} parent=39 // pred_check
          %p231 = pneg %p64
        $region46: #{tpu_custom_call.1} parent=39 // pred_check_branch
          %233 = sbr.rel (%p231) target = $region48
        $region47: #{tpu_custom_call.1} parent=39 // pred_region
          %234 = dma.done [#allocation6], 6144
        $region48: #{tpu_custom_call.1} parent=39 // pred_fallthru
          _
        %s235 = sand.u32 %s30, 1
        %s236 = scalar_lea.sflag [#allocation4], %s235
        %s237 = sand.u32 %s30, 1
        %s238 = smul.addr %s237, 256
        %s239 = scalar_lea.vmem [#allocation3], %s238
        %p240 = pneg %p43
        %p241 = pneg %p40
        %p242 = pneg %p64
        %p243 = pneg %p61
        %p244 = pneg %p85
        %p245 = pneg %p82
        %p246 = pneg %p106
        %p247 = pneg %p103
        %p248 = pneg %p127
        %p249 = pneg %p124
        %p250 = pneg %p153
        %p251 = pneg %p150
        %s252 = smul.u32 32, %s22
        %p253 = scmp.lt.s32.totalorder %s252, 63
        %s254 = scalar_select %p253, %s252, 63
        %s255 = smul.addr %s254, 8
        %s256 = scalar_lea.vmem %s5, %s255
        %s257 = smul.u32 32, %s22
        %s258 = smul.u32 32, %s22
        %p259 = scmp.lt.s32.totalorder %s258, 63
        %s260 = scalar_select %p259, %s258, 63
        %s261 = smul.addr %s260, 8
        %s262 = scalar_lea.vmem %s5, %s261
        %s263 = smul.u32 32, %s22
        %v265 = vld [vmem:[%s226] sm:$0xff]
        %v266 = vld [vmem:[%s226 + $0x8] sm:$0xff]
        %v267 = vld [vmem:[%s226 + $0x10] sm:$0xff]
        %v268 = vld [vmem:[%s226 + $0x18] sm:$0xff]
        %v269 = vld [vmem:[%s226 + $0x20] sm:$0xff]
        %v270 = vld [vmem:[%s226 + $0x28] sm:$0xff]
        %v271 = vld [vmem:[%s226 + $0x30] sm:$0xff]
        %v272 = vld [vmem:[%s226 + $0x38] sm:$0xff]
        %v273 = vld [vmem:[%s226 + $0x40] sm:$0xff]
        %v274 = vld [vmem:[%s226 + $0x48] sm:$0xff]
        %v275 = vld [vmem:[%s226 + $0x50] sm:$0xff]
        %v276 = vld [vmem:[%s226 + $0x58] sm:$0xff]
        %v277 = vld [vmem:[%s226 + $0x60] sm:$0xff]
        %v278 = vld [vmem:[%s226 + $0x68] sm:$0xff]
        %v279 = vld [vmem:[%s226 + $0x70] sm:$0xff]
        %v280 = vld [vmem:[%s226 + $0x78] sm:$0xff]
        %v281 = vld [vmem:[%s226 + $0x80] sm:$0xff]
        %v282 = vld [vmem:[%s226 + $0x88] sm:$0xff]
        %v283 = vld [vmem:[%s226 + $0x90] sm:$0xff]
        %v284 = vld [vmem:[%s226 + $0x98] sm:$0xff]
        %v285 = vld [vmem:[%s226 + $0xa0] sm:$0xff]
        %v286 = vld [vmem:[%s226 + $0xa8] sm:$0xff]
        %v287 = vld [vmem:[%s226 + $0xb0] sm:$0xff]
        %v288 = vld [vmem:[%s226 + $0xb8] sm:$0xff]
        %v289 = vld [vmem:[%s226 + $0xc0] sm:$0xff]
        %v290 = vld [vmem:[%s226 + $0xc8] sm:$0xff]
        %v291 = vld [vmem:[%s226 + $0xd0] sm:$0xff]
        %v292 = vld [vmem:[%s226 + $0xd8] sm:$0xff]
        %v293 = vld [vmem:[%s226 + $0xe0] sm:$0xff]
        %v294 = vld [vmem:[%s226 + $0xe8] sm:$0xff]
        %v295 = vld [vmem:[%s226 + $0xf0] sm:$0xff]
        %v296 = vld [vmem:[%s226 + $0xf8] sm:$0xff]
        %v297 = vpack.c.bf16 %v266, %v265
        %v298 = vpack.c.bf16 %v268, %v267
        %v299 = vpack.c.bf16 %v270, %v269
        %v300 = vpack.c.bf16 %v272, %v271
        %v301 = vpack.c.bf16 %v274, %v273
        %v302 = vpack.c.bf16 %v276, %v275
        %v303 = vpack.c.bf16 %v278, %v277
        %v304 = vpack.c.bf16 %v280, %v279
        %v305 = vpack.c.bf16 %v282, %v281
        %v306 = vpack.c.bf16 %v284, %v283
        %v307 = vpack.c.bf16 %v286, %v285
        %v308 = vpack.c.bf16 %v288, %v287
        %v309 = vpack.c.bf16 %v290, %v289
        %v310 = vpack.c.bf16 %v292, %v291
        %v311 = vpack.c.bf16 %v294, %v293
        %v312 = vpack.c.bf16 %v296, %v295
        %v313 = vld [vmem:[#allocation5] sm:$0xff]
        %v314 = vld [vmem:[#allocation5 + $0x8] sm:$0xff]
        %v315 = vld [vmem:[#allocation5 + $0x10] sm:$0xff]
        %v316 = vld [vmem:[#allocation5 + $0x18] sm:$0xff]
        %v317 = vld [vmem:[#allocation5 + $0x20] sm:$0xff]
        %v318 = vld [vmem:[#allocation5 + $0x28] sm:$0xff]
        %v319 = vld [vmem:[#allocation5 + $0x30] sm:$0xff]
        %v320 = vld [vmem:[#allocation5 + $0x38] sm:$0xff]
        %v321 = vld [vmem:[#allocation5 + $0x40] sm:$0xff]
        %v322 = vld [vmem:[#allocation5 + $0x48] sm:$0xff]
        %v323 = vld [vmem:[#allocation5 + $0x50] sm:$0xff]
        %v324 = vld [vmem:[#allocation5 + $0x58] sm:$0xff]
        %v325 = vld [vmem:[#allocation5 + $0x60] sm:$0xff]
        %v326 = vld [vmem:[#allocation5 + $0x68] sm:$0xff]
        %v327 = vld [vmem:[#allocation5 + $0x70] sm:$0xff]
        %v328 = vld [vmem:[#allocation5 + $0x78] sm:$0xff]
        %v345 = vunpack.c.l.b16 %v313
        %v346 = vunpack.c.h.b16 %v313
        %v347 = vunpack.c.l.b16 %v314
        %v348 = vunpack.c.h.b16 %v314
        %v349 = vunpack.c.l.b16 %v315
        %v350 = vunpack.c.h.b16 %v315
        %v351 = vunpack.c.l.b16 %v316
        %v352 = vunpack.c.h.b16 %v316
        %v353 = vunpack.c.l.b16 %v317
        %v354 = vunpack.c.h.b16 %v317
        %v355 = vunpack.c.l.b16 %v318
        %v356 = vunpack.c.h.b16 %v318
        %v357 = vunpack.c.l.b16 %v319
        %v358 = vunpack.c.h.b16 %v319
        %v359 = vunpack.c.l.b16 %v320
        %v360 = vunpack.c.h.b16 %v320
        %v361 = vunpack.c.l.b16 %v321
        %v362 = vunpack.c.h.b16 %v321
        %v363 = vunpack.c.l.b16 %v322
        %v364 = vunpack.c.h.b16 %v322
        %v365 = vunpack.c.l.b16 %v323
        %v366 = vunpack.c.h.b16 %v323
        %v367 = vunpack.c.l.b16 %v324
        %v368 = vunpack.c.h.b16 %v324
        %v369 = vunpack.c.l.b16 %v325
        %v370 = vunpack.c.h.b16 %v325
        %v371 = vunpack.c.l.b16 %v326
        %v372 = vunpack.c.h.b16 %v326
        %v373 = vunpack.c.l.b16 %v327
        %v374 = vunpack.c.h.b16 %v327
        %v375 = vunpack.c.l.b16 %v328
        %v376 = vunpack.c.h.b16 %v328
        %v377 = vpack.c.b16 %v347, %v345
        %v378 = vpack.c.b16 %v348, %v346
        %v379 = vpack.c.b16 %v351, %v349
        %v380 = vpack.c.b16 %v352, %v350
        %v381 = vpack.c.b16 %v355, %v353
        %v382 = vpack.c.b16 %v356, %v354
        %v383 = vpack.c.b16 %v359, %v357
        %v384 = vpack.c.b16 %v360, %v358
        %v385 = vpack.c.b16 %v363, %v361
        %v386 = vpack.c.b16 %v364, %v362
        %v387 = vpack.c.b16 %v367, %v365
        %v388 = vpack.c.b16 %v368, %v366
        %v389 = vpack.c.b16 %v371, %v369
        %v390 = vpack.c.b16 %v372, %v370
        %v391 = vpack.c.b16 %v375, %v373
        %v392 = vpack.c.b16 %v376, %v374
        %409 = vmatprep.subr.bf16.mxu0 %v378
        %410 = vmatpush1.bf16.msra.mxu0 %v377
        %411 = vmatprep.subr.bf16.mxu0 %v380
        %412 = vmatpush1.bf16.msra.mxu0 %v379
        %413 = vmatprep.subr.bf16.mxu0 %v382
        %414 = vmatpush1.bf16.msra.mxu0 %v381
        %415 = vmatprep.subr.bf16.mxu0 %v384
        %416 = vmatpush1.bf16.msra.mxu0 %v383
        %417 = vmatprep.subr.bf16.mxu0 %v386
        %418 = vmatpush1.bf16.msra.mxu0 %v385
        %419 = vmatprep.subr.bf16.mxu0 %v388
        %420 = vmatpush1.bf16.msra.mxu0 %v387
        %421 = vmatprep.subr.bf16.mxu0 %v390
        %422 = vmatpush1.bf16.msra.mxu0 %v389
        %423 = vmatprep.subr.bf16.mxu0 %v392
        %424 = vmatpush1.bf16.msra.mxu0 %v391
        %425 = vmatprep.subr.bf16.mxu0 0
        %426 = vmatpush1.bf16.msra.mxu0 0
        %427 = vmatprep.subr.bf16.mxu0 0
        %428 = vmatpush1.bf16.msra.mxu0 0
        %429 = vmatprep.subr.bf16.mxu0 0
        %430 = vmatpush1.bf16.msra.mxu0 0
        %431 = vmatprep.subr.bf16.mxu0 0
        %432 = vmatpush1.bf16.msra.mxu0 0
        %433 = vmatprep.subr.bf16.mxu0 0
        %434 = vmatpush1.bf16.msra.mxu0 0
        %435 = vmatprep.subr.bf16.mxu0 0
        %436 = vmatpush1.bf16.msra.mxu0 0
        %437 = vmatprep.subr.bf16.mxu0 0
        %438 = vmatpush1.bf16.msra.mxu0 0
        %439 = vmatprep.subr.bf16.mxu0 0
        %440 = vmatpush1.bf16.msra.mxu0 0
        %441 = vmatprep.mubr.bf16.mxu0 0
        %442 = vmatmul.mubr.bf16.gmra.mrb[0].mxu0 %v297
        %v443 = vpop.f32.mrb[0].mxu0
        %v444 = vadd.f32 0.0, %v443
        %v445 = vpop.f32.mrb[0].mxu0
        %v446 = vadd.f32 0.0, %v445
        %v447 = vpop.f32.mrb[0].mxu0
        %v448 = vadd.f32 0.0, %v447
        %v449 = vpop.f32.mrb[0].mxu0
        %v450 = vadd.f32 0.0, %v449
        %451 = vmatprep.mubr.bf16.mxu0 0
        %452 = vmatmul.mubr.bf16.gmra.mrb[0].mxu0 %v298
        %v453 = vpop.f32.mrb[0].mxu0
        %v454 = vadd.f32 0.0, %v453
        %v455 = vpop.f32.mrb[0].mxu0
        %v456 = vadd.f32 0.0, %v455
        %v457 = vpop.f32.mrb[0].mxu0
        %v458 = vadd.f32 0.0, %v457
        %v459 = vpop.f32.mrb[0].mxu0
        %v460 = vadd.f32 0.0, %v459
        %461 = vmatprep.mubr.bf16.mxu0 0
        %462 = vmatmul.mubr.bf16.gmra.mrb[0].mxu0 %v299
        %v463 = vpop.f32.mrb[0].mxu0
        %v464 = vadd.f32 0.0, %v463
        %v465 = vpop.f32.mrb[0].mxu0
        %v466 = vadd.f32 0.0, %v465
        %v467 = vpop.f32.mrb[0].mxu0
        %v468 = vadd.f32 0.0, %v467
        %v469 = vpop.f32.mrb[0].mxu0
        %v470 = vadd.f32 0.0, %v469
        %471 = vmatprep.mubr.bf16.mxu0 0
        %472 = vmatmul.mubr.bf16.gmra.mrb[0].mxu0 %v300
        %v473 = vpop.f32.mrb[0].mxu0
        %v474 = vadd.f32 0.0, %v473
        %v475 = vpop.f32.mrb[0].mxu0
        %v476 = vadd.f32 0.0, %v475
        %v477 = vpop.f32.mrb[0].mxu0
        %v478 = vadd.f32 0.0, %v477
        %v479 = vpop.f32.mrb[0].mxu0
        %v480 = vadd.f32 0.0, %v479
        %481 = vmatprep.mubr.bf16.mxu0 0
        %482 = vmatmul.mubr.bf16.gmra.mrb[0].mxu0 %v301
        %v483 = vpop.f32.mrb[0].mxu0
        %v484 = vadd.f32 0.0, %v483
        %v485 = vpop.f32.mrb[0].mxu0
        %v486 = vadd.f32 0.0, %v485
        %v487 = vpop.f32.mrb[0].mxu0
        %v488 = vadd.f32 0.0, %v487
        %v489 = vpop.f32.mrb[0].mxu0
        %v490 = vadd.f32 0.0, %v489
        %491 = vmatprep.mubr.bf16.mxu0 0
        %492 = vmatmul.mubr.bf16.gmra.mrb[0].mxu0 %v302
        %v493 = vpop.f32.mrb[0].mxu0
        %v494 = vadd.f32 0.0, %v493
        %v495 = vpop.f32.mrb[0].mxu0
        %v496 = vadd.f32 0.0, %v495
        %v497 = vpop.f32.mrb[0].mxu0
        %v498 = vadd.f32 0.0, %v497
        %v499 = vpop.f32.mrb[0].mxu0
        %v500 = vadd.f32 0.0, %v499
        %501 = vmatprep.mubr.bf16.mxu0 0
        %502 = vmatmul.mubr.bf16.gmra.mrb[0].mxu0 %v303
        %v503 = vpop.f32.mrb[0].mxu0
        %v504 = vadd.f32 0.0, %v503
        %v505 = vpop.f32.mrb[0].mxu0
        %v506 = vadd.f32 0.0, %v505
        %v507 = vpop.f32.mrb[0].mxu0
        %v508 = vadd.f32 0.0, %v507
        %v509 = vpop.f32.mrb[0].mxu0
        %v510 = vadd.f32 0.0, %v509
        %511 = vmatprep.mubr.bf16.mxu0 0
        %512 = vmatmul.mubr.bf16.gmra.mrb[0].mxu0 %v304
        %v513 = vpop.f32.mrb[0].mxu0
        %v514 = vadd.f32 0.0, %v513
        %v515 = vpop.f32.mrb[0].mxu0
        %v516 = vadd.f32 0.0, %v515
        %v517 = vpop.f32.mrb[0].mxu0
        %v518 = vadd.f32 0.0, %v517
        %v519 = vpop.f32.mrb[0].mxu0
        %v520 = vadd.f32 0.0, %v519
        %521 = vmatprep.mubr.bf16.mxu0 0
        %522 = vmatmul.mubr.bf16.gmra.mrb[0].mxu0 %v305
        %v523 = vpop.f32.mrb[0].mxu0
        %v524 = vadd.f32 0.0, %v523
        %v525 = vpop.f32.mrb[0].mxu0
        %v526 = vadd.f32 0.0, %v525
        %v527 = vpop.f32.mrb[0].mxu0
        %v528 = vadd.f32 0.0, %v527
        %v529 = vpop.f32.mrb[0].mxu0
        %v530 = vadd.f32 0.0, %v529
        %531 = vmatprep.mubr.bf16.mxu0 0
        %532 = vmatmul.mubr.bf16.gmra.mrb[0].mxu0 %v306
        %v533 = vpop.f32.mrb[0].mxu0
        %v534 = vadd.f32 0.0, %v533
        %v535 = vpop.f32.mrb[0].mxu0
        %v536 = vadd.f32 0.0, %v535
        %v537 = vpop.f32.mrb[0].mxu0
        %v538 = vadd.f32 0.0, %v537
        %v539 = vpop.f32.mrb[0].mxu0
        %v540 = vadd.f32 0.0, %v539
        %541 = vmatprep.mubr.bf16.mxu0 0
        %542 = vmatmul.mubr.bf16.gmra.mrb[0].mxu0 %v307
        %v543 = vpop.f32.mrb[0].mxu0
        %v544 = vadd.f32 0.0, %v543
        %v545 = vpop.f32.mrb[0].mxu0
        %v546 = vadd.f32 0.0, %v545
        %v547 = vpop.f32.mrb[0].mxu0
        %v548 = vadd.f32 0.0, %v547
        %v549 = vpop.f32.mrb[0].mxu0
        %v550 = vadd.f32 0.0, %v549
        %551 = vmatprep.mubr.bf16.mxu0 0
        %552 = vmatmul.mubr.bf16.gmra.mrb[0].mxu0 %v308
        %v553 = vpop.f32.mrb[0].mxu0
        %v554 = vadd.f32 0.0, %v553
        %v555 = vpop.f32.mrb[0].mxu0
        %v556 = vadd.f32 0.0, %v555
        %v557 = vpop.f32.mrb[0].mxu0
        %v558 = vadd.f32 0.0, %v557
        %v559 = vpop.f32.mrb[0].mxu0
        %v560 = vadd.f32 0.0, %v559
        %561 = vmatprep.mubr.bf16.mxu0 0
        %562 = vmatmul.mubr.bf16.gmra.mrb[0].mxu0 %v309
        %v563 = vpop.f32.mrb[0].mxu0
        %v564 = vadd.f32 0.0, %v563
        %v565 = vpop.f32.mrb[0].mxu0
        %v566 = vadd.f32 0.0, %v565
        %v567 = vpop.f32.mrb[0].mxu0
        %v568 = vadd.f32 0.0, %v567
        %v569 = vpop.f32.mrb[0].mxu0
        %v570 = vadd.f32 0.0, %v569
        %571 = vmatprep.mubr.bf16.mxu0 0
        %572 = vmatmul.mubr.bf16.gmra.mrb[0].mxu0 %v310
        %v573 = vpop.f32.mrb[0].mxu0
        %v574 = vadd.f32 0.0, %v573
        %v575 = vpop.f32.mrb[0].mxu0
        %v576 = vadd.f32 0.0, %v575
        %v577 = vpop.f32.mrb[0].mxu0
        %v578 = vadd.f32 0.0, %v577
        %v579 = vpop.f32.mrb[0].mxu0
        %v580 = vadd.f32 0.0, %v579
        %581 = vmatprep.mubr.bf16.mxu0 0
        %582 = vmatmul.mubr.bf16.gmra.mrb[0].mxu0 %v311
        %v583 = vpop.f32.mrb[0].mxu0
        %v584 = vadd.f32 0.0, %v583
        %v585 = vpop.f32.mrb[0].mxu0
        %v586 = vadd.f32 0.0, %v585
        %v587 = vpop.f32.mrb[0].mxu0
        %v588 = vadd.f32 0.0, %v587
        %v589 = vpop.f32.mrb[0].mxu0
        %v590 = vadd.f32 0.0, %v589
        %591 = vmatprep.mubr.bf16.mxu0 0
        %592 = vmatmul.mubr.bf16.gmra.mrb[0].mxu0 %v312
        %v593 = vpop.f32.mrb[0].mxu0
        %v594 = vadd.f32 0.0, %v593
        %v595 = vpop.f32.mrb[0].mxu0
        %v596 = vadd.f32 0.0, %v595
        %v597 = vpop.f32.mrb[0].mxu0
        %v598 = vadd.f32 0.0, %v597
        %v599 = vpop.f32.mrb[0].mxu0
        %v600 = vadd.f32 0.0, %v599
        %601 = vdwg.mxu0
        %v602 = vsub.f32 0.0, %v446
        %v603 = vsub.f32 0.0, %v450
        %v604 = vsub.f32 0.0, %v456
        %v605 = vsub.f32 0.0, %v460
        %v606 = vsub.f32 0.0, %v466
        %v607 = vsub.f32 0.0, %v470
        %v608 = vsub.f32 0.0, %v476
        %v609 = vsub.f32 0.0, %v480
        %v610 = vsub.f32 0.0, %v486
        %v611 = vsub.f32 0.0, %v490
        %v612 = vsub.f32 0.0, %v496
        %v613 = vsub.f32 0.0, %v500
        %v614 = vsub.f32 0.0, %v506
        %v615 = vsub.f32 0.0, %v510
        %v616 = vsub.f32 0.0, %v516
        %v617 = vsub.f32 0.0, %v520
        %v618 = vsub.f32 0.0, %v526
        %v619 = vsub.f32 0.0, %v530
        %v620 = vsub.f32 0.0, %v536
        %v621 = vsub.f32 0.0, %v540
        %v622 = vsub.f32 0.0, %v546
        %v623 = vsub.f32 0.0, %v550
        %v624 = vsub.f32 0.0, %v556
        %v625 = vsub.f32 0.0, %v560
        %v626 = vsub.f32 0.0, %v566
        %v627 = vsub.f32 0.0, %v570
        %v628 = vsub.f32 0.0, %v576
        %v629 = vsub.f32 0.0, %v580
        %v630 = vsub.f32 0.0, %v586
        %v631 = vsub.f32 0.0, %v590
        %v632 = vsub.f32 0.0, %v596
        %v633 = vsub.f32 0.0, %v600
        %v634 = vmul.f32 %v602, 1.442695
        %v635 = vpow.pop %v634
        %v636 = vmul.f32 %v603, 1.442695
        %v637 = vpow.pop %v636
        %v638 = vmul.f32 %v604, 1.442695
        %v639 = vpow.pop %v638
        %v640 = vmul.f32 %v605, 1.442695
        %v641 = vpow.pop %v640
        %v642 = vmul.f32 %v606, 1.442695
        %v643 = vpow.pop %v642
        %v644 = vmul.f32 %v607, 1.442695
        %v645 = vpow.pop %v644
        %v646 = vmul.f32 %v608, 1.442695
        %v647 = vpow.pop %v646
        %v648 = vmul.f32 %v609, 1.442695
        %v649 = vpow.pop %v648
        %v650 = vmul.f32 %v610, 1.442695
        %v651 = vpow.pop %v650
        %v652 = vmul.f32 %v611, 1.442695
        %v653 = vpow.pop %v652
        %v654 = vmul.f32 %v612, 1.442695
        %v655 = vpow.pop %v654
        %v656 = vmul.f32 %v613, 1.442695
        %v657 = vpow.pop %v656
        %v658 = vmul.f32 %v614, 1.442695
        %v659 = vpow.pop %v658
        %v660 = vmul.f32 %v615, 1.442695
        %v661 = vpow.pop %v660
        %v662 = vmul.f32 %v616, 1.442695
        %v663 = vpow.pop %v662
        %v664 = vmul.f32 %v617, 1.442695
        %v665 = vpow.pop %v664
        %v666 = vmul.f32 %v618, 1.442695
        %v667 = vpow.pop %v666
        %v668 = vmul.f32 %v619, 1.442695
        %v669 = vpow.pop %v668
        %v670 = vmul.f32 %v620, 1.442695
        %v671 = vpow.pop %v670
        %v672 = vmul.f32 %v621, 1.442695
        %v673 = vpow.pop %v672
        %v674 = vmul.f32 %v622, 1.442695
        %v675 = vpow.pop %v674
        %v676 = vmul.f32 %v623, 1.442695
        %v677 = vpow.pop %v676
        %v678 = vmul.f32 %v624, 1.442695
        %v679 = vpow.pop %v678
        %v680 = vmul.f32 %v625, 1.442695
        %v681 = vpow.pop %v680
        %v682 = vmul.f32 %v626, 1.442695
        %v683 = vpow.pop %v682
        %v684 = vmul.f32 %v627, 1.442695
        %v685 = vpow.pop %v684
        %v686 = vmul.f32 %v628, 1.442695
        %v687 = vpow.pop %v686
        %v688 = vmul.f32 %v629, 1.442695
        %v689 = vpow.pop %v688
        %v690 = vmul.f32 %v630, 1.442695
        %v691 = vpow.pop %v690
        %v692 = vmul.f32 %v631, 1.442695
        %v693 = vpow.pop %v692
        %v694 = vmul.f32 %v632, 1.442695
        %v695 = vpow.pop %v694
        %v696 = vmul.f32 %v633, 1.442695
        %v697 = vpow.pop %v696
        %v698 = vadd.f32 %v635, 1.0
        %v699 = vadd.f32 %v637, 1.0
        %v700 = vadd.f32 %v639, 1.0
        %v701 = vadd.f32 %v641, 1.0
        %v702 = vadd.f32 %v643, 1.0
        %v703 = vadd.f32 %v645, 1.0
        %v704 = vadd.f32 %v647, 1.0
        %v705 = vadd.f32 %v649, 1.0
        %v706 = vadd.f32 %v651, 1.0
        %v707 = vadd.f32 %v653, 1.0
        %v708 = vadd.f32 %v655, 1.0
        %v709 = vadd.f32 %v657, 1.0
        %v710 = vadd.f32 %v659, 1.0
        %v711 = vadd.f32 %v661, 1.0
        %v712 = vadd.f32 %v663, 1.0
        %v713 = vadd.f32 %v665, 1.0
        %v714 = vadd.f32 %v667, 1.0
        %v715 = vadd.f32 %v669, 1.0
        %v716 = vadd.f32 %v671, 1.0
        %v717 = vadd.f32 %v673, 1.0
        %v718 = vadd.f32 %v675, 1.0
        %v719 = vadd.f32 %v677, 1.0
        %v720 = vadd.f32 %v679, 1.0
        %v721 = vadd.f32 %v681, 1.0
        %v722 = vadd.f32 %v683, 1.0
        %v723 = vadd.f32 %v685, 1.0
        %v724 = vadd.f32 %v687, 1.0
        %v725 = vadd.f32 %v689, 1.0
        %v726 = vadd.f32 %v691, 1.0
        %v727 = vadd.f32 %v693, 1.0
        %v728 = vadd.f32 %v695, 1.0
        %v729 = vadd.f32 %v697, 1.0
        %v730 = vrcp.pop %v698
        %v731 = vrcp.pop %v699
        %v732 = vrcp.pop %v700
        %v733 = vrcp.pop %v701
        %v734 = vrcp.pop %v702
        %v735 = vrcp.pop %v703
        %v736 = vrcp.pop %v704
        %v737 = vrcp.pop %v705
        %v738 = vrcp.pop %v706
        %v739 = vrcp.pop %v707
        %v740 = vrcp.pop %v708
        %v741 = vrcp.pop %v709
        %v742 = vrcp.pop %v710
        %v743 = vrcp.pop %v711
        %v744 = vrcp.pop %v712
        %v745 = vrcp.pop %v713
        %v746 = vrcp.pop %v714
        %v747 = vrcp.pop %v715
        %v748 = vrcp.pop %v716
        %v749 = vrcp.pop %v717
        %v750 = vrcp.pop %v718
        %v751 = vrcp.pop %v719
        %v752 = vrcp.pop %v720
        %v753 = vrcp.pop %v721
        %v754 = vrcp.pop %v722
        %v755 = vrcp.pop %v723
        %v756 = vrcp.pop %v724
        %v757 = vrcp.pop %v725
        %v758 = vrcp.pop %v726
        %v759 = vrcp.pop %v727
        %v760 = vrcp.pop %v728
        %v761 = vrcp.pop %v729
        %v762 = vld [vmem:[%s2] sm:$0x1]
        %v764 = vlaneseq
        %v765 = vshrl.u32 %v764, 7
        %v766 = vsub.s32 0, %v765
        %v767 = vrot.slane %v762, %v766
        %v769 = vadd.f32 %v444, %v767
        %v770 = vadd.f32 %v448, %v767
        %v771 = vadd.f32 %v454, %v767
        %v772 = vadd.f32 %v458, %v767
        %v773 = vadd.f32 %v464, %v767
        %v774 = vadd.f32 %v468, %v767
        %v775 = vadd.f32 %v474, %v767
        %v776 = vadd.f32 %v478, %v767
        %v777 = vadd.f32 %v484, %v767
        %v778 = vadd.f32 %v488, %v767
        %v779 = vadd.f32 %v494, %v767
        %v780 = vadd.f32 %v498, %v767
        %v781 = vadd.f32 %v504, %v767
        %v782 = vadd.f32 %v508, %v767
        %v783 = vadd.f32 %v514, %v767
        %v784 = vadd.f32 %v518, %v767
        %v785 = vadd.f32 %v524, %v767
        %v786 = vadd.f32 %v528, %v767
        %v787 = vadd.f32 %v534, %v767
        %v788 = vadd.f32 %v538, %v767
        %v789 = vadd.f32 %v544, %v767
        %v790 = vadd.f32 %v548, %v767
        %v791 = vadd.f32 %v554, %v767
        %v792 = vadd.f32 %v558, %v767
        %v793 = vadd.f32 %v564, %v767
        %v794 = vadd.f32 %v568, %v767
        %v795 = vadd.f32 %v574, %v767
        %v796 = vadd.f32 %v578, %v767
        %v797 = vadd.f32 %v584, %v767
        %v798 = vadd.f32 %v588, %v767
        %v799 = vadd.f32 %v594, %v767
        %v800 = vadd.f32 %v598, %v767
        %v801 = vmul.f32 %v265, %v769
        %v802 = vmul.f32 %v266, %v770
        %v803 = vmul.f32 %v267, %v771
        %v804 = vmul.f32 %v268, %v772
        %v805 = vmul.f32 %v269, %v773
        %v806 = vmul.f32 %v270, %v774
        %v807 = vmul.f32 %v271, %v775
        %v808 = vmul.f32 %v272, %v776
        %v809 = vmul.f32 %v273, %v777
        %v810 = vmul.f32 %v274, %v778
        %v811 = vmul.f32 %v275, %v779
        %v812 = vmul.f32 %v276, %v780
        %v813 = vmul.f32 %v277, %v781
        %v814 = vmul.f32 %v278, %v782
        %v815 = vmul.f32 %v279, %v783
        %v816 = vmul.f32 %v280, %v784
        %v817 = vmul.f32 %v281, %v785
        %v818 = vmul.f32 %v282, %v786
        %v819 = vmul.f32 %v283, %v787
        %v820 = vmul.f32 %v284, %v788
        %v821 = vmul.f32 %v285, %v789
        %v822 = vmul.f32 %v286, %v790
        %v823 = vmul.f32 %v287, %v791
        %v824 = vmul.f32 %v288, %v792
        %v825 = vmul.f32 %v289, %v793
        %v826 = vmul.f32 %v290, %v794
        %v827 = vmul.f32 %v291, %v795
        %v828 = vmul.f32 %v292, %v796
        %v829 = vmul.f32 %v293, %v797
        %v830 = vmul.f32 %v294, %v798
        %v831 = vmul.f32 %v295, %v799
        %v832 = vmul.f32 %v296, %v800
        %v833 = vmul.f32 %v801, %v730
        %v834 = vmul.f32 %v802, %v731
        %v835 = vmul.f32 %v803, %v732
        %v836 = vmul.f32 %v804, %v733
        %v837 = vmul.f32 %v805, %v734
        %v838 = vmul.f32 %v806, %v735
        %v839 = vmul.f32 %v807, %v736
        %v840 = vmul.f32 %v808, %v737
        %v841 = vmul.f32 %v809, %v738
        %v842 = vmul.f32 %v810, %v739
        %v843 = vmul.f32 %v811, %v740
        %v844 = vmul.f32 %v812, %v741
        %v845 = vmul.f32 %v813, %v742
        %v846 = vmul.f32 %v814, %v743
        %v847 = vmul.f32 %v815, %v744
        %v848 = vmul.f32 %v816, %v745
        %v849 = vmul.f32 %v817, %v746
        %v850 = vmul.f32 %v818, %v747
        %v851 = vmul.f32 %v819, %v748
        %v852 = vmul.f32 %v820, %v749
        %v853 = vmul.f32 %v821, %v750
        %v854 = vmul.f32 %v822, %v751
        %v855 = vmul.f32 %v823, %v752
        %v856 = vmul.f32 %v824, %v753
        %v857 = vmul.f32 %v825, %v754
        %v858 = vmul.f32 %v826, %v755
        %v859 = vmul.f32 %v827, %v756
        %v860 = vmul.f32 %v828, %v757
        %v861 = vmul.f32 %v829, %v758
        %v862 = vmul.f32 %v830, %v759
        %v863 = vmul.f32 %v831, %v760
        %v864 = vmul.f32 %v832, %v761
        %v865 = vadd.f32 %v833, %v265
        %v866 = vadd.f32 %v834, %v266
        %v867 = vadd.f32 %v835, %v267
        %v868 = vadd.f32 %v836, %v268
        %v869 = vadd.f32 %v837, %v269
        %v870 = vadd.f32 %v838, %v270
        %v871 = vadd.f32 %v839, %v271
        %v872 = vadd.f32 %v840, %v272
        %v873 = vadd.f32 %v841, %v273
        %v874 = vadd.f32 %v842, %v274
        %v875 = vadd.f32 %v843, %v275
        %v876 = vadd.f32 %v844, %v276
        %v877 = vadd.f32 %v845, %v277
        %v878 = vadd.f32 %v846, %v278
        %v879 = vadd.f32 %v847, %v279
        %v880 = vadd.f32 %v848, %v280
        %v881 = vadd.f32 %v849, %v281
        %v882 = vadd.f32 %v850, %v282
        %v883 = vadd.f32 %v851, %v283
        %v884 = vadd.f32 %v852, %v284
        %v885 = vadd.f32 %v853, %v285
        %v886 = vadd.f32 %v854, %v286
        %v887 = vadd.f32 %v855, %v287
        %v888 = vadd.f32 %v856, %v288
        %v889 = vadd.f32 %v857, %v289
        %v890 = vadd.f32 %v858, %v290
        %v891 = vadd.f32 %v859, %v291
        %v892 = vadd.f32 %v860, %v292
        %v893 = vadd.f32 %v861, %v293
        %v894 = vadd.f32 %v862, %v294
        %v895 = vadd.f32 %v863, %v295
        %v896 = vadd.f32 %v864, %v296
        %v897 = vpack.c.bf16 %v866, %v865
        %v898 = vpack.c.bf16 %v868, %v867
        %v899 = vpack.c.bf16 %v870, %v869
        %v900 = vpack.c.bf16 %v872, %v871
        %v901 = vpack.c.bf16 %v874, %v873
        %v902 = vpack.c.bf16 %v876, %v875
        %v903 = vpack.c.bf16 %v878, %v877
        %v904 = vpack.c.bf16 %v880, %v879
        %v905 = vpack.c.bf16 %v882, %v881
        %v906 = vpack.c.bf16 %v884, %v883
        %v907 = vpack.c.bf16 %v886, %v885
        %v908 = vpack.c.bf16 %v888, %v887
        %v909 = vpack.c.bf16 %v890, %v889
        %v910 = vpack.c.bf16 %v892, %v891
        %v911 = vpack.c.bf16 %v894, %v893
        %v912 = vpack.c.bf16 %v896, %v895
        %s913 = scalar_lea.vmem [#allocation5], 128
        %v914 = vld [vmem:[%s913] sm:$0xff]
        %v915 = vld [vmem:[%s913 + $0x8] sm:$0xff]
        %v916 = vld [vmem:[%s913 + $0x10] sm:$0xff]
        %v917 = vld [vmem:[%s913 + $0x18] sm:$0xff]
        %v918 = vld [vmem:[%s913 + $0x20] sm:$0xff]
        %v919 = vld [vmem:[%s913 + $0x28] sm:$0xff]
        %v920 = vld [vmem:[%s913 + $0x30] sm:$0xff]
        %v921 = vld [vmem:[%s913 + $0x38] sm:$0xff]
        %v922 = vld [vmem:[%s913 + $0x40] sm:$0xff]
        %v923 = vld [vmem:[%s913 + $0x48] sm:$0xff]
        %v924 = vld [vmem:[%s913 + $0x50] sm:$0xff]
        %v925 = vld [vmem:[%s913 + $0x58] sm:$0xff]
        %v926 = vld [vmem:[%s913 + $0x60] sm:$0xff]
        %v927 = vld [vmem:[%s913 + $0x68] sm:$0xff]
        %v928 = vld [vmem:[%s913 + $0x70] sm:$0xff]
        %v929 = vld [vmem:[%s913 + $0x78] sm:$0xff]
        %v946 = vunpack.c.l.b16 %v914
        %v947 = vunpack.c.h.b16 %v914
        %v948 = vunpack.c.l.b16 %v915
        %v949 = vunpack.c.h.b16 %v915
        %v950 = vunpack.c.l.b16 %v916
        %v951 = vunpack.c.h.b16 %v916
        %v952 = vunpack.c.l.b16 %v917
        %v953 = vunpack.c.h.b16 %v917
        %v954 = vunpack.c.l.b16 %v918
        %v955 = vunpack.c.h.b16 %v918
        %v956 = vunpack.c.l.b16 %v919
        %v957 = vunpack.c.h.b16 %v919
        %v958 = vunpack.c.l.b16 %v920
        %v959 = vunpack.c.h.b16 %v920
        %v960 = vunpack.c.l.b16 %v921
        %v961 = vunpack.c.h.b16 %v921
        %v962 = vunpack.c.l.b16 %v922
        %v963 = vunpack.c.h.b16 %v922
        %v964 = vunpack.c.l.b16 %v923
        %v965 = vunpack.c.h.b16 %v923
        %v966 = vunpack.c.l.b16 %v924
        %v967 = vunpack.c.h.b16 %v924
        %v968 = vunpack.c.l.b16 %v925
        %v969 = vunpack.c.h.b16 %v925
        %v970 = vunpack.c.l.b16 %v926
        %v971 = vunpack.c.h.b16 %v926
        %v972 = vunpack.c.l.b16 %v927
        %v973 = vunpack.c.h.b16 %v927
        %v974 = vunpack.c.l.b16 %v928
        %v975 = vunpack.c.h.b16 %v928
        %v976 = vunpack.c.l.b16 %v929
        %v977 = vunpack.c.h.b16 %v929
        %v978 = vpack.c.b16 %v948, %v946
        %v979 = vpack.c.b16 %v949, %v947
        %v980 = vpack.c.b16 %v952, %v950
        %v981 = vpack.c.b16 %v953, %v951
        %v982 = vpack.c.b16 %v956, %v954
        %v983 = vpack.c.b16 %v957, %v955
        %v984 = vpack.c.b16 %v960, %v958
        %v985 = vpack.c.b16 %v961, %v959
        %v986 = vpack.c.b16 %v964, %v962
        %v987 = vpack.c.b16 %v965, %v963
        %v988 = vpack.c.b16 %v968, %v966
        %v989 = vpack.c.b16 %v969, %v967
        %v990 = vpack.c.b16 %v972, %v970
        %v991 = vpack.c.b16 %v973, %v971
        %v992 = vpack.c.b16 %v976, %v974
        %v993 = vpack.c.b16 %v977, %v975
        %1010 = vmatprep.subr.bf16.mxu0 %v979
        %1011 = vmatpush1.bf16.msra.mxu0 %v978
        %1012 = vmatprep.subr.bf16.mxu0 %v981
        %1013 = vmatpush1.bf16.msra.mxu0 %v980
        %1014 = vmatprep.subr.bf16.mxu0 %v983
        %1015 = vmatpush1.bf16.msra.mxu0 %v982
        %1016 = vmatprep.subr.bf16.mxu0 %v985
        %1017 = vmatpush1.bf16.msra.mxu0 %v984
        %1018 = vmatprep.subr.bf16.mxu0 %v987
        %1019 = vmatpush1.bf16.msra.mxu0 %v986
        %1020 = vmatprep.subr.bf16.mxu0 %v989
        %1021 = vmatpush1.bf16.msra.mxu0 %v988
        %1022 = vmatprep.subr.bf16.mxu0 %v991
        %1023 = vmatpush1.bf16.msra.mxu0 %v990
        %1024 = vmatprep.subr.bf16.mxu0 %v993
        %1025 = vmatpush1.bf16.msra.mxu0 %v992
        %1026 = vmatprep.subr.bf16.mxu0 0
        %1027 = vmatpush1.bf16.msra.mxu0 0
        %1028 = vmatprep.subr.bf16.mxu0 0
        %1029 = vmatpush1.bf16.msra.mxu0 0
        %1030 = vmatprep.subr.bf16.mxu0 0
        %1031 = vmatpush1.bf16.msra.mxu0 0
        %1032 = vmatprep.subr.bf16.mxu0 0
        %1033 = vmatpush1.bf16.msra.mxu0 0
        %1034 = vmatprep.subr.bf16.mxu0 0
        %1035 = vmatpush1.bf16.msra.mxu0 0
        %1036 = vmatprep.subr.bf16.mxu0 0
        %1037 = vmatpush1.bf16.msra.mxu0 0
        %1038 = vmatprep.subr.bf16.mxu0 0
        %1039 = vmatpush1.bf16.msra.mxu0 0
        %1040 = vmatprep.subr.bf16.mxu0 0
        %1041 = vmatpush1.bf16.msra.mxu0 0
        %1042 = vmatprep.mubr.bf16.mxu0 0
        %1043 = vmatmul.mubr.bf16.gmra.mrb[0].mxu0 %v897
        %v1044 = vpop.f32.mrb[0].mxu0
        %v1045 = vadd.f32 0.0, %v1044
        %v1046 = vpop.f32.mrb[0].mxu0
        %v1047 = vadd.f32 0.0, %v1046
        %v1048 = vpop.f32.mrb[0].mxu0
        %v1049 = vadd.f32 0.0, %v1048
        %v1050 = vpop.f32.mrb[0].mxu0
        %v1051 = vadd.f32 0.0, %v1050
        %1052 = vmatprep.mubr.bf16.mxu0 0
        %1053 = vmatmul.mubr.bf16.gmra.mrb[0].mxu0 %v898
        %v1054 = vpop.f32.mrb[0].mxu0
        %v1055 = vadd.f32 0.0, %v1054
        %v1056 = vpop.f32.mrb[0].mxu0
        %v1057 = vadd.f32 0.0, %v1056
        %v1058 = vpop.f32.mrb[0].mxu0
        %v1059 = vadd.f32 0.0, %v1058
        %v1060 = vpop.f32.mrb[0].mxu0
        %v1061 = vadd.f32 0.0, %v1060
        %1062 = vmatprep.mubr.bf16.mxu0 0
        %1063 = vmatmul.mubr.bf16.gmra.mrb[0].mxu0 %v899
        %v1064 = vpop.f32.mrb[0].mxu0
        %v1065 = vadd.f32 0.0, %v1064
        %v1066 = vpop.f32.mrb[0].mxu0
        %v1067 = vadd.f32 0.0, %v1066
        %v1068 = vpop.f32.mrb[0].mxu0
        %v1069 = vadd.f32 0.0, %v1068
        %v1070 = vpop.f32.mrb[0].mxu0
        %v1071 = vadd.f32 0.0, %v1070
        %1072 = vmatprep.mubr.bf16.mxu0 0
        %1073 = vmatmul.mubr.bf16.gmra.mrb[0].mxu0 %v900
        %v1074 = vpop.f32.mrb[0].mxu0
        %v1075 = vadd.f32 0.0, %v1074
        %v1076 = vpop.f32.mrb[0].mxu0
        %v1077 = vadd.f32 0.0, %v1076
        %v1078 = vpop.f32.mrb[0].mxu0
        %v1079 = vadd.f32 0.0, %v1078
        %v1080 = vpop.f32.mrb[0].mxu0
        %v1081 = vadd.f32 0.0, %v1080
        %1082 = vmatprep.mubr.bf16.mxu0 0
        %1083 = vmatmul.mubr.bf16.gmra.mrb[0].mxu0 %v901
        %v1084 = vpop.f32.mrb[0].mxu0
        %v1085 = vadd.f32 0.0, %v1084
        %v1086 = vpop.f32.mrb[0].mxu0
        %v1087 = vadd.f32 0.0, %v1086
        %v1088 = vpop.f32.mrb[0].mxu0
        %v1089 = vadd.f32 0.0, %v1088
        %v1090 = vpop.f32.mrb[0].mxu0
        %v1091 = vadd.f32 0.0, %v1090
        %1092 = vmatprep.mubr.bf16.mxu0 0
        %1093 = vmatmul.mubr.bf16.gmra.mrb[0].mxu0 %v902
        %v1094 = vpop.f32.mrb[0].mxu0
        %v1095 = vadd.f32 0.0, %v1094
        %v1096 = vpop.f32.mrb[0].mxu0
        %v1097 = vadd.f32 0.0, %v1096
        %v1098 = vpop.f32.mrb[0].mxu0
        %v1099 = vadd.f32 0.0, %v1098
        %v1100 = vpop.f32.mrb[0].mxu0
        %v1101 = vadd.f32 0.0, %v1100
        %1102 = vmatprep.mubr.bf16.mxu0 0
        %1103 = vmatmul.mubr.bf16.gmra.mrb[0].mxu0 %v903
        %v1104 = vpop.f32.mrb[0].mxu0
        %v1105 = vadd.f32 0.0, %v1104
        %v1106 = vpop.f32.mrb[0].mxu0
        %v1107 = vadd.f32 0.0, %v1106
        %v1108 = vpop.f32.mrb[0].mxu0
        %v1109 = vadd.f32 0.0, %v1108
        %v1110 = vpop.f32.mrb[0].mxu0
        %v1111 = vadd.f32 0.0, %v1110
        %1112 = vmatprep.mubr.bf16.mxu0 0
        %1113 = vmatmul.mubr.bf16.gmra.mrb[0].mxu0 %v904
        %v1114 = vpop.f32.mrb[0].mxu0
        %v1115 = vadd.f32 0.0, %v1114
        %v1116 = vpop.f32.mrb[0].mxu0
        %v1117 = vadd.f32 0.0, %v1116
        %v1118 = vpop.f32.mrb[0].mxu0
        %v1119 = vadd.f32 0.0, %v1118
        %v1120 = vpop.f32.mrb[0].mxu0
        %v1121 = vadd.f32 0.0, %v1120
        %1122 = vmatprep.mubr.bf16.mxu0 0
        %1123 = vmatmul.mubr.bf16.gmra.mrb[0].mxu0 %v905
        %v1124 = vpop.f32.mrb[0].mxu0
        %v1125 = vadd.f32 0.0, %v1124
        %v1126 = vpop.f32.mrb[0].mxu0
        %v1127 = vadd.f32 0.0, %v1126
        %v1128 = vpop.f32.mrb[0].mxu0
        %v1129 = vadd.f32 0.0, %v1128
        %v1130 = vpop.f32.mrb[0].mxu0
        %v1131 = vadd.f32 0.0, %v1130
        %1132 = vmatprep.mubr.bf16.mxu0 0
        %1133 = vmatmul.mubr.bf16.gmra.mrb[0].mxu0 %v906
        %v1134 = vpop.f32.mrb[0].mxu0
        %v1135 = vadd.f32 0.0, %v1134
        %v1136 = vpop.f32.mrb[0].mxu0
        %v1137 = vadd.f32 0.0, %v1136
        %v1138 = vpop.f32.mrb[0].mxu0
        %v1139 = vadd.f32 0.0, %v1138
        %v1140 = vpop.f32.mrb[0].mxu0
        %v1141 = vadd.f32 0.0, %v1140
        %1142 = vmatprep.mubr.bf16.mxu0 0
        %1143 = vmatmul.mubr.bf16.gmra.mrb[0].mxu0 %v907
        %v1144 = vpop.f32.mrb[0].mxu0
        %v1145 = vadd.f32 0.0, %v1144
        %v1146 = vpop.f32.mrb[0].mxu0
        %v1147 = vadd.f32 0.0, %v1146
        %v1148 = vpop.f32.mrb[0].mxu0
        %v1149 = vadd.f32 0.0, %v1148
        %v1150 = vpop.f32.mrb[0].mxu0
        %v1151 = vadd.f32 0.0, %v1150
        %1152 = vmatprep.mubr.bf16.mxu0 0
        %1153 = vmatmul.mubr.bf16.gmra.mrb[0].mxu0 %v908
        %v1154 = vpop.f32.mrb[0].mxu0
        %v1155 = vadd.f32 0.0, %v1154
        %v1156 = vpop.f32.mrb[0].mxu0
        %v1157 = vadd.f32 0.0, %v1156
        %v1158 = vpop.f32.mrb[0].mxu0
        %v1159 = vadd.f32 0.0, %v1158
        %v1160 = vpop.f32.mrb[0].mxu0
        %v1161 = vadd.f32 0.0, %v1160
        %1162 = vmatprep.mubr.bf16.mxu0 0
        %1163 = vmatmul.mubr.bf16.gmra.mrb[0].mxu0 %v909
        %v1164 = vpop.f32.mrb[0].mxu0
        %v1165 = vadd.f32 0.0, %v1164
        %v1166 = vpop.f32.mrb[0].mxu0
        %v1167 = vadd.f32 0.0, %v1166
        %v1168 = vpop.f32.mrb[0].mxu0
        %v1169 = vadd.f32 0.0, %v1168
        %v1170 = vpop.f32.mrb[0].mxu0
        %v1171 = vadd.f32 0.0, %v1170
        %1172 = vmatprep.mubr.bf16.mxu0 0
        %1173 = vmatmul.mubr.bf16.gmra.mrb[0].mxu0 %v910
        %v1174 = vpop.f32.mrb[0].mxu0
        %v1175 = vadd.f32 0.0, %v1174
        %v1176 = vpop.f32.mrb[0].mxu0
        %v1177 = vadd.f32 0.0, %v1176
        %v1178 = vpop.f32.mrb[0].mxu0
        %v1179 = vadd.f32 0.0, %v1178
        %v1180 = vpop.f32.mrb[0].mxu0
        %v1181 = vadd.f32 0.0, %v1180
        %1182 = vmatprep.mubr.bf16.mxu0 0
        %1183 = vmatmul.mubr.bf16.gmra.mrb[0].mxu0 %v911
        %v1184 = vpop.f32.mrb[0].mxu0
        %v1185 = vadd.f32 0.0, %v1184
        %v1186 = vpop.f32.mrb[0].mxu0
        %v1187 = vadd.f32 0.0, %v1186
        %v1188 = vpop.f32.mrb[0].mxu0
        %v1189 = vadd.f32 0.0, %v1188
        %v1190 = vpop.f32.mrb[0].mxu0
        %v1191 = vadd.f32 0.0, %v1190
        %1192 = vmatprep.mubr.bf16.mxu0 0
        %1193 = vmatmul.mubr.bf16.gmra.mrb[0].mxu0 %v912
        %v1194 = vpop.f32.mrb[0].mxu0
        %v1195 = vadd.f32 0.0, %v1194
        %v1196 = vpop.f32.mrb[0].mxu0
        %v1197 = vadd.f32 0.0, %v1196
        %v1198 = vpop.f32.mrb[0].mxu0
        %v1199 = vadd.f32 0.0, %v1198
        %v1200 = vpop.f32.mrb[0].mxu0
        %v1201 = vadd.f32 0.0, %v1200
        %1202 = vdwg.mxu0
        %v1203 = vsub.f32 0.0, %v1047
        %v1204 = vsub.f32 0.0, %v1051
        %v1205 = vsub.f32 0.0, %v1057
        %v1206 = vsub.f32 0.0, %v1061
        %v1207 = vsub.f32 0.0, %v1067
        %v1208 = vsub.f32 0.0, %v1071
        %v1209 = vsub.f32 0.0, %v1077
        %v1210 = vsub.f32 0.0, %v1081
        %v1211 = vsub.f32 0.0, %v1087
        %v1212 = vsub.f32 0.0, %v1091
        %v1213 = vsub.f32 0.0, %v1097
        %v1214 = vsub.f32 0.0, %v1101
        %v1215 = vsub.f32 0.0, %v1107
        %v1216 = vsub.f32 0.0, %v1111
        %v1217 = vsub.f32 0.0, %v1117
        %v1218 = vsub.f32 0.0, %v1121
        %v1219 = vsub.f32 0.0, %v1127
        %v1220 = vsub.f32 0.0, %v1131
        %v1221 = vsub.f32 0.0, %v1137
        %v1222 = vsub.f32 0.0, %v1141
        %v1223 = vsub.f32 0.0, %v1147
        %v1224 = vsub.f32 0.0, %v1151
        %v1225 = vsub.f32 0.0, %v1157
        %v1226 = vsub.f32 0.0, %v1161
        %v1227 = vsub.f32 0.0, %v1167
        %v1228 = vsub.f32 0.0, %v1171
        %v1229 = vsub.f32 0.0, %v1177
        %v1230 = vsub.f32 0.0, %v1181
        %v1231 = vsub.f32 0.0, %v1187
        %v1232 = vsub.f32 0.0, %v1191
        %v1233 = vsub.f32 0.0, %v1197
        %v1234 = vsub.f32 0.0, %v1201
        %v1235 = vmul.f32 %v1203, 1.442695
        %v1236 = vpow.pop %v1235
        %v1237 = vmul.f32 %v1204, 1.442695
        %v1238 = vpow.pop %v1237
        %v1239 = vmul.f32 %v1205, 1.442695
        %v1240 = vpow.pop %v1239
        %v1241 = vmul.f32 %v1206, 1.442695
        %v1242 = vpow.pop %v1241
        %v1243 = vmul.f32 %v1207, 1.442695
        %v1244 = vpow.pop %v1243
        %v1245 = vmul.f32 %v1208, 1.442695
        %v1246 = vpow.pop %v1245
        %v1247 = vmul.f32 %v1209, 1.442695
        %v1248 = vpow.pop %v1247
        %v1249 = vmul.f32 %v1210, 1.442695
        %v1250 = vpow.pop %v1249
        %v1251 = vmul.f32 %v1211, 1.442695
        %v1252 = vpow.pop %v1251
        %v1253 = vmul.f32 %v1212, 1.442695
        %v1254 = vpow.pop %v1253
        %v1255 = vmul.f32 %v1213, 1.442695
        %v1256 = vpow.pop %v1255
        %v1257 = vmul.f32 %v1214, 1.442695
        %v1258 = vpow.pop %v1257
        %v1259 = vmul.f32 %v1215, 1.442695
        %v1260 = vpow.pop %v1259
        %v1261 = vmul.f32 %v1216, 1.442695
        %v1262 = vpow.pop %v1261
        %v1263 = vmul.f32 %v1217, 1.442695
        %v1264 = vpow.pop %v1263
        %v1265 = vmul.f32 %v1218, 1.442695
        %v1266 = vpow.pop %v1265
        %v1267 = vmul.f32 %v1219, 1.442695
        %v1268 = vpow.pop %v1267
        %v1269 = vmul.f32 %v1220, 1.442695
        %v1270 = vpow.pop %v1269
        %v1271 = vmul.f32 %v1221, 1.442695
        %v1272 = vpow.pop %v1271
        %v1273 = vmul.f32 %v1222, 1.442695
        %v1274 = vpow.pop %v1273
        %v1275 = vmul.f32 %v1223, 1.442695
        %v1276 = vpow.pop %v1275
        %v1277 = vmul.f32 %v1224, 1.442695
        %v1278 = vpow.pop %v1277
        %v1279 = vmul.f32 %v1225, 1.442695
        %v1280 = vpow.pop %v1279
        %v1281 = vmul.f32 %v1226, 1.442695
        %v1282 = vpow.pop %v1281
        %v1283 = vmul.f32 %v1227, 1.442695
        %v1284 = vpow.pop %v1283
        %v1285 = vmul.f32 %v1228, 1.442695
        %v1286 = vpow.pop %v1285
        %v1287 = vmul.f32 %v1229, 1.442695
        %v1288 = vpow.pop %v1287
        %v1289 = vmul.f32 %v1230, 1.442695
        %v1290 = vpow.pop %v1289
        %v1291 = vmul.f32 %v1231, 1.442695
        %v1292 = vpow.pop %v1291
        %v1293 = vmul.f32 %v1232, 1.442695
        %v1294 = vpow.pop %v1293
        %v1295 = vmul.f32 %v1233, 1.442695
        %v1296 = vpow.pop %v1295
        %v1297 = vmul.f32 %v1234, 1.442695
        %v1298 = vpow.pop %v1297
        %v1299 = vadd.f32 %v1236, 1.0
        %v1300 = vadd.f32 %v1238, 1.0
        %v1301 = vadd.f32 %v1240, 1.0
        %v1302 = vadd.f32 %v1242, 1.0
        %v1303 = vadd.f32 %v1244, 1.0
        %v1304 = vadd.f32 %v1246, 1.0
        %v1305 = vadd.f32 %v1248, 1.0
        %v1306 = vadd.f32 %v1250, 1.0
        %v1307 = vadd.f32 %v1252, 1.0
        %v1308 = vadd.f32 %v1254, 1.0
        %v1309 = vadd.f32 %v1256, 1.0
        %v1310 = vadd.f32 %v1258, 1.0
        %v1311 = vadd.f32 %v1260, 1.0
        %v1312 = vadd.f32 %v1262, 1.0
        %v1313 = vadd.f32 %v1264, 1.0
        %v1314 = vadd.f32 %v1266, 1.0
        %v1315 = vadd.f32 %v1268, 1.0
        %v1316 = vadd.f32 %v1270, 1.0
        %v1317 = vadd.f32 %v1272, 1.0
        %v1318 = vadd.f32 %v1274, 1.0
        %v1319 = vadd.f32 %v1276, 1.0
        %v1320 = vadd.f32 %v1278, 1.0
        %v1321 = vadd.f32 %v1280, 1.0
        %v1322 = vadd.f32 %v1282, 1.0
        %v1323 = vadd.f32 %v1284, 1.0
        %v1324 = vadd.f32 %v1286, 1.0
        %v1325 = vadd.f32 %v1288, 1.0
        %v1326 = vadd.f32 %v1290, 1.0
        %v1327 = vadd.f32 %v1292, 1.0
        %v1328 = vadd.f32 %v1294, 1.0
        %v1329 = vadd.f32 %v1296, 1.0
        %v1330 = vadd.f32 %v1298, 1.0
        %v1331 = vrcp.pop %v1299
        %v1332 = vrcp.pop %v1300
        %v1333 = vrcp.pop %v1301
        %v1334 = vrcp.pop %v1302
        %v1335 = vrcp.pop %v1303
        %v1336 = vrcp.pop %v1304
        %v1337 = vrcp.pop %v1305
        %v1338 = vrcp.pop %v1306
        %v1339 = vrcp.pop %v1307
        %v1340 = vrcp.pop %v1308
        %v1341 = vrcp.pop %v1309
        %v1342 = vrcp.pop %v1310
        %v1343 = vrcp.pop %v1311
        %v1344 = vrcp.pop %v1312
        %v1345 = vrcp.pop %v1313
        %v1346 = vrcp.pop %v1314
        %v1347 = vrcp.pop %v1315
        %v1348 = vrcp.pop %v1316
        %v1349 = vrcp.pop %v1317
        %v1350 = vrcp.pop %v1318
        %v1351 = vrcp.pop %v1319
        %v1352 = vrcp.pop %v1320
        %v1353 = vrcp.pop %v1321
        %v1354 = vrcp.pop %v1322
        %v1355 = vrcp.pop %v1323
        %v1356 = vrcp.pop %v1324
        %v1357 = vrcp.pop %v1325
        %v1358 = vrcp.pop %v1326
        %v1359 = vrcp.pop %v1327
        %v1360 = vrcp.pop %v1328
        %v1361 = vrcp.pop %v1329
        %v1362 = vrcp.pop %v1330
        %s1363 = scalar_lea.vmem %s2, 1
        %v1364 = vld [vmem:[%s1363] sm:$0x1]
        %v1366 = vlaneseq
        %v1367 = vshrl.u32 %v1366, 7
        %v1368 = vsub.s32 0, %v1367
        %v1369 = vrot.slane %v1364, %v1368
        %v1371 = vadd.f32 %v1045, %v1369
        %v1372 = vadd.f32 %v1049, %v1369
        %v1373 = vadd.f32 %v1055, %v1369
        %v1374 = vadd.f32 %v1059, %v1369
        %v1375 = vadd.f32 %v1065, %v1369
        %v1376 = vadd.f32 %v1069, %v1369
        %v1377 = vadd.f32 %v1075, %v1369
        %v1378 = vadd.f32 %v1079, %v1369
        %v1379 = vadd.f32 %v1085, %v1369
        %v1380 = vadd.f32 %v1089, %v1369
        %v1381 = vadd.f32 %v1095, %v1369
        %v1382 = vadd.f32 %v1099, %v1369
        %v1383 = vadd.f32 %v1105, %v1369
        %v1384 = vadd.f32 %v1109, %v1369
        %v1385 = vadd.f32 %v1115, %v1369
        %v1386 = vadd.f32 %v1119, %v1369
        %v1387 = vadd.f32 %v1125, %v1369
        %v1388 = vadd.f32 %v1129, %v1369
        %v1389 = vadd.f32 %v1135, %v1369
        %v1390 = vadd.f32 %v1139, %v1369
        %v1391 = vadd.f32 %v1145, %v1369
        %v1392 = vadd.f32 %v1149, %v1369
        %v1393 = vadd.f32 %v1155, %v1369
        %v1394 = vadd.f32 %v1159, %v1369
        %v1395 = vadd.f32 %v1165, %v1369
        %v1396 = vadd.f32 %v1169, %v1369
        %v1397 = vadd.f32 %v1175, %v1369
        %v1398 = vadd.f32 %v1179, %v1369
        %v1399 = vadd.f32 %v1185, %v1369
        %v1400 = vadd.f32 %v1189, %v1369
        %v1401 = vadd.f32 %v1195, %v1369
        %v1402 = vadd.f32 %v1199, %v1369
        %v1403 = vmul.f32 %v265, %v1371
        %v1404 = vmul.f32 %v266, %v1372
        %v1405 = vmul.f32 %v267, %v1373
        %v1406 = vmul.f32 %v268, %v1374
        %v1407 = vmul.f32 %v269, %v1375
        %v1408 = vmul.f32 %v270, %v1376
        %v1409 = vmul.f32 %v271, %v1377
        %v1410 = vmul.f32 %v272, %v1378
        %v1411 = vmul.f32 %v273, %v1379
        %v1412 = vmul.f32 %v274, %v1380
        %v1413 = vmul.f32 %v275, %v1381
        %v1414 = vmul.f32 %v276, %v1382
        %v1415 = vmul.f32 %v277, %v1383
        %v1416 = vmul.f32 %v278, %v1384
        %v1417 = vmul.f32 %v279, %v1385
        %v1418 = vmul.f32 %v280, %v1386
        %v1419 = vmul.f32 %v281, %v1387
        %v1420 = vmul.f32 %v282, %v1388
        %v1421 = vmul.f32 %v283, %v1389
        %v1422 = vmul.f32 %v284, %v1390
        %v1423 = vmul.f32 %v285, %v1391
        %v1424 = vmul.f32 %v286, %v1392
        %v1425 = vmul.f32 %v287, %v1393
        %v1426 = vmul.f32 %v288, %v1394
        %v1427 = vmul.f32 %v289, %v1395
        %v1428 = vmul.f32 %v290, %v1396
        %v1429 = vmul.f32 %v291, %v1397
        %v1430 = vmul.f32 %v292, %v1398
        %v1431 = vmul.f32 %v293, %v1399
        %v1432 = vmul.f32 %v294, %v1400
        %v1433 = vmul.f32 %v295, %v1401
        %v1434 = vmul.f32 %v296, %v1402
        %v1435 = vmul.f32 %v1403, %v1331
        %v1436 = vmul.f32 %v1404, %v1332
        %v1437 = vmul.f32 %v1405, %v1333
        %v1438 = vmul.f32 %v1406, %v1334
        %v1439 = vmul.f32 %v1407, %v1335
        %v1440 = vmul.f32 %v1408, %v1336
        %v1441 = vmul.f32 %v1409, %v1337
        %v1442 = vmul.f32 %v1410, %v1338
        %v1443 = vmul.f32 %v1411, %v1339
        %v1444 = vmul.f32 %v1412, %v1340
        %v1445 = vmul.f32 %v1413, %v1341
        %v1446 = vmul.f32 %v1414, %v1342
        %v1447 = vmul.f32 %v1415, %v1343
        %v1448 = vmul.f32 %v1416, %v1344
        %v1449 = vmul.f32 %v1417, %v1345
        %v1450 = vmul.f32 %v1418, %v1346
        %v1451 = vmul.f32 %v1419, %v1347
        %v1452 = vmul.f32 %v1420, %v1348
        %v1453 = vmul.f32 %v1421, %v1349
        %v1454 = vmul.f32 %v1422, %v1350
        %v1455 = vmul.f32 %v1423, %v1351
        %v1456 = vmul.f32 %v1424, %v1352
        %v1457 = vmul.f32 %v1425, %v1353
        %v1458 = vmul.f32 %v1426, %v1354
        %v1459 = vmul.f32 %v1427, %v1355
        %v1460 = vmul.f32 %v1428, %v1356
        %v1461 = vmul.f32 %v1429, %v1357
        %v1462 = vmul.f32 %v1430, %v1358
        %v1463 = vmul.f32 %v1431, %v1359
        %v1464 = vmul.f32 %v1432, %v1360
        %v1465 = vmul.f32 %v1433, %v1361
        %v1466 = vmul.f32 %v1434, %v1362
        %v1467 = vadd.f32 %v1435, %v865
        %v1468 = vadd.f32 %v1436, %v866
        %v1469 = vadd.f32 %v1437, %v867
        %v1470 = vadd.f32 %v1438, %v868
        %v1471 = vadd.f32 %v1439, %v869
        %v1472 = vadd.f32 %v1440, %v870
        %v1473 = vadd.f32 %v1441, %v871
        %v1474 = vadd.f32 %v1442, %v872
        %v1475 = vadd.f32 %v1443, %v873
        %v1476 = vadd.f32 %v1444, %v874
        %v1477 = vadd.f32 %v1445, %v875
        %v1478 = vadd.f32 %v1446, %v876
        %v1479 = vadd.f32 %v1447, %v877
        %v1480 = vadd.f32 %v1448, %v878
        %v1481 = vadd.f32 %v1449, %v879
        %v1482 = vadd.f32 %v1450, %v880
        %v1483 = vadd.f32 %v1451, %v881
        %v1484 = vadd.f32 %v1452, %v882
        %v1485 = vadd.f32 %v1453, %v883
        %v1486 = vadd.f32 %v1454, %v884
        %v1487 = vadd.f32 %v1455, %v885
        %v1488 = vadd.f32 %v1456, %v886
        %v1489 = vadd.f32 %v1457, %v887
        %v1490 = vadd.f32 %v1458, %v888
        %v1491 = vadd.f32 %v1459, %v889
        %v1492 = vadd.f32 %v1460, %v890
        %v1493 = vadd.f32 %v1461, %v891
        %v1494 = vadd.f32 %v1462, %v892
        %v1495 = vadd.f32 %v1463, %v893
        %v1496 = vadd.f32 %v1464, %v894
        %v1497 = vadd.f32 %v1465, %v895
        %v1498 = vadd.f32 %v1466, %v896
        %v1499 = vpack.c.bf16 %v1468, %v1467
        %v1500 = vpack.c.bf16 %v1470, %v1469
        %v1501 = vpack.c.bf16 %v1472, %v1471
        %v1502 = vpack.c.bf16 %v1474, %v1473
        %v1503 = vpack.c.bf16 %v1476, %v1475
        %v1504 = vpack.c.bf16 %v1478, %v1477
        %v1505 = vpack.c.bf16 %v1480, %v1479
        %v1506 = vpack.c.bf16 %v1482, %v1481
        %v1507 = vpack.c.bf16 %v1484, %v1483
        %v1508 = vpack.c.bf16 %v1486, %v1485
        %v1509 = vpack.c.bf16 %v1488, %v1487
        %v1510 = vpack.c.bf16 %v1490, %v1489
        %v1511 = vpack.c.bf16 %v1492, %v1491
        %v1512 = vpack.c.bf16 %v1494, %v1493
        %v1513 = vpack.c.bf16 %v1496, %v1495
        %v1514 = vpack.c.bf16 %v1498, %v1497
        %s1515 = scalar_lea.vmem [#allocation5], 256
        %v1516 = vld [vmem:[%s1515] sm:$0xff]
        %v1517 = vld [vmem:[%s1515 + $0x8] sm:$0xff]
        %v1518 = vld [vmem:[%s1515 + $0x10] sm:$0xff]
        %v1519 = vld [vmem:[%s1515 + $0x18] sm:$0xff]
        %v1520 = vld [vmem:[%s1515 + $0x20] sm:$0xff]
        %v1521 = vld [vmem:[%s1515 + $0x28] sm:$0xff]
        %v1522 = vld [vmem:[%s1515 + $0x30] sm:$0xff]
        %v1523 = vld [vmem:[%s1515 + $0x38] sm:$0xff]
        %v1524 = vld [vmem:[%s1515 + $0x40] sm:$0xff]
        %v1525 = vld [vmem:[%s1515 + $0x48] sm:$0xff]
        %v1526 = vld [vmem:[%s1515 + $0x50] sm:$0xff]
        %v1527 = vld [vmem:[%s1515 + $0x58] sm:$0xff]
        %v1528 = vld [vmem:[%s1515 + $0x60] sm:$0xff]
        %v1529 = vld [vmem:[%s1515 + $0x68] sm:$0xff]
        %v1530 = vld [vmem:[%s1515 + $0x70] sm:$0xff]
        %v1531 = vld [vmem:[%s1515 + $0x78] sm:$0xff]
        %v1548 = vunpack.c.l.b16 %v1516
        %v1549 = vunpack.c.h.b16 %v1516
        %v1550 = vunpack.c.l.b16 %v1517
        %v1551 = vunpack.c.h.b16 %v1517
        %v1552 = vunpack.c.l.b16 %v1518
        %v1553 = vunpack.c.h.b16 %v1518
        %v1554 = vunpack.c.l.b16 %v1519
        %v1555 = vunpack.c.h.b16 %v1519
        %v1556 = vunpack.c.l.b16 %v1520
        %v1557 = vunpack.c.h.b16 %v1520
        %v1558 = vunpack.c.l.b16 %v1521
        %v1559 = vunpack.c.h.b16 %v1521
        %v1560 = vunpack.c.l.b16 %v1522
        %v1561 = vunpack.c.h.b16 %v1522
        %v1562 = vunpack.c.l.b16 %v1523
        %v1563 = vunpack.c.h.b16 %v1523
        %v1564 = vunpack.c.l.b16 %v1524
        %v1565 = vunpack.c.h.b16 %v1524
        %v1566 = vunpack.c.l.b16 %v1525
        %v1567 = vunpack.c.h.b16 %v1525
        %v1568 = vunpack.c.l.b16 %v1526
        %v1569 = vunpack.c.h.b16 %v1526
        %v1570 = vunpack.c.l.b16 %v1527
        %v1571 = vunpack.c.h.b16 %v1527
        %v1572 = vunpack.c.l.b16 %v1528
        %v1573 = vunpack.c.h.b16 %v1528
        %v1574 = vunpack.c.l.b16 %v1529
        %v1575 = vunpack.c.h.b16 %v1529
        %v1576 = vunpack.c.l.b16 %v1530
        %v1577 = vunpack.c.h.b16 %v1530
        %v1578 = vunpack.c.l.b16 %v1531
        %v1579 = vunpack.c.h.b16 %v1531
        %v1580 = vpack.c.b16 %v1550, %v1548
        %v1581 = vpack.c.b16 %v1551, %v1549
        %v1582 = vpack.c.b16 %v1554, %v1552
        %v1583 = vpack.c.b16 %v1555, %v1553
        %v1584 = vpack.c.b16 %v1558, %v1556
        %v1585 = vpack.c.b16 %v1559, %v1557
        %v1586 = vpack.c.b16 %v1562, %v1560
        %v1587 = vpack.c.b16 %v1563, %v1561
        %v1588 = vpack.c.b16 %v1566, %v1564
        %v1589 = vpack.c.b16 %v1567, %v1565
        %v1590 = vpack.c.b16 %v1570, %v1568
        %v1591 = vpack.c.b16 %v1571, %v1569
        %v1592 = vpack.c.b16 %v1574, %v1572
        %v1593 = vpack.c.b16 %v1575, %v1573
        %v1594 = vpack.c.b16 %v1578, %v1576
        %v1595 = vpack.c.b16 %v1579, %v1577
        %1612 = vmatprep.subr.bf16.mxu0 %v1581
        %1613 = vmatpush1.bf16.msra.mxu0 %v1580
        %1614 = vmatprep.subr.bf16.mxu0 %v1583
        %1615 = vmatpush1.bf16.msra.mxu0 %v1582
        %1616 = vmatprep.subr.bf16.mxu0 %v1585
        %1617 = vmatpush1.bf16.msra.mxu0 %v1584
        %1618 = vmatprep.subr.bf16.mxu0 %v1587
        %1619 = vmatpush1.bf16.msra.mxu0 %v1586
        %1620 = vmatprep.subr.bf16.mxu0 %v1589
        %1621 = vmatpush1.bf16.msra.mxu0 %v1588
        %1622 = vmatprep.subr.bf16.mxu0 %v1591
        %1623 = vmatpush1.bf16.msra.mxu0 %v1590
        %1624 = vmatprep.subr.bf16.mxu0 %v1593
        %1625 = vmatpush1.bf16.msra.mxu0 %v1592
        %1626 = vmatprep.subr.bf16.mxu0 %v1595
        %1627 = vmatpush1.bf16.msra.mxu0 %v1594
        %1628 = vmatprep.subr.bf16.mxu0 0
        %1629 = vmatpush1.bf16.msra.mxu0 0
        %1630 = vmatprep.subr.bf16.mxu0 0
        %1631 = vmatpush1.bf16.msra.mxu0 0
        %1632 = vmatprep.subr.bf16.mxu0 0
        %1633 = vmatpush1.bf16.msra.mxu0 0
        %1634 = vmatprep.subr.bf16.mxu0 0
        %1635 = vmatpush1.bf16.msra.mxu0 0
        %1636 = vmatprep.subr.bf16.mxu0 0
        %1637 = vmatpush1.bf16.msra.mxu0 0
        %1638 = vmatprep.subr.bf16.mxu0 0
        %1639 = vmatpush1.bf16.msra.mxu0 0
        %1640 = vmatprep.subr.bf16.mxu0 0
        %1641 = vmatpush1.bf16.msra.mxu0 0
        %1642 = vmatprep.subr.bf16.mxu0 0
        %1643 = vmatpush1.bf16.msra.mxu0 0
        %1644 = vmatprep.mubr.bf16.mxu0 0
        %1645 = vmatmul.mubr.bf16.gmra.mrb[0].mxu0 %v1499
        %v1646 = vpop.f32.mrb[0].mxu0
        %v1647 = vadd.f32 0.0, %v1646
        %v1648 = vpop.f32.mrb[0].mxu0
        %v1649 = vadd.f32 0.0, %v1648
        %v1650 = vpop.f32.mrb[0].mxu0
        %v1651 = vadd.f32 0.0, %v1650
        %v1652 = vpop.f32.mrb[0].mxu0
        %v1653 = vadd.f32 0.0, %v1652
        %1654 = vmatprep.mubr.bf16.mxu0 0
        %1655 = vmatmul.mubr.bf16.gmra.mrb[0].mxu0 %v1500
        %v1656 = vpop.f32.mrb[0].mxu0
        %v1657 = vadd.f32 0.0, %v1656
        %v1658 = vpop.f32.mrb[0].mxu0
        %v1659 = vadd.f32 0.0, %v1658
        %v1660 = vpop.f32.mrb[0].mxu0
        %v1661 = vadd.f32 0.0, %v1660
        %v1662 = vpop.f32.mrb[0].mxu0
        %v1663 = vadd.f32 0.0, %v1662
        %1664 = vmatprep.mubr.bf16.mxu0 0
        %1665 = vmatmul.mubr.bf16.gmra.mrb[0].mxu0 %v1501
        %v1666 = vpop.f32.mrb[0].mxu0
        %v1667 = vadd.f32 0.0, %v1666
        %v1668 = vpop.f32.mrb[0].mxu0
        %v1669 = vadd.f32 0.0, %v1668
        %v1670 = vpop.f32.mrb[0].mxu0
        %v1671 = vadd.f32 0.0, %v1670
        %v1672 = vpop.f32.mrb[0].mxu0
        %v1673 = vadd.f32 0.0, %v1672
        %1674 = vmatprep.mubr.bf16.mxu0 0
        %1675 = vmatmul.mubr.bf16.gmra.mrb[0].mxu0 %v1502
        %v1676 = vpop.f32.mrb[0].mxu0
        %v1677 = vadd.f32 0.0, %v1676
        %v1678 = vpop.f32.mrb[0].mxu0
        %v1679 = vadd.f32 0.0, %v1678
        %v1680 = vpop.f32.mrb[0].mxu0
        %v1681 = vadd.f32 0.0, %v1680
        %v1682 = vpop.f32.mrb[0].mxu0
        %v1683 = vadd.f32 0.0, %v1682
        %1684 = vmatprep.mubr.bf16.mxu0 0
        %1685 = vmatmul.mubr.bf16.gmra.mrb[0].mxu0 %v1503
        %v1686 = vpop.f32.mrb[0].mxu0
        %v1687 = vadd.f32 0.0, %v1686
        %v1688 = vpop.f32.mrb[0].mxu0
        %v1689 = vadd.f32 0.0, %v1688
        %v1690 = vpop.f32.mrb[0].mxu0
        %v1691 = vadd.f32 0.0, %v1690
        %v1692 = vpop.f32.mrb[0].mxu0
        %v1693 = vadd.f32 0.0, %v1692
        %1694 = vmatprep.mubr.bf16.mxu0 0
        %1695 = vmatmul.mubr.bf16.gmra.mrb[0].mxu0 %v1504
        %v1696 = vpop.f32.mrb[0].mxu0
        %v1697 = vadd.f32 0.0, %v1696
        %v1698 = vpop.f32.mrb[0].mxu0
        %v1699 = vadd.f32 0.0, %v1698
        %v1700 = vpop.f32.mrb[0].mxu0
        %v1701 = vadd.f32 0.0, %v1700
        %v1702 = vpop.f32.mrb[0].mxu0
        %v1703 = vadd.f32 0.0, %v1702
        %1704 = vmatprep.mubr.bf16.mxu0 0
        %1705 = vmatmul.mubr.bf16.gmra.mrb[0].mxu0 %v1505
        %v1706 = vpop.f32.mrb[0].mxu0
        %v1707 = vadd.f32 0.0, %v1706
        %v1708 = vpop.f32.mrb[0].mxu0
        %v1709 = vadd.f32 0.0, %v1708
        %v1710 = vpop.f32.mrb[0].mxu0
        %v1711 = vadd.f32 0.0, %v1710
        %v1712 = vpop.f32.mrb[0].mxu0
        %v1713 = vadd.f32 0.0, %v1712
        %1714 = vmatprep.mubr.bf16.mxu0 0
        %1715 = vmatmul.mubr.bf16.gmra.mrb[0].mxu0 %v1506
        %v1716 = vpop.f32.mrb[0].mxu0
        %v1717 = vadd.f32 0.0, %v1716
        %v1718 = vpop.f32.mrb[0].mxu0
        %v1719 = vadd.f32 0.0, %v1718
        %v1720 = vpop.f32.mrb[0].mxu0
        %v1721 = vadd.f32 0.0, %v1720
        %v1722 = vpop.f32.mrb[0].mxu0
        %v1723 = vadd.f32 0.0, %v1722
        %1724 = vmatprep.mubr.bf16.mxu0 0
        %1725 = vmatmul.mubr.bf16.gmra.mrb[0].mxu0 %v1507
        %v1726 = vpop.f32.mrb[0].mxu0
        %v1727 = vadd.f32 0.0, %v1726
        %v1728 = vpop.f32.mrb[0].mxu0
        %v1729 = vadd.f32 0.0, %v1728
        %v1730 = vpop.f32.mrb[0].mxu0
        %v1731 = vadd.f32 0.0, %v1730
        %v1732 = vpop.f32.mrb[0].mxu0
        %v1733 = vadd.f32 0.0, %v1732
        %1734 = vmatprep.mubr.bf16.mxu0 0
        %1735 = vmatmul.mubr.bf16.gmra.mrb[0].mxu0 %v1508
        %v1736 = vpop.f32.mrb[0].mxu0
        %v1737 = vadd.f32 0.0, %v1736
        %v1738 = vpop.f32.mrb[0].mxu0
        %v1739 = vadd.f32 0.0, %v1738
        %v1740 = vpop.f32.mrb[0].mxu0
        %v1741 = vadd.f32 0.0, %v1740
        %v1742 = vpop.f32.mrb[0].mxu0
        %v1743 = vadd.f32 0.0, %v1742
        %1744 = vmatprep.mubr.bf16.mxu0 0
        %1745 = vmatmul.mubr.bf16.gmra.mrb[0].mxu0 %v1509
        %v1746 = vpop.f32.mrb[0].mxu0
        %v1747 = vadd.f32 0.0, %v1746
        %v1748 = vpop.f32.mrb[0].mxu0
        %v1749 = vadd.f32 0.0, %v1748
        %v1750 = vpop.f32.mrb[0].mxu0
        %v1751 = vadd.f32 0.0, %v1750
        %v1752 = vpop.f32.mrb[0].mxu0
        %v1753 = vadd.f32 0.0, %v1752
        %1754 = vmatprep.mubr.bf16.mxu0 0
        %1755 = vmatmul.mubr.bf16.gmra.mrb[0].mxu0 %v1510
        %v1756 = vpop.f32.mrb[0].mxu0
        %v1757 = vadd.f32 0.0, %v1756
        %v1758 = vpop.f32.mrb[0].mxu0
        %v1759 = vadd.f32 0.0, %v1758
        %v1760 = vpop.f32.mrb[0].mxu0
        %v1761 = vadd.f32 0.0, %v1760
        %v1762 = vpop.f32.mrb[0].mxu0
        %v1763 = vadd.f32 0.0, %v1762
        %1764 = vmatprep.mubr.bf16.mxu0 0
        %1765 = vmatmul.mubr.bf16.gmra.mrb[0].mxu0 %v1511
        %v1766 = vpop.f32.mrb[0].mxu0
        %v1767 = vadd.f32 0.0, %v1766
        %v1768 = vpop.f32.mrb[0].mxu0
        %v1769 = vadd.f32 0.0, %v1768
        %v1770 = vpop.f32.mrb[0].mxu0
        %v1771 = vadd.f32 0.0, %v1770
        %v1772 = vpop.f32.mrb[0].mxu0
        %v1773 = vadd.f32 0.0, %v1772
        %1774 = vmatprep.mubr.bf16.mxu0 0
        %1775 = vmatmul.mubr.bf16.gmra.mrb[0].mxu0 %v1512
        %v1776 = vpop.f32.mrb[0].mxu0
        %v1777 = vadd.f32 0.0, %v1776
        %v1778 = vpop.f32.mrb[0].mxu0
        %v1779 = vadd.f32 0.0, %v1778
        %v1780 = vpop.f32.mrb[0].mxu0
        %v1781 = vadd.f32 0.0, %v1780
        %v1782 = vpop.f32.mrb[0].mxu0
        %v1783 = vadd.f32 0.0, %v1782
        %1784 = vmatprep.mubr.bf16.mxu0 0
        %1785 = vmatmul.mubr.bf16.gmra.mrb[0].mxu0 %v1513
        %v1786 = vpop.f32.mrb[0].mxu0
        %v1787 = vadd.f32 0.0, %v1786
        %v1788 = vpop.f32.mrb[0].mxu0
        %v1789 = vadd.f32 0.0, %v1788
        %v1790 = vpop.f32.mrb[0].mxu0
        %v1791 = vadd.f32 0.0, %v1790
        %v1792 = vpop.f32.mrb[0].mxu0
        %v1793 = vadd.f32 0.0, %v1792
        %1794 = vmatprep.mubr.bf16.mxu0 0
        %1795 = vmatmul.mubr.bf16.gmra.mrb[0].mxu0 %v1514
        %v1796 = vpop.f32.mrb[0].mxu0
        %v1797 = vadd.f32 0.0, %v1796
        %v1798 = vpop.f32.mrb[0].mxu0
        %v1799 = vadd.f32 0.0, %v1798
        %v1800 = vpop.f32.mrb[0].mxu0
        %v1801 = vadd.f32 0.0, %v1800
        %v1802 = vpop.f32.mrb[0].mxu0
        %v1803 = vadd.f32 0.0, %v1802
        %1804 = vdwg.mxu0
        %v1805 = vsub.f32 0.0, %v1649
        %v1806 = vsub.f32 0.0, %v1653
        %v1807 = vsub.f32 0.0, %v1659
        %v1808 = vsub.f32 0.0, %v1663
        %v1809 = vsub.f32 0.0, %v1669
        %v1810 = vsub.f32 0.0, %v1673
        %v1811 = vsub.f32 0.0, %v1679
        %v1812 = vsub.f32 0.0, %v1683
        %v1813 = vsub.f32 0.0, %v1689
        %v1814 = vsub.f32 0.0, %v1693
        %v1815 = vsub.f32 0.0, %v1699
        %v1816 = vsub.f32 0.0, %v1703
        %v1817 = vsub.f32 0.0, %v1709
        %v1818 = vsub.f32 0.0, %v1713
        %v1819 = vsub.f32 0.0, %v1719
        %v1820 = vsub.f32 0.0, %v1723
        %v1821 = vsub.f32 0.0, %v1729
        %v1822 = vsub.f32 0.0, %v1733
        %v1823 = vsub.f32 0.0, %v1739
        %v1824 = vsub.f32 0.0, %v1743
        %v1825 = vsub.f32 0.0, %v1749
        %v1826 = vsub.f32 0.0, %v1753
        %v1827 = vsub.f32 0.0, %v1759
        %v1828 = vsub.f32 0.0, %v1763
        %v1829 = vsub.f32 0.0, %v1769
        %v1830 = vsub.f32 0.0, %v1773
        %v1831 = vsub.f32 0.0, %v1779
        %v1832 = vsub.f32 0.0, %v1783
        %v1833 = vsub.f32 0.0, %v1789
        %v1834 = vsub.f32 0.0, %v1793
        %v1835 = vsub.f32 0.0, %v1799
        %v1836 = vsub.f32 0.0, %v1803
        %v1837 = vmul.f32 %v1805, 1.442695
        %v1838 = vpow.pop %v1837
        %v1839 = vmul.f32 %v1806, 1.442695
        %v1840 = vpow.pop %v1839
        %v1841 = vmul.f32 %v1807, 1.442695
        %v1842 = vpow.pop %v1841
        %v1843 = vmul.f32 %v1808, 1.442695
        %v1844 = vpow.pop %v1843
        %v1845 = vmul.f32 %v1809, 1.442695
        %v1846 = vpow.pop %v1845
        %v1847 = vmul.f32 %v1810, 1.442695
        %v1848 = vpow.pop %v1847
        %v1849 = vmul.f32 %v1811, 1.442695
        %v1850 = vpow.pop %v1849
        %v1851 = vmul.f32 %v1812, 1.442695
        %v1852 = vpow.pop %v1851
        %v1853 = vmul.f32 %v1813, 1.442695
        %v1854 = vpow.pop %v1853
        %v1855 = vmul.f32 %v1814, 1.442695
        %v1856 = vpow.pop %v1855
        %v1857 = vmul.f32 %v1815, 1.442695
        %v1858 = vpow.pop %v1857
        %v1859 = vmul.f32 %v1816, 1.442695
        %v1860 = vpow.pop %v1859
        %v1861 = vmul.f32 %v1817, 1.442695
        %v1862 = vpow.pop %v1861
        %v1863 = vmul.f32 %v1818, 1.442695
        %v1864 = vpow.pop %v1863
        %v1865 = vmul.f32 %v1819, 1.442695
        %v1866 = vpow.pop %v1865
        %v1867 = vmul.f32 %v1820, 1.442695
        %v1868 = vpow.pop %v1867
        %v1869 = vmul.f32 %v1821, 1.442695
        %v1870 = vpow.pop %v1869
        %v1871 = vmul.f32 %v1822, 1.442695
        %v1872 = vpow.pop %v1871
        %v1873 = vmul.f32 %v1823, 1.442695
        %v1874 = vpow.pop %v1873
        %v1875 = vmul.f32 %v1824, 1.442695
        %v1876 = vpow.pop %v1875
        %v1877 = vmul.f32 %v1825, 1.442695
        %v1878 = vpow.pop %v1877
        %v1879 = vmul.f32 %v1826, 1.442695
        %v1880 = vpow.pop %v1879
        %v1881 = vmul.f32 %v1827, 1.442695
        %v1882 = vpow.pop %v1881
        %v1883 = vmul.f32 %v1828, 1.442695
        %v1884 = vpow.pop %v1883
        %v1885 = vmul.f32 %v1829, 1.442695
        %v1886 = vpow.pop %v1885
        %v1887 = vmul.f32 %v1830, 1.442695
        %v1888 = vpow.pop %v1887
        %v1889 = vmul.f32 %v1831, 1.442695
        %v1890 = vpow.pop %v1889
        %v1891 = vmul.f32 %v1832, 1.442695
        %v1892 = vpow.pop %v1891
        %v1893 = vmul.f32 %v1833, 1.442695
        %v1894 = vpow.pop %v1893
        %v1895 = vmul.f32 %v1834, 1.442695
        %v1896 = vpow.pop %v1895
        %v1897 = vmul.f32 %v1835, 1.442695
        %v1898 = vpow.pop %v1897
        %v1899 = vmul.f32 %v1836, 1.442695
        %v1900 = vpow.pop %v1899
        %v1901 = vadd.f32 %v1838, 1.0
        %v1902 = vadd.f32 %v1840, 1.0
        %v1903 = vadd.f32 %v1842, 1.0
        %v1904 = vadd.f32 %v1844, 1.0
        %v1905 = vadd.f32 %v1846, 1.0
        %v1906 = vadd.f32 %v1848, 1.0
        %v1907 = vadd.f32 %v1850, 1.0
        %v1908 = vadd.f32 %v1852, 1.0
        %v1909 = vadd.f32 %v1854, 1.0
        %v1910 = vadd.f32 %v1856, 1.0
        %v1911 = vadd.f32 %v1858, 1.0
        %v1912 = vadd.f32 %v1860, 1.0
        %v1913 = vadd.f32 %v1862, 1.0
        %v1914 = vadd.f32 %v1864, 1.0
        %v1915 = vadd.f32 %v1866, 1.0
        %v1916 = vadd.f32 %v1868, 1.0
        %v1917 = vadd.f32 %v1870, 1.0
        %v1918 = vadd.f32 %v1872, 1.0
        %v1919 = vadd.f32 %v1874, 1.0
        %v1920 = vadd.f32 %v1876, 1.0
        %v1921 = vadd.f32 %v1878, 1.0
        %v1922 = vadd.f32 %v1880, 1.0
        %v1923 = vadd.f32 %v1882, 1.0
        %v1924 = vadd.f32 %v1884, 1.0
        %v1925 = vadd.f32 %v1886, 1.0
        %v1926 = vadd.f32 %v1888, 1.0
        %v1927 = vadd.f32 %v1890, 1.0
        %v1928 = vadd.f32 %v1892, 1.0
        %v1929 = vadd.f32 %v1894, 1.0
        %v1930 = vadd.f32 %v1896, 1.0
        %v1931 = vadd.f32 %v1898, 1.0
        %v1932 = vadd.f32 %v1900, 1.0
        %v1933 = vrcp.pop %v1901
        %v1934 = vrcp.pop %v1902
        %v1935 = vrcp.pop %v1903
        %v1936 = vrcp.pop %v1904
        %v1937 = vrcp.pop %v1905
        %v1938 = vrcp.pop %v1906
        %v1939 = vrcp.pop %v1907
        %v1940 = vrcp.pop %v1908
        %v1941 = vrcp.pop %v1909
        %v1942 = vrcp.pop %v1910
        %v1943 = vrcp.pop %v1911
        %v1944 = vrcp.pop %v1912
        %v1945 = vrcp.pop %v1913
        %v1946 = vrcp.pop %v1914
        %v1947 = vrcp.pop %v1915
        %v1948 = vrcp.pop %v1916
        %v1949 = vrcp.pop %v1917
        %v1950 = vrcp.pop %v1918
        %v1951 = vrcp.pop %v1919
        %v1952 = vrcp.pop %v1920
        %v1953 = vrcp.pop %v1921
        %v1954 = vrcp.pop %v1922
        %v1955 = vrcp.pop %v1923
        %v1956 = vrcp.pop %v1924
        %v1957 = vrcp.pop %v1925
        %v1958 = vrcp.pop %v1926
        %v1959 = vrcp.pop %v1927
        %v1960 = vrcp.pop %v1928
        %v1961 = vrcp.pop %v1929
        %v1962 = vrcp.pop %v1930
        %v1963 = vrcp.pop %v1931
        %v1964 = vrcp.pop %v1932
        %s1965 = scalar_lea.vmem %s2, 2
        %v1966 = vld [vmem:[%s1965] sm:$0x1]
        %v1968 = vlaneseq
        %v1969 = vshrl.u32 %v1968, 7
        %v1970 = vsub.s32 0, %v1969
        %v1971 = vrot.slane %v1966, %v1970
        %v1973 = vadd.f32 %v1647, %v1971
        %v1974 = vadd.f32 %v1651, %v1971
        %v1975 = vadd.f32 %v1657, %v1971
        %v1976 = vadd.f32 %v1661, %v1971
        %v1977 = vadd.f32 %v1667, %v1971
        %v1978 = vadd.f32 %v1671, %v1971
        %v1979 = vadd.f32 %v1677, %v1971
        %v1980 = vadd.f32 %v1681, %v1971
        %v1981 = vadd.f32 %v1687, %v1971
        %v1982 = vadd.f32 %v1691, %v1971
        %v1983 = vadd.f32 %v1697, %v1971
        %v1984 = vadd.f32 %v1701, %v1971
        %v1985 = vadd.f32 %v1707, %v1971
        %v1986 = vadd.f32 %v1711, %v1971
        %v1987 = vadd.f32 %v1717, %v1971
        %v1988 = vadd.f32 %v1721, %v1971
        %v1989 = vadd.f32 %v1727, %v1971
        %v1990 = vadd.f32 %v1731, %v1971
        %v1991 = vadd.f32 %v1737, %v1971
        %v1992 = vadd.f32 %v1741, %v1971
        %v1993 = vadd.f32 %v1747, %v1971
        %v1994 = vadd.f32 %v1751, %v1971
        %v1995 = vadd.f32 %v1757, %v1971
        %v1996 = vadd.f32 %v1761, %v1971
        %v1997 = vadd.f32 %v1767, %v1971
        %v1998 = vadd.f32 %v1771, %v1971
        %v1999 = vadd.f32 %v1777, %v1971
        %v2000 = vadd.f32 %v1781, %v1971
        %v2001 = vadd.f32 %v1787, %v1971
        %v2002 = vadd.f32 %v1791, %v1971
        %v2003 = vadd.f32 %v1797, %v1971
        %v2004 = vadd.f32 %v1801, %v1971
        %v2005 = vmul.f32 %v265, %v1973
        %v2006 = vmul.f32 %v266, %v1974
        %v2007 = vmul.f32 %v267, %v1975
        %v2008 = vmul.f32 %v268, %v1976
        %v2009 = vmul.f32 %v269, %v1977
        %v2010 = vmul.f32 %v270, %v1978
        %v2011 = vmul.f32 %v271, %v1979
        %v2012 = vmul.f32 %v272, %v1980
        %v2013 = vmul.f32 %v273, %v1981
        %v2014 = vmul.f32 %v274, %v1982
        %v2015 = vmul.f32 %v275, %v1983
        %v2016 = vmul.f32 %v276, %v1984
        %v2017 = vmul.f32 %v277, %v1985
        %v2018 = vmul.f32 %v278, %v1986
        %v2019 = vmul.f32 %v279, %v1987
        %v2020 = vmul.f32 %v280, %v1988
        %v2021 = vmul.f32 %v281, %v1989
        %v2022 = vmul.f32 %v282, %v1990
        %v2023 = vmul.f32 %v283, %v1991
        %v2024 = vmul.f32 %v284, %v1992
        %v2025 = vmul.f32 %v285, %v1993
        %v2026 = vmul.f32 %v286, %v1994
        %v2027 = vmul.f32 %v287, %v1995
        %v2028 = vmul.f32 %v288, %v1996
        %v2029 = vmul.f32 %v289, %v1997
        %v2030 = vmul.f32 %v290, %v1998
        %v2031 = vmul.f32 %v291, %v1999
        %v2032 = vmul.f32 %v292, %v2000
        %v2033 = vmul.f32 %v293, %v2001
        %v2034 = vmul.f32 %v294, %v2002
        %v2035 = vmul.f32 %v295, %v2003
        %v2036 = vmul.f32 %v296, %v2004
        %v2037 = vmul.f32 %v2005, %v1933
        %v2038 = vmul.f32 %v2006, %v1934
        %v2039 = vmul.f32 %v2007, %v1935
        %v2040 = vmul.f32 %v2008, %v1936
        %v2041 = vmul.f32 %v2009, %v1937
        %v2042 = vmul.f32 %v2010, %v1938
        %v2043 = vmul.f32 %v2011, %v1939
        %v2044 = vmul.f32 %v2012, %v1940
        %v2045 = vmul.f32 %v2013, %v1941
        %v2046 = vmul.f32 %v2014, %v1942
        %v2047 = vmul.f32 %v2015, %v1943
        %v2048 = vmul.f32 %v2016, %v1944
        %v2049 = vmul.f32 %v2017, %v1945
        %v2050 = vmul.f32 %v2018, %v1946
        %v2051 = vmul.f32 %v2019, %v1947
        %v2052 = vmul.f32 %v2020, %v1948
        %v2053 = vmul.f32 %v2021, %v1949
        %v2054 = vmul.f32 %v2022, %v1950
        %v2055 = vmul.f32 %v2023, %v1951
        %v2056 = vmul.f32 %v2024, %v1952
        %v2057 = vmul.f32 %v2025, %v1953
        %v2058 = vmul.f32 %v2026, %v1954
        %v2059 = vmul.f32 %v2027, %v1955
        %v2060 = vmul.f32 %v2028, %v1956
        %v2061 = vmul.f32 %v2029, %v1957
        %v2062 = vmul.f32 %v2030, %v1958
        %v2063 = vmul.f32 %v2031, %v1959
        %v2064 = vmul.f32 %v2032, %v1960
        %v2065 = vmul.f32 %v2033, %v1961
        %v2066 = vmul.f32 %v2034, %v1962
        %v2067 = vmul.f32 %v2035, %v1963
        %v2068 = vmul.f32 %v2036, %v1964
        %v2069 = vadd.f32 %v2037, %v1467
        %v2070 = vadd.f32 %v2038, %v1468
        %v2071 = vadd.f32 %v2039, %v1469
        %v2072 = vadd.f32 %v2040, %v1470
        %v2073 = vadd.f32 %v2041, %v1471
        %v2074 = vadd.f32 %v2042, %v1472
        %v2075 = vadd.f32 %v2043, %v1473
        %v2076 = vadd.f32 %v2044, %v1474
        %v2077 = vadd.f32 %v2045, %v1475
        %v2078 = vadd.f32 %v2046, %v1476
        %v2079 = vadd.f32 %v2047, %v1477
        %v2080 = vadd.f32 %v2048, %v1478
        %v2081 = vadd.f32 %v2049, %v1479
        %v2082 = vadd.f32 %v2050, %v1480
        %v2083 = vadd.f32 %v2051, %v1481
        %v2084 = vadd.f32 %v2052, %v1482
        %v2085 = vadd.f32 %v2053, %v1483
        %v2086 = vadd.f32 %v2054, %v1484
        %v2087 = vadd.f32 %v2055, %v1485
        %v2088 = vadd.f32 %v2056, %v1486
        %v2089 = vadd.f32 %v2057, %v1487
        %v2090 = vadd.f32 %v2058, %v1488
        %v2091 = vadd.f32 %v2059, %v1489
        %v2092 = vadd.f32 %v2060, %v1490
        %v2093 = vadd.f32 %v2061, %v1491
        %v2094 = vadd.f32 %v2062, %v1492
        %v2095 = vadd.f32 %v2063, %v1493
        %v2096 = vadd.f32 %v2064, %v1494
        %v2097 = vadd.f32 %v2065, %v1495
        %v2098 = vadd.f32 %v2066, %v1496
        %v2099 = vadd.f32 %v2067, %v1497
        %v2100 = vadd.f32 %v2068, %v1498
        %v2101 = vpack.c.bf16 %v2070, %v2069
        %v2102 = vpack.c.bf16 %v2072, %v2071
        %v2103 = vpack.c.bf16 %v2074, %v2073
        %v2104 = vpack.c.bf16 %v2076, %v2075
        %v2105 = vpack.c.bf16 %v2078, %v2077
        %v2106 = vpack.c.bf16 %v2080, %v2079
        %v2107 = vpack.c.bf16 %v2082, %v2081
        %v2108 = vpack.c.bf16 %v2084, %v2083
        %v2109 = vpack.c.bf16 %v2086, %v2085
        %v2110 = vpack.c.bf16 %v2088, %v2087
        %v2111 = vpack.c.bf16 %v2090, %v2089
        %v2112 = vpack.c.bf16 %v2092, %v2091
        %v2113 = vpack.c.bf16 %v2094, %v2093
        %v2114 = vpack.c.bf16 %v2096, %v2095
        %v2115 = vpack.c.bf16 %v2098, %v2097
        %v2116 = vpack.c.bf16 %v2100, %v2099
        %v2117 = vld [vmem:[%s3] sm:$0xf]
        %v2118 = vld [vmem:[%s3 + $0x4] sm:$0xf]
        %v2119 = vld [vmem:[%s3 + $0x8] sm:$0xf]
        %v2120 = vld [vmem:[%s3 + $0xc] sm:$0xf]
        %v2121 = vld [vmem:[%s3 + $0x10] sm:$0xf]
        %v2122 = vld [vmem:[%s3 + $0x14] sm:$0xf]
        %v2123 = vld [vmem:[%s3 + $0x18] sm:$0xf]
        %v2124 = vld [vmem:[%s3 + $0x1c] sm:$0xf]
        %v2125 = vld [vmem:[%s3 + $0x20] sm:$0xf]
        %v2126 = vld [vmem:[%s3 + $0x24] sm:$0xf]
        %v2127 = vld [vmem:[%s3 + $0x28] sm:$0xf]
        %v2128 = vld [vmem:[%s3 + $0x2c] sm:$0xf]
        %v2129 = vld [vmem:[%s3 + $0x30] sm:$0xf]
        %v2130 = vld [vmem:[%s3 + $0x34] sm:$0xf]
        %v2131 = vld [vmem:[%s3 + $0x38] sm:$0xf]
        %v2132 = vld [vmem:[%s3 + $0x3c] sm:$0xf]
        %v2133 = vld [vmem:[#allocation2] sm:$0x1]
        %v2135 = vlaneseq
        %v2136 = vshrl.u32 %v2135, 7
        %v2137 = vsub.s32 0, %v2136
        %v2138 = vrot.slane %v2133, %v2137
        %v2156 = vunpack.c.l.b16 %v2117
        %v2157 = vunpack.c.l.b16 %v2118
        %v2158 = vunpack.c.l.b16 %v2119
        %v2159 = vunpack.c.l.b16 %v2120
        %v2160 = vunpack.c.l.b16 %v2121
        %v2161 = vunpack.c.l.b16 %v2122
        %v2162 = vunpack.c.l.b16 %v2123
        %v2163 = vunpack.c.l.b16 %v2124
        %v2164 = vunpack.c.l.b16 %v2125
        %v2165 = vunpack.c.l.b16 %v2126
        %v2166 = vunpack.c.l.b16 %v2127
        %v2167 = vunpack.c.l.b16 %v2128
        %v2168 = vunpack.c.l.b16 %v2129
        %v2169 = vunpack.c.l.b16 %v2130
        %v2170 = vunpack.c.l.b16 %v2131
        %v2171 = vunpack.c.l.b16 %v2132
        %v2172 = vpack.c.b16 %v2157, %v2156
        %v2173 = vpack.c.b16 %v2159, %v2158
        %v2174 = vpack.c.b16 %v2161, %v2160
        %v2175 = vpack.c.b16 %v2163, %v2162
        %v2176 = vpack.c.b16 %v2165, %v2164
        %v2177 = vpack.c.b16 %v2167, %v2166
        %v2178 = vpack.c.b16 %v2169, %v2168
        %v2179 = vpack.c.b16 %v2171, %v2170
        %2188 = vmatprep.subr.bf16.mxu0 0
        %2189 = vmatpush1.bf16.msra.mxu0 %v2172
        %2190 = vmatprep.subr.bf16.mxu0 0
        %2191 = vmatpush1.bf16.msra.mxu0 %v2173
        %2192 = vmatprep.subr.bf16.mxu0 0
        %2193 = vmatpush1.bf16.msra.mxu0 %v2174
        %2194 = vmatprep.subr.bf16.mxu0 0
        %2195 = vmatpush1.bf16.msra.mxu0 %v2175
        %2196 = vmatprep.subr.bf16.mxu0 0
        %2197 = vmatpush1.bf16.msra.mxu0 %v2176
        %2198 = vmatprep.subr.bf16.mxu0 0
        %2199 = vmatpush1.bf16.msra.mxu0 %v2177
        %2200 = vmatprep.subr.bf16.mxu0 0
        %2201 = vmatpush1.bf16.msra.mxu0 %v2178
        %2202 = vmatprep.subr.bf16.mxu0 0
        %2203 = vmatpush1.bf16.msra.mxu0 %v2179
        %2204 = vmatprep.subr.bf16.mxu0 0
        %2205 = vmatpush1.bf16.msra.mxu0 0
        %2206 = vmatprep.subr.bf16.mxu0 0
        %2207 = vmatpush1.bf16.msra.mxu0 0
        %2208 = vmatprep.subr.bf16.mxu0 0
        %2209 = vmatpush1.bf16.msra.mxu0 0
        %2210 = vmatprep.subr.bf16.mxu0 0
        %2211 = vmatpush1.bf16.msra.mxu0 0
        %2212 = vmatprep.subr.bf16.mxu0 0
        %2213 = vmatpush1.bf16.msra.mxu0 0
        %2214 = vmatprep.subr.bf16.mxu0 0
        %2215 = vmatpush1.bf16.msra.mxu0 0
        %2216 = vmatprep.subr.bf16.mxu0 0
        %2217 = vmatpush1.bf16.msra.mxu0 0
        %2218 = vmatprep.subr.bf16.mxu0 0
        %2219 = vmatpush1.bf16.msra.mxu0 0
        %2220 = vmatprep.mubr.bf16.mxu0 0
        %2221 = vmatmul.mubr.bf16.gmra.mrb[0].mxu0 %v2101
        %v2222 = vpop.f32.mrb[0].mxu0
        %v2223 = vadd.f32 %v2138, %v2222
        %v2224 = vpop.f32.mrb[0].mxu0
        %v2225 = vpop.f32.mrb[0].mxu0
        %v2226 = vadd.f32 %v2138, %v2225
        %v2227 = vpop.f32.mrb[0].mxu0
        %2228 = vmatprep.mubr.bf16.mxu0 0
        %2229 = vmatmul.mubr.bf16.gmra.mrb[0].mxu0 %v2102
        %v2230 = vpop.f32.mrb[0].mxu0
        %v2231 = vadd.f32 %v2138, %v2230
        %v2232 = vpop.f32.mrb[0].mxu0
        %v2233 = vpop.f32.mrb[0].mxu0
        %v2234 = vadd.f32 %v2138, %v2233
        %v2235 = vpop.f32.mrb[0].mxu0
        %2236 = vmatprep.mubr.bf16.mxu0 0
        %2237 = vmatmul.mubr.bf16.gmra.mrb[0].mxu0 %v2103
        %v2238 = vpop.f32.mrb[0].mxu0
        %v2239 = vadd.f32 %v2138, %v2238
        %v2240 = vpop.f32.mrb[0].mxu0
        %v2241 = vpop.f32.mrb[0].mxu0
        %v2242 = vadd.f32 %v2138, %v2241
        %v2243 = vpop.f32.mrb[0].mxu0
        %2244 = vmatprep.mubr.bf16.mxu0 0
        %2245 = vmatmul.mubr.bf16.gmra.mrb[0].mxu0 %v2104
        %v2246 = vpop.f32.mrb[0].mxu0
        %v2247 = vadd.f32 %v2138, %v2246
        %v2248 = vpop.f32.mrb[0].mxu0
        %v2249 = vpop.f32.mrb[0].mxu0
        %v2250 = vadd.f32 %v2138, %v2249
        %v2251 = vpop.f32.mrb[0].mxu0
        %2252 = vmatprep.mubr.bf16.mxu0 0
        %2253 = vmatmul.mubr.bf16.gmra.mrb[0].mxu0 %v2105
        %v2254 = vpop.f32.mrb[0].mxu0
        %v2255 = vadd.f32 %v2138, %v2254
        %v2256 = vpop.f32.mrb[0].mxu0
        %v2257 = vpop.f32.mrb[0].mxu0
        %v2258 = vadd.f32 %v2138, %v2257
        %v2259 = vpop.f32.mrb[0].mxu0
        %2260 = vmatprep.mubr.bf16.mxu0 0
        %2261 = vmatmul.mubr.bf16.gmra.mrb[0].mxu0 %v2106
        %v2262 = vpop.f32.mrb[0].mxu0
        %v2263 = vadd.f32 %v2138, %v2262
        %v2264 = vpop.f32.mrb[0].mxu0
        %v2265 = vpop.f32.mrb[0].mxu0
        %v2266 = vadd.f32 %v2138, %v2265
        %v2267 = vpop.f32.mrb[0].mxu0
        %2268 = vmatprep.mubr.bf16.mxu0 0
        %2269 = vmatmul.mubr.bf16.gmra.mrb[0].mxu0 %v2107
        %v2270 = vpop.f32.mrb[0].mxu0
        %v2271 = vadd.f32 %v2138, %v2270
        %v2272 = vpop.f32.mrb[0].mxu0
        %v2273 = vpop.f32.mrb[0].mxu0
        %v2274 = vadd.f32 %v2138, %v2273
        %v2275 = vpop.f32.mrb[0].mxu0
        %2276 = vmatprep.mubr.bf16.mxu0 0
        %2277 = vmatmul.mubr.bf16.gmra.mrb[0].mxu0 %v2108
        %v2278 = vpop.f32.mrb[0].mxu0
        %v2279 = vadd.f32 %v2138, %v2278
        %v2280 = vpop.f32.mrb[0].mxu0
        %v2281 = vpop.f32.mrb[0].mxu0
        %v2282 = vadd.f32 %v2138, %v2281
        %v2283 = vpop.f32.mrb[0].mxu0
        %2284 = vmatprep.mubr.bf16.mxu0 0
        %2285 = vmatmul.mubr.bf16.gmra.mrb[0].mxu0 %v2109
        %v2286 = vpop.f32.mrb[0].mxu0
        %v2287 = vadd.f32 %v2138, %v2286
        %v2288 = vpop.f32.mrb[0].mxu0
        %v2289 = vpop.f32.mrb[0].mxu0
        %v2290 = vadd.f32 %v2138, %v2289
        %v2291 = vpop.f32.mrb[0].mxu0
        %2292 = vmatprep.mubr.bf16.mxu0 0
        %2293 = vmatmul.mubr.bf16.gmra.mrb[0].mxu0 %v2110
        %v2294 = vpop.f32.mrb[0].mxu0
        %v2295 = vadd.f32 %v2138, %v2294
        %v2296 = vpop.f32.mrb[0].mxu0
        %v2297 = vpop.f32.mrb[0].mxu0
        %v2298 = vadd.f32 %v2138, %v2297
        %v2299 = vpop.f32.mrb[0].mxu0
        %2300 = vmatprep.mubr.bf16.mxu0 0
        %2301 = vmatmul.mubr.bf16.gmra.mrb[0].mxu0 %v2111
        %v2302 = vpop.f32.mrb[0].mxu0
        %v2303 = vadd.f32 %v2138, %v2302
        %v2304 = vpop.f32.mrb[0].mxu0
        %v2305 = vpop.f32.mrb[0].mxu0
        %v2306 = vadd.f32 %v2138, %v2305
        %v2307 = vpop.f32.mrb[0].mxu0
        %2308 = vmatprep.mubr.bf16.mxu0 0
        %2309 = vmatmul.mubr.bf16.gmra.mrb[0].mxu0 %v2112
        %v2310 = vpop.f32.mrb[0].mxu0
        %v2311 = vadd.f32 %v2138, %v2310
        %v2312 = vpop.f32.mrb[0].mxu0
        %v2313 = vpop.f32.mrb[0].mxu0
        %v2314 = vadd.f32 %v2138, %v2313
        %v2315 = vpop.f32.mrb[0].mxu0
        %2316 = vmatprep.mubr.bf16.mxu0 0
        %2317 = vmatmul.mubr.bf16.gmra.mrb[0].mxu0 %v2113
        %v2318 = vpop.f32.mrb[0].mxu0
        %v2319 = vadd.f32 %v2138, %v2318
        %v2320 = vpop.f32.mrb[0].mxu0
        %v2321 = vpop.f32.mrb[0].mxu0
        %v2322 = vadd.f32 %v2138, %v2321
        %v2323 = vpop.f32.mrb[0].mxu0
        %2324 = vmatprep.mubr.bf16.mxu0 0
        %2325 = vmatmul.mubr.bf16.gmra.mrb[0].mxu0 %v2114
        %v2326 = vpop.f32.mrb[0].mxu0
        %v2327 = vadd.f32 %v2138, %v2326
        %v2328 = vpop.f32.mrb[0].mxu0
        %v2329 = vpop.f32.mrb[0].mxu0
        %v2330 = vadd.f32 %v2138, %v2329
        %v2331 = vpop.f32.mrb[0].mxu0
        %2332 = vmatprep.mubr.bf16.mxu0 0
        %2333 = vmatmul.mubr.bf16.gmra.mrb[0].mxu0 %v2115
        %v2334 = vpop.f32.mrb[0].mxu0
        %v2335 = vadd.f32 %v2138, %v2334
        %v2336 = vpop.f32.mrb[0].mxu0
        %v2337 = vpop.f32.mrb[0].mxu0
        %v2338 = vadd.f32 %v2138, %v2337
        %v2339 = vpop.f32.mrb[0].mxu0
        %2340 = vmatprep.mubr.bf16.mxu0 0
        %2341 = vmatmul.mubr.bf16.gmra.mrb[0].mxu0 %v2116
        %v2342 = vpop.f32.mrb[0].mxu0
        %v2343 = vadd.f32 %v2138, %v2342
        %v2344 = vpop.f32.mrb[0].mxu0
        %v2345 = vpop.f32.mrb[0].mxu0
        %v2346 = vadd.f32 %v2138, %v2345
        %v2347 = vpop.f32.mrb[0].mxu0
        %2348 = vdwg.mxu0
        %vm2349 = vcmask 7168
        %2350 = vst.msk [vmem:[%s262] sm:$0xff] %vm2349, %v2223
        %2351 = vst.msk [vmem:[%s262 + $0x8] sm:$0xff] %vm2349, %v2226
        %2352 = vst.msk [vmem:[%s262 + $0x10] sm:$0xff] %vm2349, %v2231
        %2353 = vst.msk [vmem:[%s262 + $0x18] sm:$0xff] %vm2349, %v2234
        %2354 = vst.msk [vmem:[%s262 + $0x20] sm:$0xff] %vm2349, %v2239
        %2355 = vst.msk [vmem:[%s262 + $0x28] sm:$0xff] %vm2349, %v2242
        %2356 = vst.msk [vmem:[%s262 + $0x30] sm:$0xff] %vm2349, %v2247
        %2357 = vst.msk [vmem:[%s262 + $0x38] sm:$0xff] %vm2349, %v2250
        %2358 = vst.msk [vmem:[%s262 + $0x40] sm:$0xff] %vm2349, %v2255
        %2359 = vst.msk [vmem:[%s262 + $0x48] sm:$0xff] %vm2349, %v2258
        %2360 = vst.msk [vmem:[%s262 + $0x50] sm:$0xff] %vm2349, %v2263
        %2361 = vst.msk [vmem:[%s262 + $0x58] sm:$0xff] %vm2349, %v2266
        %2362 = vst.msk [vmem:[%s262 + $0x60] sm:$0xff] %vm2349, %v2271
        %2363 = vst.msk [vmem:[%s262 + $0x68] sm:$0xff] %vm2349, %v2274
        %2364 = vst.msk [vmem:[%s262 + $0x70] sm:$0xff] %vm2349, %v2279
        %2365 = vst.msk [vmem:[%s262 + $0x78] sm:$0xff] %vm2349, %v2282
        %2366 = vst.msk [vmem:[%s262 + $0x80] sm:$0xff] %vm2349, %v2287
        %2367 = vst.msk [vmem:[%s262 + $0x88] sm:$0xff] %vm2349, %v2290
        %2368 = vst.msk [vmem:[%s262 + $0x90] sm:$0xff] %vm2349, %v2295
        %2369 = vst.msk [vmem:[%s262 + $0x98] sm:$0xff] %vm2349, %v2298
        %2370 = vst.msk [vmem:[%s262 + $0xa0] sm:$0xff] %vm2349, %v2303
        %2371 = vst.msk [vmem:[%s262 + $0xa8] sm:$0xff] %vm2349, %v2306
        %2372 = vst.msk [vmem:[%s262 + $0xb0] sm:$0xff] %vm2349, %v2311
        %2373 = vst.msk [vmem:[%s262 + $0xb8] sm:$0xff] %vm2349, %v2314
        %2374 = vst.msk [vmem:[%s262 + $0xc0] sm:$0xff] %vm2349, %v2319
        %2375 = vst.msk [vmem:[%s262 + $0xc8] sm:$0xff] %vm2349, %v2322
        %2376 = vst.msk [vmem:[%s262 + $0xd0] sm:$0xff] %vm2349, %v2327
        %2377 = vst.msk [vmem:[%s262 + $0xd8] sm:$0xff] %vm2349, %v2330
        %2378 = vst.msk [vmem:[%s262 + $0xe0] sm:$0xff] %vm2349, %v2335
        %2379 = vst.msk [vmem:[%s262 + $0xe8] sm:$0xff] %vm2349, %v2338
        %2380 = vst.msk [vmem:[%s262 + $0xf0] sm:$0xff] %vm2349, %v2343
        %2381 = vst.msk [vmem:[%s262 + $0xf8] sm:$0xff] %vm2349, %v2346
        %s2382 = smul.u32 32, %s22
        %p2383 = scmp.lt.s32.totalorder %s2382, 63
        %s2384 = scalar_select %p2383, %s2382, 63
        %s2385 = smul.addr %s2384, 8
        %s2386 = scalar_lea.vmem %s5, %s2385
        // Predicated region
        $region49: #{tpu_custom_call.1} parent=39 // pred_check
          %p2387 = pneg %p150
        $region50: #{tpu_custom_call.1} parent=39 // pred_check_branch
          %2389 = sbr.rel (%p2387) target = $region52
        $region51: #{tpu_custom_call.1} parent=39 // pred_region
          %s2390 = smul.u32 32, %s22
        $region52: #{tpu_custom_call.1} parent=39 // pred_fallthru
          _
      $region40: #{tpu_custom_call.1} parent=5 // pred_fallthru
        _
      %p2391 = scmp.le.s32.totalorder 2, %s17
      // Predicated region
      $region53: #{tpu_custom_call.1} parent=5 // pred_check
        %p2392 = pneg %p2391
      $region54: #{tpu_custom_call.1} parent=5 // pred_check_branch
        %2394 = sbr.rel (%p2392) target = $region56
      $region55: #{tpu_custom_call.1} parent=5 // pred_region
        %s2395 = ssub.s32 %s17, 2
        // Predicated region
        $region57: #{tpu_custom_call.1} parent=55 // pred_check
          %p2396 = pneg %p156
        $region58: #{tpu_custom_call.1} parent=55 // pred_check_branch
          %2398 = sbr.rel (%p2396) target = $region60
        $region59: #{tpu_custom_call.1} parent=55 // pred_region
          %s2399 = smul.u32 32, %s23
          %p2400 = scmp.lt.s32.totalorder %s2399, 63
          %s2401 = scalar_select %p2400, %s2399, 63
          %s2402 = smul.addr %s2401, 8
          %s2403 = scalar_lea.vmem %s5, %s2402
        $region60: #{tpu_custom_call.1} parent=55 // pred_fallthru
          _
      $region56: #{tpu_custom_call.1} parent=5 // pred_fallthru
        _
    $region6: #{tpu_custom_call.1} parent=1 // loop_footer
      %s21 = sadd.s32 1, %s17
    $region7: #{tpu_custom_call.1} parent=1 // loop_footer_branch
      %16 = sbr.rel target = $region3
    $region8: #{tpu_custom_call.1} parent=1 // loop_exit
      _
    %2404 = vsyncpa [#allocation4], 1
    %s2405 = scalar_lea.sflag [#allocation4], 1
    %2406 = vsyncpa %s2405, 1
    %2407 = vsyncpa [#allocation6], 1

// kernel: tpu_custom_call.1
$region0: #{tpu_custom_call.1}
  #allocation0 [shape = 'u32[]', space=smem, size = 0x4, offset = 0x4, fixed_abs, tag = 'smem constant byte address 0x4 - core index']
  #allocation1 [shape = 'u32[144,128]{1,0:T(1,128)}', space=vmem, size = 0x12000, scoped, tag = 'internal scratch']
  #allocation2 [shape = 'f32[1,1]{1,0:T(1,128)S(1)}', space=vmem, size = 0x200, scoped, tag = 'scoped memory for tpu_custom_call.1']
  %s0 = inlined_call_operand.hbm [shape: f32[512,128], index: 0, kind: input, shape index: {}]
  %s1 = inlined_call_operand.hbm [shape: bf16[3,128,256], index: 1, kind: input, shape index: {}]
  %s2 = inlined_call_operand.vmem [shape: f32[3,1,128], index: 2, kind: input, shape index: {}]
  %s3 = inlined_call_operand.vmem [shape: bf16[128,1], index: 3, kind: input, shape index: {}]
  %s4 = inlined_call_operand.<no memory space> [shape: f32[1,1], index: 4, kind: input, shape index: {}]
  %s5 = inlined_call_operand.vmem [shape: f32[512,1], index: 5, kind: output, shape index: {}]
  %s6 = sld [smem:[#allocation0]]
  $region61: #{tpu_custom_call.1} parent=0
    _
  %s8 = ssub.s32 1, %s6
  %s9 = scalar_select 0, %s8, %s6
  %v10 = vstv %s4
  %11 = vst [vmem:[#allocation2] sm:$0x1] %v10
  $region1: #{tpu_custom_call.1} parent=0
    #allocation3 [shape = 'u8[262144]{0}', space=vmem, size = 0x40000, scoped, tag = 'input window, operand 0']
    #allocation4 [shape = 's32[2]{0}', space=sflag, size = 0x8, scoped, tag = 'scoped memory for tpu_custom_call.1']
    #allocation5 [shape = 'u8[196608]{0}', space=vmem, size = 0x30000, scoped, tag = 'input window, operand 1, single buffered']
    #allocation6 [shape = 's32[1]{0}', space=sflag, size = 0x4, scoped, tag = 'scoped memory for tpu_custom_call.1']
    %12 = vsyncpa [#allocation4], 0
    %s13 = scalar_lea.sflag [#allocation4], 1
    %14 = vsyncpa %s13, 0
    %15 = vsyncpa [#allocation6], 0
    loop: start=0, step=1, limit=4
    $region2: #{tpu_custom_call.1} parent=1 // loop_pre_header
      _
    $region3: #{tpu_custom_call.1} parent=1 // loop_header
      %s17 = sphi 0, %s21
      %p18 = scmp.ge.s32.totalorder %s17, 4
      %s27 = sphi 0, %s29
      %s30 = sphi 0, %s27
      %s31 = sphi 0, %s30
      %s47 = sphi 0, %s31
      %s51 = sphi 0, %s51
      %s53 = sphi 0, %s51
      %s54 = sphi 0, %s53
      %s68 = sphi 0, %s54
      %s72 = sphi 0, %s72
      %s74 = sphi 0, %s72
      %s75 = sphi 0, %s74
      %s89 = sphi 0, %s75
      %s93 = sphi 0, %s93
      %s95 = sphi 0, %s93
      %s96 = sphi 0, %s95
      %s110 = sphi 0, %s96
      %s114 = sphi 0, %s114
      %s116 = sphi 0, %s114
      %s117 = sphi 0, %s116
      %s131 = sphi 0, %s117
      %s137 = sphi 0, %s139
      %s140 = sphi 0, %s137
      %s141 = sphi 0, %s140
      %s157 = sphi 0, %s141
    $region4: #{tpu_custom_call.1} parent=1 // loop_header_branch
      %20 = sbr.rel (%p18) target = $region8
    $region5: #{tpu_custom_call.1} parent=1 // loop_body
      %s22 = ssub.s32 %s17, 1
      %s23 = ssub.s32 %s17, 2
      %s24 = sadd.s32 %s17, 1
      %s25 = ssub.s32 %s17, %s24
      %p26 = scmp.eq.s32.totalorder %s25, 0
      %s28 = sadd.s32 %s27, 1
      %s29 = scalar_select %p26, %s27, %s28
      %p32 = pneg %p26
      %p33 = scmp.eq.s32.totalorder %s17, 1
      %p34 = por %p32, %p33
      %p35 = scmp.ne.s32.totalorder %s27, %s30
      %p36 = scmp.eq.s32.totalorder %s17, 0
      %p37 = por %p35, %p36
      %p38 = scmp.ne.s32.totalorder %s27, %s30
      %p39 = scmp.eq.s32.totalorder %s22, 1
      %p40 = por %p38, %p39
      %p41 = scmp.ne.s32.totalorder %s30, %s31
      %p42 = scmp.eq.s32.totalorder %s22, 0
      %p43 = por %p41, %p42
      %p44 = scmp.ne.s32.totalorder %s30, %s31
      %p45 = scmp.eq.s32.totalorder %s23, 1
      %p46 = por %p44, %p45
      %p48 = scmp.ne.s32.totalorder %s31, %s47
      %p49 = scmp.eq.s32.totalorder %s23, 0
      %p50 = por %p48, %p49
      %s52 = sadd.s32 %s51, 1
      %p55 = scmp.eq.s32.totalorder %s17, 1
      %p56 = scmp.ne.s32.totalorder %s51, %s53
      %p57 = scmp.eq.s32.totalorder %s17, 0
      %p58 = por %p56, %p57
      %p59 = scmp.ne.s32.totalorder %s51, %s53
      %p60 = scmp.eq.s32.totalorder %s22, 1
      %p61 = por %p59, %p60
      %p62 = scmp.ne.s32.totalorder %s53, %s54
      %p63 = scmp.eq.s32.totalorder %s22, 0
      %p64 = por %p62, %p63
      %p65 = scmp.ne.s32.totalorder %s53, %s54
      %p66 = scmp.eq.s32.totalorder %s23, 1
      %p67 = por %p65, %p66
      %p69 = scmp.ne.s32.totalorder %s54, %s68
      %p70 = scmp.eq.s32.totalorder %s23, 0
      %p71 = por %p69, %p70
      %s73 = sadd.s32 %s72, 1
      %p76 = scmp.eq.s32.totalorder %s17, 1
      %p77 = scmp.ne.s32.totalorder %s72, %s74
      %p78 = scmp.eq.s32.totalorder %s17, 0
      %p79 = por %p77, %p78
      %p80 = scmp.ne.s32.totalorder %s72, %s74
      %p81 = scmp.eq.s32.totalorder %s22, 1
      %p82 = por %p80, %p81
      %p83 = scmp.ne.s32.totalorder %s74, %s75
      %p84 = scmp.eq.s32.totalorder %s22, 0
      %p85 = por %p83, %p84
      %p86 = scmp.ne.s32.totalorder %s74, %s75
      %p87 = scmp.eq.s32.totalorder %s23, 1
      %p88 = por %p86, %p87
      %p90 = scmp.ne.s32.totalorder %s75, %s89
      %p91 = scmp.eq.s32.totalorder %s23, 0
      %p92 = por %p90, %p91
      %s94 = sadd.s32 %s93, 1
      %p97 = scmp.eq.s32.totalorder %s17, 1
      %p98 = scmp.ne.s32.totalorder %s93, %s95
      %p99 = scmp.eq.s32.totalorder %s17, 0
      %p100 = por %p98, %p99
      %p101 = scmp.ne.s32.totalorder %s93, %s95
      %p102 = scmp.eq.s32.totalorder %s22, 1
      %p103 = por %p101, %p102
      %p104 = scmp.ne.s32.totalorder %s95, %s96
      %p105 = scmp.eq.s32.totalorder %s22, 0
      %p106 = por %p104, %p105
      %p107 = scmp.ne.s32.totalorder %s95, %s96
      %p108 = scmp.eq.s32.totalorder %s23, 1
      %p109 = por %p107, %p108
      %p111 = scmp.ne.s32.totalorder %s96, %s110
      %p112 = scmp.eq.s32.totalorder %s23, 0
      %p113 = por %p111, %p112
      %s115 = sadd.s32 %s114, 1
      %p118 = scmp.eq.s32.totalorder %s17, 1
      %p119 = scmp.ne.s32.totalorder %s114, %s116
      %p120 = scmp.eq.s32.totalorder %s17, 0
      %p121 = por %p119, %p120
      %p122 = scmp.ne.s32.totalorder %s114, %s116
      %p123 = scmp.eq.s32.totalorder %s22, 1
      %p124 = por %p122, %p123
      %p125 = scmp.ne.s32.totalorder %s116, %s117
      %p126 = scmp.eq.s32.totalorder %s22, 0
      %p127 = por %p125, %p126
      %p128 = scmp.ne.s32.totalorder %s116, %s117
      %p129 = scmp.eq.s32.totalorder %s23, 1
      %p130 = por %p128, %p129
      %p132 = scmp.ne.s32.totalorder %s117, %s131
      %p133 = scmp.eq.s32.totalorder %s23, 0
      %p134 = por %p132, %p133
      %s135 = ssub.s32 %s17, %s24
      %p136 = scmp.eq.s32.totalorder %s135, 0
      %s138 = sadd.s32 %s137, 1
      %s139 = scalar_select %p136, %s137, %s138
      %p142 = pneg %p136
      %p143 = scmp.eq.s32.totalorder %s17, 1
      %p144 = por %p142, %p143
      %p145 = scmp.ne.s32.totalorder %s137, %s140
      %p146 = scmp.eq.s32.totalorder %s17, 0
      %p147 = por %p145, %p146
      %p148 = scmp.ne.s32.totalorder %s137, %s140
      %p149 = scmp.eq.s32.totalorder %s22, 1
      %p150 = por %p148, %p149
      %p151 = scmp.ne.s32.totalorder %s140, %s141
      %p152 = scmp.eq.s32.totalorder %s22, 0
      %p153 = por %p151, %p152
      %p154 = scmp.ne.s32.totalorder %s140, %s141
      %p155 = scmp.eq.s32.totalorder %s23, 1
      %p156 = por %p154, %p155
      %p158 = scmp.ne.s32.totalorder %s141, %s157
      %p159 = scmp.eq.s32.totalorder %s23, 0
      %p160 = por %p158, %p159
      %p161 = scmp.le.s32.totalorder 1, %s17
      %p162 = scmp.lt.s32.totalorder %s17, 3
      %p163 = pnand %p161, %p162
      %p164 = pneg %p163
      // Predicated region
      $region9: #{tpu_custom_call.1} parent=5 // pred_check
        _
      $region10: #{tpu_custom_call.1} parent=5 // pred_check_branch
        %166 = sbr.rel (%p163) target = $region12
      $region11: #{tpu_custom_call.1} parent=5 // pred_region
        %s167 = ssub.s32 %s17, 1
        // Predicated region
        $region13: #{tpu_custom_call.1} parent=11 // pred_check
          %p168 = pneg %p64
        $region14: #{tpu_custom_call.1} parent=11 // pred_check_branch
          %170 = sbr.rel (%p168) target = $region16
        $region15: #{tpu_custom_call.1} parent=11 // pred_region
          %s172 = ssub.s32 6144, 6144
          %173 = vsyncadd [#allocation6], %s172
          %s174 = sshll.u32 [#allocation5], 4
          %s175 = int_to_ptr.vmem [resolvable:$true] %s174
          %180 = dma.hbm_to_vmem [thread:$0]  %s1, 6144, %s175, [#allocation6], 128, 128, 8
        $region16: #{tpu_custom_call.1} parent=11 // pred_fallthru
          _
        // Predicated region
        $region17: #{tpu_custom_call.1} parent=11 // pred_check
          %p181 = pneg %p85
        $region18: #{tpu_custom_call.1} parent=11 // pred_check_branch
          %183 = sbr.rel (%p181) target = $region20
        $region19: #{tpu_custom_call.1} parent=11 // pred_region
          _
        $region20: #{tpu_custom_call.1} parent=11 // pred_fallthru
          _
        // Predicated region
        $region21: #{tpu_custom_call.1} parent=11 // pred_check
          %p184 = pneg %p106
        $region22: #{tpu_custom_call.1} parent=11 // pred_check_branch
          %186 = sbr.rel (%p184) target = $region24
        $region23: #{tpu_custom_call.1} parent=11 // pred_region
          _
        $region24: #{tpu_custom_call.1} parent=11 // pred_fallthru
          _
        // Predicated region
        $region25: #{tpu_custom_call.1} parent=11 // pred_check
          %p187 = pneg %p127
        $region26: #{tpu_custom_call.1} parent=11 // pred_check_branch
          %189 = sbr.rel (%p187) target = $region28
        $region27: #{tpu_custom_call.1} parent=11 // pred_region
          _
        $region28: #{tpu_custom_call.1} parent=11 // pred_fallthru
          _
      $region12: #{tpu_custom_call.1} parent=5 // pred_fallthru
        _
      %p190 = scmp.lt.s32.totalorder %s17, 2
      // Predicated region
      $region29: #{tpu_custom_call.1} parent=5 // pred_check
        %p191 = pneg %p190
      $region30: #{tpu_custom_call.1} parent=5 // pred_check_branch
        %193 = sbr.rel (%p191) target = $region32
      $region31: #{tpu_custom_call.1} parent=5 // pred_region
        // Predicated region
        $region33: #{tpu_custom_call.1} parent=31 // pred_check
          %p194 = pneg %p37
        $region34: #{tpu_custom_call.1} parent=31 // pred_check_branch
          %196 = sbr.rel (%p194) target = $region36
        $region35: #{tpu_custom_call.1} parent=31 // pred_region
          %s197 = sand.u32 %s27, 1
          %s198 = scalar_lea.sflag [#allocation4], %s197
          %s199 = sand.u32 %s27, 1
          %s200 = smul.addr %s199, 256
          %s201 = scalar_lea.vmem [#allocation3], %s200
          %s202 = smul.u32 32, %s17
          %s204 = ssub.s32 4096, 4096
          %205 = vsyncadd %s198, %s204
          %s206 = smul.addr %s202, 128
          %s207 = scalar_lea.hbm %s0, %s206
          %s208 = sshll.u32 %s201, 4
          %s209 = int_to_ptr.vmem [resolvable:$true] %s208
          %214 = dma.hbm_to_vmem [thread:$0]  %s207, 4096, %s209, %s198, 128, 128, 8
        $region36: #{tpu_custom_call.1} parent=31 // pred_fallthru
          _
      $region32: #{tpu_custom_call.1} parent=5 // pred_fallthru
        _
      %p215 = scmp.le.s32.totalorder 1, %s17
      %p216 = scmp.lt.s32.totalorder %s17, 3
      %p217 = pnand %p215, %p216
      %p218 = pneg %p217
      // Predicated region
      $region37: #{tpu_custom_call.1} parent=5 // pred_check
        _
      $region38: #{tpu_custom_call.1} parent=5 // pred_check_branch
        %220 = sbr.rel (%p217) target = $region40
      $region39: #{tpu_custom_call.1} parent=5 // pred_region
        %s221 = ssub.s32 %s17, 1
        %s222 = sand.u32 %s30, 1
        %s223 = scalar_lea.sflag [#allocation4], %s222
        %s224 = sand.u32 %s30, 1
        %s225 = smul.addr %s224, 256
        %s226 = scalar_lea.vmem [#allocation3], %s225
        // Predicated region
        $region41: #{tpu_custom_call.1} parent=39 // pred_check
          %p227 = pneg %p43
        $region42: #{tpu_custom_call.1} parent=39 // pred_check_branch
          %229 = sbr.rel (%p227) target = $region44
        $region43: #{tpu_custom_call.1} parent=39 // pred_region
          %230 = dma.done %s223, 4096
        $region44: #{tpu_custom_call.1} parent=39 // pred_fallthru
          _
        // Predicated region
        $region45: #{tpu_custom_call.1} parent=39 // pred_check
          %p231 = pneg %p64
        $region46: #{tpu_custom_call.1} parent=39 // pred_check_branch
          %233 = sbr.rel (%p231) target = $region48
        $region47: #{tpu_custom_call.1} parent=39 // pred_region
          %234 = dma.done [#allocation6], 6144
        $region48: #{tpu_custom_call.1} parent=39 // pred_fallthru
          _
        %s235 = sand.u32 %s30, 1
        %s236 = scalar_lea.sflag [#allocation4], %s235
        %s237 = sand.u32 %s30, 1
        %s238 = smul.addr %s237, 256
        %s239 = scalar_lea.vmem [#allocation3], %s238
        %p240 = pneg %p43
        %p241 = pneg %p40
        %p242 = pneg %p64
        %p243 = pneg %p61
        %p244 = pneg %p85
        %p245 = pneg %p82
        %p246 = pneg %p106
        %p247 = pneg %p103
        %p248 = pneg %p127
        %p249 = pneg %p124
        %p250 = pneg %p153
        %p251 = pneg %p150
        %s252 = smul.u32 32, %s22
        %p253 = scmp.lt.s32.totalorder %s252, 63
        %s254 = scalar_select %p253, %s252, 63
        %s255 = smul.addr %s254, 8
        %s256 = scalar_lea.vmem %s5, %s255
        %s257 = smul.u32 32, %s22
        %s258 = smul.u32 32, %s22
        %p259 = scmp.lt.s32.totalorder %s258, 63
        %s260 = scalar_select %p259, %s258, 63
        %s261 = smul.addr %s260, 8
        %s262 = scalar_lea.vmem %s5, %s261
        %s263 = smul.u32 32, %s22
        %v265 = vld [vmem:[%s226] sm:$0xff]
        %v266 = vld [vmem:[%s226 + $0x8] sm:$0xff]
        %v267 = vld [vmem:[%s226 + $0x10] sm:$0xff]
        %v268 = vld [vmem:[%s226 + $0x18] sm:$0xff]
        %v269 = vld [vmem:[%s226 + $0x20] sm:$0xff]
        %v270 = vld [vmem:[%s226 + $0x28] sm:$0xff]
        %v271 = vld [vmem:[%s226 + $0x30] sm:$0xff]
        %v272 = vld [vmem:[%s226 + $0x38] sm:$0xff]
        %v273 = vld [vmem:[%s226 + $0x40] sm:$0xff]
        %v274 = vld [vmem:[%s226 + $0x48] sm:$0xff]
        %v275 = vld [vmem:[%s226 + $0x50] sm:$0xff]
        %v276 = vld [vmem:[%s226 + $0x58] sm:$0xff]
        %v277 = vld [vmem:[%s226 + $0x60] sm:$0xff]
        %v278 = vld [vmem:[%s226 + $0x68] sm:$0xff]
        %v279 = vld [vmem:[%s226 + $0x70] sm:$0xff]
        %v280 = vld [vmem:[%s226 + $0x78] sm:$0xff]
        %v281 = vld [vmem:[%s226 + $0x80] sm:$0xff]
        %v282 = vld [vmem:[%s226 + $0x88] sm:$0xff]
        %v283 = vld [vmem:[%s226 + $0x90] sm:$0xff]
        %v284 = vld [vmem:[%s226 + $0x98] sm:$0xff]
        %v285 = vld [vmem:[%s226 + $0xa0] sm:$0xff]
        %v286 = vld [vmem:[%s226 + $0xa8] sm:$0xff]
        %v287 = vld [vmem:[%s226 + $0xb0] sm:$0xff]
        %v288 = vld [vmem:[%s226 + $0xb8] sm:$0xff]
        %v289 = vld [vmem:[%s226 + $0xc0] sm:$0xff]
        %v290 = vld [vmem:[%s226 + $0xc8] sm:$0xff]
        %v291 = vld [vmem:[%s226 + $0xd0] sm:$0xff]
        %v292 = vld [vmem:[%s226 + $0xd8] sm:$0xff]
        %v293 = vld [vmem:[%s226 + $0xe0] sm:$0xff]
        %v294 = vld [vmem:[%s226 + $0xe8] sm:$0xff]
        %v295 = vld [vmem:[%s226 + $0xf0] sm:$0xff]
        %v296 = vld [vmem:[%s226 + $0xf8] sm:$0xff]
        %v297 = vpack.c.bf16 %v266, %v265
        %v298 = vpack.c.bf16 %v268, %v267
        %v299 = vpack.c.bf16 %v270, %v269
        %v300 = vpack.c.bf16 %v272, %v271
        %v301 = vpack.c.bf16 %v274, %v273
        %v302 = vpack.c.bf16 %v276, %v275
        %v303 = vpack.c.bf16 %v278, %v277
        %v304 = vpack.c.bf16 %v280, %v279
        %v305 = vpack.c.bf16 %v282, %v281
        %v306 = vpack.c.bf16 %v284, %v283
        %v307 = vpack.c.bf16 %v286, %v285
        %v308 = vpack.c.bf16 %v288, %v287
        %v309 = vpack.c.bf16 %v290, %v289
        %v310 = vpack.c.bf16 %v292, %v291
        %v311 = vpack.c.bf16 %v294, %v293
        %v312 = vpack.c.bf16 %v296, %v295
        %v313 = vld [vmem:[#allocation5] sm:$0xff]
        %v314 = vld [vmem:[#allocation5 + $0x8] sm:$0xff]
        %v315 = vld [vmem:[#allocation5 + $0x10] sm:$0xff]
        %v316 = vld [vmem:[#allocation5 + $0x18] sm:$0xff]
        %v317 = vld [vmem:[#allocation5 + $0x20] sm:$0xff]
        %v318 = vld [vmem:[#allocation5 + $0x28] sm:$0xff]
        %v319 = vld [vmem:[#allocation5 + $0x30] sm:$0xff]
        %v320 = vld [vmem:[#allocation5 + $0x38] sm:$0xff]
        %v321 = vld [vmem:[#allocation5 + $0x40] sm:$0xff]
        %v322 = vld [vmem:[#allocation5 + $0x48] sm:$0xff]
        %v323 = vld [vmem:[#allocation5 + $0x50] sm:$0xff]
        %v324 = vld [vmem:[#allocation5 + $0x58] sm:$0xff]
        %v325 = vld [vmem:[#allocation5 + $0x60] sm:$0xff]
        %v326 = vld [vmem:[#allocation5 + $0x68] sm:$0xff]
        %v327 = vld [vmem:[#allocation5 + $0x70] sm:$0xff]
        %v328 = vld [vmem:[#allocation5 + $0x78] sm:$0xff]
        %v345 = vunpack.c.l.b16 %v313
        %v346 = vunpack.c.h.b16 %v313
        %v347 = vunpack.c.l.b16 %v314
        %v348 = vunpack.c.h.b16 %v314
        %v349 = vunpack.c.l.b16 %v315
        %v350 = vunpack.c.h.b16 %v315
        %v351 = vunpack.c.l.b16 %v316
        %v352 = vunpack.c.h.b16 %v316
        %v353 = vunpack.c.l.b16 %v317
        %v354 = vunpack.c.h.b16 %v317
        %v355 = vunpack.c.l.b16 %v318
        %v356 = vunpack.c.h.b16 %v318
        %v357 = vunpack.c.l.b16 %v319
        %v358 = vunpack.c.h.b16 %v319
        %v359 = vunpack.c.l.b16 %v320
        %v360 = vunpack.c.h.b16 %v320
        %v361 = vunpack.c.l.b16 %v321
        %v362 = vunpack.c.h.b16 %v321
        %v363 = vunpack.c.l.b16 %v322
        %v364 = vunpack.c.h.b16 %v322
        %v365 = vunpack.c.l.b16 %v323
        %v366 = vunpack.c.h.b16 %v323
        %v367 = vunpack.c.l.b16 %v324
        %v368 = vunpack.c.h.b16 %v324
        %v369 = vunpack.c.l.b16 %v325
        %v370 = vunpack.c.h.b16 %v325
        %v371 = vunpack.c.l.b16 %v326
        %v372 = vunpack.c.h.b16 %v326
        %v373 = vunpack.c.l.b16 %v327
        %v374 = vunpack.c.h.b16 %v327
        %v375 = vunpack.c.l.b16 %v328
        %v376 = vunpack.c.h.b16 %v328
        %v377 = vpack.c.b16 %v347, %v345
        %v378 = vpack.c.b16 %v348, %v346
        %v379 = vpack.c.b16 %v351, %v349
        %v380 = vpack.c.b16 %v352, %v350
        %v381 = vpack.c.b16 %v355, %v353
        %v382 = vpack.c.b16 %v356, %v354
        %v383 = vpack.c.b16 %v359, %v357
        %v384 = vpack.c.b16 %v360, %v358
        %v385 = vpack.c.b16 %v363, %v361
        %v386 = vpack.c.b16 %v364, %v362
        %v387 = vpack.c.b16 %v367, %v365
        %v388 = vpack.c.b16 %v368, %v366
        %v389 = vpack.c.b16 %v371, %v369
        %v390 = vpack.c.b16 %v372, %v370
        %v391 = vpack.c.b16 %v375, %v373
        %v392 = vpack.c.b16 %v376, %v374
        %409 = vmatprep.subr.bf16.mxu0 %v378
        %410 = vmatpush1.bf16.msra.mxu0 %v377
        %411 = vmatprep.subr.bf16.mxu0 %v380
        %412 = vmatpush1.bf16.msra.mxu0 %v379
        %413 = vmatprep.subr.bf16.mxu0 %v382
        %414 = vmatpush1.bf16.msra.mxu0 %v381
        %415 = vmatprep.subr.bf16.mxu0 %v384
        %416 = vmatpush1.bf16.msra.mxu0 %v383
        %417 = vmatprep.subr.bf16.mxu0 %v386
        %418 = vmatpush1.bf16.msra.mxu0 %v385
        %419 = vmatprep.subr.bf16.mxu0 %v388
        %420 = vmatpush1.bf16.msra.mxu0 %v387
        %421 = vmatprep.subr.bf16.mxu0 %v390
        %422 = vmatpush1.bf16.msra.mxu0 %v389
        %423 = vmatprep.subr.bf16.mxu0 %v392
        %424 = vmatpush1.bf16.msra.mxu0 %v391
        %425 = vmatprep.subr.bf16.mxu0 0
        %426 = vmatpush1.bf16.msra.mxu0 0
        %427 = vmatprep.subr.bf16.mxu0 0
        %428 = vmatpush1.bf16.msra.mxu0 0
        %429 = vmatprep.subr.bf16.mxu0 0
        %430 = vmatpush1.bf16.msra.mxu0 0
        %431 = vmatprep.subr.bf16.mxu0 0
        %432 = vmatpush1.bf16.msra.mxu0 0
        %433 = vmatprep.subr.bf16.mxu0 0
        %434 = vmatpush1.bf16.msra.mxu0 0
        %435 = vmatprep.subr.bf16.mxu0 0
        %436 = vmatpush1.bf16.msra.mxu0 0
        %437 = vmatprep.subr.bf16.mxu0 0
        %438 = vmatpush1.bf16.msra.mxu0 0
        %439 = vmatprep.subr.bf16.mxu0 0
        %440 = vmatpush1.bf16.msra.mxu0 0
        %441 = vmatprep.mubr.bf16.mxu0 0
        %442 = vmatmul.mubr.bf16.gmra.mrb[0].mxu0 %v297
        %v443 = vpop.f32.mrb[0].mxu0
        %v444 = vadd.f32 0.0, %v443
        %v445 = vpop.f32.mrb[0].mxu0
        %v446 = vadd.f32 0.0, %v445
        %v447 = vpop.f32.mrb[0].mxu0
        %v448 = vadd.f32 0.0, %v447
        %v449 = vpop.f32.mrb[0].mxu0
        %v450 = vadd.f32 0.0, %v449
        %451 = vmatprep.mubr.bf16.mxu0 0
        %452 = vmatmul.mubr.bf16.gmra.mrb[0].mxu0 %v298
        %v453 = vpop.f32.mrb[0].mxu0
        %v454 = vadd.f32 0.0, %v453
        %v455 = vpop.f32.mrb[0].mxu0
        %v456 = vadd.f32 0.0, %v455
        %v457 = vpop.f32.mrb[0].mxu0
        %v458 = vadd.f32 0.0, %v457
        %v459 = vpop.f32.mrb[0].mxu0
        %v460 = vadd.f32 0.0, %v459
        %461 = vmatprep.mubr.bf16.mxu0 0
        %462 = vmatmul.mubr.bf16.gmra.mrb[0].mxu0 %v299
        %v463 = vpop.f32.mrb[0].mxu0
        %v464 = vadd.f32 0.0, %v463
        %v465 = vpop.f32.mrb[0].mxu0
        %v466 = vadd.f32 0.0, %v465
        %v467 = vpop.f32.mrb[0].mxu0
        %v468 = vadd.f32 0.0, %v467
        %v469 = vpop.f32.mrb[0].mxu0
        %v470 = vadd.f32 0.0, %v469
        %471 = vmatprep.mubr.bf16.mxu0 0
        %472 = vmatmul.mubr.bf16.gmra.mrb[0].mxu0 %v300
        %v473 = vpop.f32.mrb[0].mxu0
        %v474 = vadd.f32 0.0, %v473
        %v475 = vpop.f32.mrb[0].mxu0
        %v476 = vadd.f32 0.0, %v475
        %v477 = vpop.f32.mrb[0].mxu0
        %v478 = vadd.f32 0.0, %v477
        %v479 = vpop.f32.mrb[0].mxu0
        %v480 = vadd.f32 0.0, %v479
        %481 = vmatprep.mubr.bf16.mxu0 0
        %482 = vmatmul.mubr.bf16.gmra.mrb[0].mxu0 %v301
        %v483 = vpop.f32.mrb[0].mxu0
        %v484 = vadd.f32 0.0, %v483
        %v485 = vpop.f32.mrb[0].mxu0
        %v486 = vadd.f32 0.0, %v485
        %v487 = vpop.f32.mrb[0].mxu0
        %v488 = vadd.f32 0.0, %v487
        %v489 = vpop.f32.mrb[0].mxu0
        %v490 = vadd.f32 0.0, %v489
        %491 = vmatprep.mubr.bf16.mxu0 0
        %492 = vmatmul.mubr.bf16.gmra.mrb[0].mxu0 %v302
        %v493 = vpop.f32.mrb[0].mxu0
        %v494 = vadd.f32 0.0, %v493
        %v495 = vpop.f32.mrb[0].mxu0
        %v496 = vadd.f32 0.0, %v495
        %v497 = vpop.f32.mrb[0].mxu0
        %v498 = vadd.f32 0.0, %v497
        %v499 = vpop.f32.mrb[0].mxu0
        %v500 = vadd.f32 0.0, %v499
        %501 = vmatprep.mubr.bf16.mxu0 0
        %502 = vmatmul.mubr.bf16.gmra.mrb[0].mxu0 %v303
        %v503 = vpop.f32.mrb[0].mxu0
        %v504 = vadd.f32 0.0, %v503
        %v505 = vpop.f32.mrb[0].mxu0
        %v506 = vadd.f32 0.0, %v505
        %v507 = vpop.f32.mrb[0].mxu0
        %v508 = vadd.f32 0.0, %v507
        %v509 = vpop.f32.mrb[0].mxu0
        %v510 = vadd.f32 0.0, %v509
        %511 = vmatprep.mubr.bf16.mxu0 0
        %512 = vmatmul.mubr.bf16.gmra.mrb[0].mxu0 %v304
        %v513 = vpop.f32.mrb[0].mxu0
        %v514 = vadd.f32 0.0, %v513
        %v515 = vpop.f32.mrb[0].mxu0
        %v516 = vadd.f32 0.0, %v515
        %v517 = vpop.f32.mrb[0].mxu0
        %v518 = vadd.f32 0.0, %v517
        %v519 = vpop.f32.mrb[0].mxu0
        %v520 = vadd.f32 0.0, %v519
        %521 = vmatprep.mubr.bf16.mxu0 0
        %522 = vmatmul.mubr.bf16.gmra.mrb[0].mxu0 %v305
        %v523 = vpop.f32.mrb[0].mxu0
        %v524 = vadd.f32 0.0, %v523
        %v525 = vpop.f32.mrb[0].mxu0
        %v526 = vadd.f32 0.0, %v525
        %v527 = vpop.f32.mrb[0].mxu0
        %v528 = vadd.f32 0.0, %v527
        %v529 = vpop.f32.mrb[0].mxu0
        %v530 = vadd.f32 0.0, %v529
        %531 = vmatprep.mubr.bf16.mxu0 0
        %532 = vmatmul.mubr.bf16.gmra.mrb[0].mxu0 %v306
        %v533 = vpop.f32.mrb[0].mxu0
        %v534 = vadd.f32 0.0, %v533
        %v535 = vpop.f32.mrb[0].mxu0
        %v536 = vadd.f32 0.0, %v535
        %v537 = vpop.f32.mrb[0].mxu0
        %v538 = vadd.f32 0.0, %v537
        %v539 = vpop.f32.mrb[0].mxu0
        %v540 = vadd.f32 0.0, %v539
        %541 = vmatprep.mubr.bf16.mxu0 0
        %542 = vmatmul.mubr.bf16.gmra.mrb[0].mxu0 %v307
        %v543 = vpop.f32.mrb[0].mxu0
        %v544 = vadd.f32 0.0, %v543
        %v545 = vpop.f32.mrb[0].mxu0
        %v546 = vadd.f32 0.0, %v545
        %v547 = vpop.f32.mrb[0].mxu0
        %v548 = vadd.f32 0.0, %v547
        %v549 = vpop.f32.mrb[0].mxu0
        %v550 = vadd.f32 0.0, %v549
        %551 = vmatprep.mubr.bf16.mxu0 0
        %552 = vmatmul.mubr.bf16.gmra.mrb[0].mxu0 %v308
        %v553 = vpop.f32.mrb[0].mxu0
        %v554 = vadd.f32 0.0, %v553
        %v555 = vpop.f32.mrb[0].mxu0
        %v556 = vadd.f32 0.0, %v555
        %v557 = vpop.f32.mrb[0].mxu0
        %v558 = vadd.f32 0.0, %v557
        %v559 = vpop.f32.mrb[0].mxu0
        %v560 = vadd.f32 0.0, %v559
        %561 = vmatprep.mubr.bf16.mxu0 0
        %562 = vmatmul.mubr.bf16.gmra.mrb[0].mxu0 %v309
        %v563 = vpop.f32.mrb[0].mxu0
        %v564 = vadd.f32 0.0, %v563
        %v565 = vpop.f32.mrb[0].mxu0
        %v566 = vadd.f32 0.0, %v565
        %v567 = vpop.f32.mrb[0].mxu0
        %v568 = vadd.f32 0.0, %v567
        %v569 = vpop.f32.mrb[0].mxu0
        %v570 = vadd.f32 0.0, %v569
        %571 = vmatprep.mubr.bf16.mxu0 0
        %572 = vmatmul.mubr.bf16.gmra.mrb[0].mxu0 %v310
        %v573 = vpop.f32.mrb[0].mxu0
        %v574 = vadd.f32 0.0, %v573
        %v575 = vpop.f32.mrb[0].mxu0
        %v576 = vadd.f32 0.0, %v575
        %v577 = vpop.f32.mrb[0].mxu0
        %v578 = vadd.f32 0.0, %v577
        %v579 = vpop.f32.mrb[0].mxu0
        %v580 = vadd.f32 0.0, %v579
        %581 = vmatprep.mubr.bf16.mxu0 0
        %582 = vmatmul.mubr.bf16.gmra.mrb[0].mxu0 %v311
        %v583 = vpop.f32.mrb[0].mxu0
        %v584 = vadd.f32 0.0, %v583
        %v585 = vpop.f32.mrb[0].mxu0
        %v586 = vadd.f32 0.0, %v585
        %v587 = vpop.f32.mrb[0].mxu0
        %v588 = vadd.f32 0.0, %v587
        %v589 = vpop.f32.mrb[0].mxu0
        %v590 = vadd.f32 0.0, %v589
        %591 = vmatprep.mubr.bf16.mxu0 0
        %592 = vmatmul.mubr.bf16.gmra.mrb[0].mxu0 %v312
        %v593 = vpop.f32.mrb[0].mxu0
        %v594 = vadd.f32 0.0, %v593
        %v595 = vpop.f32.mrb[0].mxu0
        %v596 = vadd.f32 0.0, %v595
        %v597 = vpop.f32.mrb[0].mxu0
        %v598 = vadd.f32 0.0, %v597
        %v599 = vpop.f32.mrb[0].mxu0
        %v600 = vadd.f32 0.0, %v599
        %601 = vdwg.mxu0
        %v602 = vsub.f32 0.0, %v446
        %v603 = vsub.f32 0.0, %v450
        %v604 = vsub.f32 0.0, %v456
        %v605 = vsub.f32 0.0, %v460
        %v606 = vsub.f32 0.0, %v466
        %v607 = vsub.f32 0.0, %v470
        %v608 = vsub.f32 0.0, %v476
        %v609 = vsub.f32 0.0, %v480
        %v610 = vsub.f32 0.0, %v486
        %v611 = vsub.f32 0.0, %v490
        %v612 = vsub.f32 0.0, %v496
        %v613 = vsub.f32 0.0, %v500
        %v614 = vsub.f32 0.0, %v506
        %v615 = vsub.f32 0.0, %v510
        %v616 = vsub.f32 0.0, %v516
        %v617 = vsub.f32 0.0, %v520
        %v618 = vsub.f32 0.0, %v526
        %v619 = vsub.f32 0.0, %v530
        %v620 = vsub.f32 0.0, %v536
        %v621 = vsub.f32 0.0, %v540
        %v622 = vsub.f32 0.0, %v546
        %v623 = vsub.f32 0.0, %v550
        %v624 = vsub.f32 0.0, %v556
        %v625 = vsub.f32 0.0, %v560
        %v626 = vsub.f32 0.0, %v566
        %v627 = vsub.f32 0.0, %v570
        %v628 = vsub.f32 0.0, %v576
        %v629 = vsub.f32 0.0, %v580
        %v630 = vsub.f32 0.0, %v586
        %v631 = vsub.f32 0.0, %v590
        %v632 = vsub.f32 0.0, %v596
        %v633 = vsub.f32 0.0, %v600
        %v634 = vmul.f32 %v602, 1.442695
        %v635 = vpow.pop %v634
        %v636 = vmul.f32 %v603, 1.442695
        %v637 = vpow.pop %v636
        %v638 = vmul.f32 %v604, 1.442695
        %v639 = vpow.pop %v638
        %v640 = vmul.f32 %v605, 1.442695
        %v641 = vpow.pop %v640
        %v642 = vmul.f32 %v606, 1.442695
        %v643 = vpow.pop %v642
        %v644 = vmul.f32 %v607, 1.442695
        %v645 = vpow.pop %v644
        %v646 = vmul.f32 %v608, 1.442695
        %v647 = vpow.pop %v646
        %v648 = vmul.f32 %v609, 1.442695
        %v649 = vpow.pop %v648
        %v650 = vmul.f32 %v610, 1.442695
        %v651 = vpow.pop %v650
        %v652 = vmul.f32 %v611, 1.442695
        %v653 = vpow.pop %v652
        %v654 = vmul.f32 %v612, 1.442695
        %v655 = vpow.pop %v654
        %v656 = vmul.f32 %v613, 1.442695
        %v657 = vpow.pop %v656
        %v658 = vmul.f32 %v614, 1.442695
        %v659 = vpow.pop %v658
        %v660 = vmul.f32 %v615, 1.442695
        %v661 = vpow.pop %v660
        %v662 = vmul.f32 %v616, 1.442695
        %v663 = vpow.pop %v662
        %v664 = vmul.f32 %v617, 1.442695
        %v665 = vpow.pop %v664
        %v666 = vmul.f32 %v618, 1.442695
        %v667 = vpow.pop %v666
        %v668 = vmul.f32 %v619, 1.442695
        %v669 = vpow.pop %v668
        %v670 = vmul.f32 %v620, 1.442695
        %v671 = vpow.pop %v670
        %v672 = vmul.f32 %v621, 1.442695
        %v673 = vpow.pop %v672
        %v674 = vmul.f32 %v622, 1.442695
        %v675 = vpow.pop %v674
        %v676 = vmul.f32 %v623, 1.442695
        %v677 = vpow.pop %v676
        %v678 = vmul.f32 %v624, 1.442695
        %v679 = vpow.pop %v678
        %v680 = vmul.f32 %v625, 1.442695
        %v681 = vpow.pop %v680
        %v682 = vmul.f32 %v626, 1.442695
        %v683 = vpow.pop %v682
        %v684 = vmul.f32 %v627, 1.442695
        %v685 = vpow.pop %v684
        %v686 = vmul.f32 %v628, 1.442695
        %v687 = vpow.pop %v686
        %v688 = vmul.f32 %v629, 1.442695
        %v689 = vpow.pop %v688
        %v690 = vmul.f32 %v630, 1.442695
        %v691 = vpow.pop %v690
        %v692 = vmul.f32 %v631, 1.442695
        %v693 = vpow.pop %v692
        %v694 = vmul.f32 %v632, 1.442695
        %v695 = vpow.pop %v694
        %v696 = vmul.f32 %v633, 1.442695
        %v697 = vpow.pop %v696
        %v698 = vadd.f32 %v635, 1.0
        %v699 = vadd.f32 %v637, 1.0
        %v700 = vadd.f32 %v639, 1.0
        %v701 = vadd.f32 %v641, 1.0
        %v702 = vadd.f32 %v643, 1.0
        %v703 = vadd.f32 %v645, 1.0
        %v704 = vadd.f32 %v647, 1.0
        %v705 = vadd.f32 %v649, 1.0
        %v706 = vadd.f32 %v651, 1.0
        %v707 = vadd.f32 %v653, 1.0
        %v708 = vadd.f32 %v655, 1.0
        %v709 = vadd.f32 %v657, 1.0
        %v710 = vadd.f32 %v659, 1.0
        %v711 = vadd.f32 %v661, 1.0
        %v712 = vadd.f32 %v663, 1.0
        %v713 = vadd.f32 %v665, 1.0
        %v714 = vadd.f32 %v667, 1.0
        %v715 = vadd.f32 %v669, 1.0
        %v716 = vadd.f32 %v671, 1.0
        %v717 = vadd.f32 %v673, 1.0
        %v718 = vadd.f32 %v675, 1.0
        %v719 = vadd.f32 %v677, 1.0
        %v720 = vadd.f32 %v679, 1.0
        %v721 = vadd.f32 %v681, 1.0
        %v722 = vadd.f32 %v683, 1.0
        %v723 = vadd.f32 %v685, 1.0
        %v724 = vadd.f32 %v687, 1.0
        %v725 = vadd.f32 %v689, 1.0
        %v726 = vadd.f32 %v691, 1.0
        %v727 = vadd.f32 %v693, 1.0
        %v728 = vadd.f32 %v695, 1.0
        %v729 = vadd.f32 %v697, 1.0
        %v730 = vrcp.pop %v698
        %v731 = vrcp.pop %v699
        %v732 = vrcp.pop %v700
        %v733 = vrcp.pop %v701
        %v734 = vrcp.pop %v702
        %v735 = vrcp.pop %v703
        %v736 = vrcp.pop %v704
        %v737 = vrcp.pop %v705
        %v738 = vrcp.pop %v706
        %v739 = vrcp.pop %v707
        %v740 = vrcp.pop %v708
        %v741 = vrcp.pop %v709
        %v742 = vrcp.pop %v710
        %v743 = vrcp.pop %v711
        %v744 = vrcp.pop %v712
        %v745 = vrcp.pop %v713
        %v746 = vrcp.pop %v714
        %v747 = vrcp.pop %v715
        %v748 = vrcp.pop %v716
        %v749 = vrcp.pop %v717
        %v750 = vrcp.pop %v718
        %v751 = vrcp.pop %v719
        %v752 = vrcp.pop %v720
        %v753 = vrcp.pop %v721
        %v754 = vrcp.pop %v722
        %v755 = vrcp.pop %v723
        %v756 = vrcp.pop %v724
        %v757 = vrcp.pop %v725
        %v758 = vrcp.pop %v726
        %v759 = vrcp.pop %v727
        %v760 = vrcp.pop %v728
        %v761 = vrcp.pop %v729
        %v762 = vld [vmem:[%s2] sm:$0x1]
        %v764 = vlaneseq
        %v765 = vshrl.u32 %v764, 7
        %v766 = vsub.s32 0, %v765
        %v767 = vrot.slane %v762, %v766
        %v769 = vadd.f32 %v444, %v767
        %v770 = vadd.f32 %v448, %v767
        %v771 = vadd.f32 %v454, %v767
        %v772 = vadd.f32 %v458, %v767
        %v773 = vadd.f32 %v464, %v767
        %v774 = vadd.f32 %v468, %v767
        %v775 = vadd.f32 %v474, %v767
        %v776 = vadd.f32 %v478, %v767
        %v777 = vadd.f32 %v484, %v767
        %v778 = vadd.f32 %v488, %v767
        %v779 = vadd.f32 %v494, %v767
        %v780 = vadd.f32 %v498, %v767
        %v781 = vadd.f32 %v504, %v767
        %v782 = vadd.f32 %v508, %v767
        %v783 = vadd.f32 %v514, %v767
        %v784 = vadd.f32 %v518, %v767
        %v785 = vadd.f32 %v524, %v767
        %v786 = vadd.f32 %v528, %v767
        %v787 = vadd.f32 %v534, %v767
        %v788 = vadd.f32 %v538, %v767
        %v789 = vadd.f32 %v544, %v767
        %v790 = vadd.f32 %v548, %v767
        %v791 = vadd.f32 %v554, %v767
        %v792 = vadd.f32 %v558, %v767
        %v793 = vadd.f32 %v564, %v767
        %v794 = vadd.f32 %v568, %v767
        %v795 = vadd.f32 %v574, %v767
        %v796 = vadd.f32 %v578, %v767
        %v797 = vadd.f32 %v584, %v767
        %v798 = vadd.f32 %v588, %v767
        %v799 = vadd.f32 %v594, %v767
        %v800 = vadd.f32 %v598, %v767
        %v801 = vmul.f32 %v265, %v769
        %v802 = vmul.f32 %v266, %v770
        %v803 = vmul.f32 %v267, %v771
        %v804 = vmul.f32 %v268, %v772
        %v805 = vmul.f32 %v269, %v773
        %v806 = vmul.f32 %v270, %v774
        %v807 = vmul.f32 %v271, %v775
        %v808 = vmul.f32 %v272, %v776
        %v809 = vmul.f32 %v273, %v777
        %v810 = vmul.f32 %v274, %v778
        %v811 = vmul.f32 %v275, %v779
        %v812 = vmul.f32 %v276, %v780
        %v813 = vmul.f32 %v277, %v781
        %v814 = vmul.f32 %v278, %v782
        %v815 = vmul.f32 %v279, %v783
        %v816 = vmul.f32 %v280, %v784
        %v817 = vmul.f32 %v281, %v785
        %v818 = vmul.f32 %v282, %v786
        %v819 = vmul.f32 %v283, %v787
        %v820 = vmul.f32 %v284, %v788
        %v821 = vmul.f32 %v285, %v789
        %v822 = vmul.f32 %v286, %v790
        %v823 = vmul.f32 %v287, %v791
        %v824 = vmul.f32 %v288, %v792
        %v825 = vmul.f32 %v289, %v793
        %v826 = vmul.f32 %v290, %v794
        %v827 = vmul.f32 %v291, %v795
        %v828 = vmul.f32 %v292, %v796
        %v829 = vmul.f32 %v293, %v797
        %v830 = vmul.f32 %v294, %v798
        %v831 = vmul.f32 %v295, %v799
        %v832 = vmul.f32 %v296, %v800
        %v833 = vmul.f32 %v801, %v730
        %v834 = vmul.f32 %v802, %v731
        %v835 = vmul.f32 %v803, %v732
        %v836 = vmul.f32 %v804, %v733
        %v837 = vmul.f32 %v805, %v734
        %v838 = vmul.f32 %v806, %v735
        %v839 = vmul.f32 %v807, %v736
        %v840 = vmul.f32 %v808, %v737
        %v841 = vmul.f32 %v809, %v738
        %v842 = vmul.f32 %v810, %v739
        %v843 = vmul.f32 %v811, %v740
        %v844 = vmul.f32 %v812, %v741
        %v845 = vmul.f32 %v813, %v742
        %v846 = vmul.f32 %v814, %v743
        %v847 = vmul.f32 %v815, %v744
        %v848 = vmul.f32 %v816, %v745
        %v849 = vmul.f32 %v817, %v746
        %v850 = vmul.f32 %v818, %v747
        %v851 = vmul.f32 %v819, %v748
        %v852 = vmul.f32 %v820, %v749
        %v853 = vmul.f32 %v821, %v750
        %v854 = vmul.f32 %v822, %v751
        %v855 = vmul.f32 %v823, %v752
        %v856 = vmul.f32 %v824, %v753
        %v857 = vmul.f32 %v825, %v754
        %v858 = vmul.f32 %v826, %v755
        %v859 = vmul.f32 %v827, %v756
        %v860 = vmul.f32 %v828, %v757
        %v861 = vmul.f32 %v829, %v758
        %v862 = vmul.f32 %v830, %v759
        %v863 = vmul.f32 %v831, %v760
        %v864 = vmul.f32 %v832, %v761
        %v865 = vadd.f32 %v833, %v265
        %v866 = vadd.f32 %v834, %v266
        %v867 = vadd.f32 %v835, %v267
        %v868 = vadd.f32 %v836, %v268
        %v869 = vadd.f32 %v837, %v269
        %v870 = vadd.f32 %v838, %v270
        %v871 = vadd.f32 %v839, %v271
        %v872 = vadd.f32 %v840, %v272
        %v873 = vadd.f32 %v841, %v273
        %v874 = vadd.f32 %v842, %v274
        %v875 = vadd.f32 %v843, %v275
        %v876 = vadd.f32 %v844, %v276
        %v877 = vadd.f32 %v845, %v277
        %v878 = vadd.f32 %v846, %v278
        %v879 = vadd.f32 %v847, %v279
        %v880 = vadd.f32 %v848, %v280
        %v881 = vadd.f32 %v849, %v281
        %v882 = vadd.f32 %v850, %v282
        %v883 = vadd.f32 %v851, %v283
        %v884 = vadd.f32 %v852, %v284
        %v885 = vadd.f32 %v853, %v285
        %v886 = vadd.f32 %v854, %v286
        %v887 = vadd.f32 %v855, %v287
        %v888 = vadd.f32 %v856, %v288
        %v889 = vadd.f32 %v857, %v289
        %v890 = vadd.f32 %v858, %v290
        %v891 = vadd.f32 %v859, %v291
        %v892 = vadd.f32 %v860, %v292
        %v893 = vadd.f32 %v861, %v293
        %v894 = vadd.f32 %v862, %v294
        %v895 = vadd.f32 %v863, %v295
        %v896 = vadd.f32 %v864, %v296
        %v897 = vpack.c.bf16 %v866, %v865
        %v898 = vpack.c.bf16 %v868, %v867
        %v899 = vpack.c.bf16 %v870, %v869
        %v900 = vpack.c.bf16 %v872, %v871
        %v901 = vpack.c.bf16 %v874, %v873
        %v902 = vpack.c.bf16 %v876, %v875
        %v903 = vpack.c.bf16 %v878, %v877
        %v904 = vpack.c.bf16 %v880, %v879
        %v905 = vpack.c.bf16 %v882, %v881
        %v906 = vpack.c.bf16 %v884, %v883
        %v907 = vpack.c.bf16 %v886, %v885
        %v908 = vpack.c.bf16 %v888, %v887
        %v909 = vpack.c.bf16 %v890, %v889
        %v910 = vpack.c.bf16 %v892, %v891
        %v911 = vpack.c.bf16 %v894, %v893
        %v912 = vpack.c.bf16 %v896, %v895
        %s913 = scalar_lea.vmem [#allocation5], 128
        %v914 = vld [vmem:[%s913] sm:$0xff]
        %v915 = vld [vmem:[%s913 + $0x8] sm:$0xff]
        %v916 = vld [vmem:[%s913 + $0x10] sm:$0xff]
        %v917 = vld [vmem:[%s913 + $0x18] sm:$0xff]
        %v918 = vld [vmem:[%s913 + $0x20] sm:$0xff]
        %v919 = vld [vmem:[%s913 + $0x28] sm:$0xff]
        %v920 = vld [vmem:[%s913 + $0x30] sm:$0xff]
        %v921 = vld [vmem:[%s913 + $0x38] sm:$0xff]
        %v922 = vld [vmem:[%s913 + $0x40] sm:$0xff]
        %v923 = vld [vmem:[%s913 + $0x48] sm:$0xff]
        %v924 = vld [vmem:[%s913 + $0x50] sm:$0xff]
        %v925 = vld [vmem:[%s913 + $0x58] sm:$0xff]
        %v926 = vld [vmem:[%s913 + $0x60] sm:$0xff]
        %v927 = vld [vmem:[%s913 + $0x68] sm:$0xff]
        %v928 = vld [vmem:[%s913 + $0x70] sm:$0xff]
        %v929 = vld [vmem:[%s913 + $0x78] sm:$0xff]
        %v946 = vunpack.c.l.b16 %v914
        %v947 = vunpack.c.h.b16 %v914
        %v948 = vunpack.c.l.b16 %v915
        %v949 = vunpack.c.h.b16 %v915
        %v950 = vunpack.c.l.b16 %v916
        %v951 = vunpack.c.h.b16 %v916
        %v952 = vunpack.c.l.b16 %v917
        %v953 = vunpack.c.h.b16 %v917
        %v954 = vunpack.c.l.b16 %v918
        %v955 = vunpack.c.h.b16 %v918
        %v956 = vunpack.c.l.b16 %v919
        %v957 = vunpack.c.h.b16 %v919
        %v958 = vunpack.c.l.b16 %v920
        %v959 = vunpack.c.h.b16 %v920
        %v960 = vunpack.c.l.b16 %v921
        %v961 = vunpack.c.h.b16 %v921
        %v962 = vunpack.c.l.b16 %v922
        %v963 = vunpack.c.h.b16 %v922
        %v964 = vunpack.c.l.b16 %v923
        %v965 = vunpack.c.h.b16 %v923
        %v966 = vunpack.c.l.b16 %v924
        %v967 = vunpack.c.h.b16 %v924
        %v968 = vunpack.c.l.b16 %v925
        %v969 = vunpack.c.h.b16 %v925
        %v970 = vunpack.c.l.b16 %v926
        %v971 = vunpack.c.h.b16 %v926
        %v972 = vunpack.c.l.b16 %v927
        %v973 = vunpack.c.h.b16 %v927
        %v974 = vunpack.c.l.b16 %v928
        %v975 = vunpack.c.h.b16 %v928
        %v976 = vunpack.c.l.b16 %v929
        %v977 = vunpack.c.h.b16 %v929
        %v978 = vpack.c.b16 %v948, %v946
        %v979 = vpack.c.b16 %v949, %v947
        %v980 = vpack.c.b16 %v952, %v950
        %v981 = vpack.c.b16 %v953, %v951
        %v982 = vpack.c.b16 %v956, %v954
        %v983 = vpack.c.b16 %v957, %v955
        %v984 = vpack.c.b16 %v960, %v958
        %v985 = vpack.c.b16 %v961, %v959
        %v986 = vpack.c.b16 %v964, %v962
        %v987 = vpack.c.b16 %v965, %v963
        %v988 = vpack.c.b16 %v968, %v966
        %v989 = vpack.c.b16 %v969, %v967
        %v990 = vpack.c.b16 %v972, %v970
        %v991 = vpack.c.b16 %v973, %v971
        %v992 = vpack.c.b16 %v976, %v974
        %v993 = vpack.c.b16 %v977, %v975
        %1010 = vmatprep.subr.bf16.mxu0 %v979
        %1011 = vmatpush1.bf16.msra.mxu0 %v978
        %1012 = vmatprep.subr.bf16.mxu0 %v981
        %1013 = vmatpush1.bf16.msra.mxu0 %v980
        %1014 = vmatprep.subr.bf16.mxu0 %v983
        %1015 = vmatpush1.bf16.msra.mxu0 %v982
        %1016 = vmatprep.subr.bf16.mxu0 %v985
        %1017 = vmatpush1.bf16.msra.mxu0 %v984
        %1018 = vmatprep.subr.bf16.mxu0 %v987
        %1019 = vmatpush1.bf16.msra.mxu0 %v986
        %1020 = vmatprep.subr.bf16.mxu0 %v989
        %1021 = vmatpush1.bf16.msra.mxu0 %v988
        %1022 = vmatprep.subr.bf16.mxu0 %v991
        %1023 = vmatpush1.bf16.msra.mxu0 %v990
        %1024 = vmatprep.subr.bf16.mxu0 %v993
        %1025 = vmatpush1.bf16.msra.mxu0 %v992
        %1026 = vmatprep.subr.bf16.mxu0 0
        %1027 = vmatpush1.bf16.msra.mxu0 0
        %1028 = vmatprep.subr.bf16.mxu0 0
        %1029 = vmatpush1.bf16.msra.mxu0 0
        %1030 = vmatprep.subr.bf16.mxu0 0
        %1031 = vmatpush1.bf16.msra.mxu0 0
        %1032 = vmatprep.subr.bf16.mxu0 0
        %1033 = vmatpush1.bf16.msra.mxu0 0
        %1034 = vmatprep.subr.bf16.mxu0 0
        %1035 = vmatpush1.bf16.msra.mxu0 0
        %1036 = vmatprep.subr.bf16.mxu0 0
        %1037 = vmatpush1.bf16.msra.mxu0 0
        %1038 = vmatprep.subr.bf16.mxu0 0
        %1039 = vmatpush1.bf16.msra.mxu0 0
        %1040 = vmatprep.subr.bf16.mxu0 0
        %1041 = vmatpush1.bf16.msra.mxu0 0
        %1042 = vmatprep.mubr.bf16.mxu0 0
        %1043 = vmatmul.mubr.bf16.gmra.mrb[0].mxu0 %v897
        %v1044 = vpop.f32.mrb[0].mxu0
        %v1045 = vadd.f32 0.0, %v1044
        %v1046 = vpop.f32.mrb[0].mxu0
        %v1047 = vadd.f32 0.0, %v1046
        %v1048 = vpop.f32.mrb[0].mxu0
        %v1049 = vadd.f32 0.0, %v1048
        %v1050 = vpop.f32.mrb[0].mxu0
        %v1051 = vadd.f32 0.0, %v1050
        %1052 = vmatprep.mubr.bf16.mxu0 0
        %1053 = vmatmul.mubr.bf16.gmra.mrb[0].mxu0 %v898
        %v1054 = vpop.f32.mrb[0].mxu0
        %v1055 = vadd.f32 0.0, %v1054
        %v1056 = vpop.f32.mrb[0].mxu0
        %v1057 = vadd.f32 0.0, %v1056
        %v1058 = vpop.f32.mrb[0].mxu0
        %v1059 = vadd.f32 0.0, %v1058
        %v1060 = vpop.f32.mrb[0].mxu0
        %v1061 = vadd.f32 0.0, %v1060
        %1062 = vmatprep.mubr.bf16.mxu0 0
        %1063 = vmatmul.mubr.bf16.gmra.mrb[0].mxu0 %v899
        %v1064 = vpop.f32.mrb[0].mxu0
        %v1065 = vadd.f32 0.0, %v1064
        %v1066 = vpop.f32.mrb[0].mxu0
        %v1067 = vadd.f32 0.0, %v1066
        %v1068 = vpop.f32.mrb[0].mxu0
        %v1069 = vadd.f32 0.0, %v1068
        %v1070 = vpop.f32.mrb[0].mxu0
        %v1071 = vadd.f32 0.0, %v1070
        %1072 = vmatprep.mubr.bf16.mxu0 0
        %1073 = vmatmul.mubr.bf16.gmra.mrb[0].mxu0 %v900
        %v1074 = vpop.f32.mrb[0].mxu0
        %v1075 = vadd.f32 0.0, %v1074
        %v1076 = vpop.f32.mrb[0].mxu0
        %v1077 = vadd.f32 0.0, %v1076
        %v1078 = vpop.f32.mrb[0].mxu0
        %v1079 = vadd.f32 0.0, %v1078
        %v1080 = vpop.f32.mrb[0].mxu0
        %v1081 = vadd.f32 0.0, %v1080
        %1082 = vmatprep.mubr.bf16.mxu0 0
        %1083 = vmatmul.mubr.bf16.gmra.mrb[0].mxu0 %v901
        %v1084 = vpop.f32.mrb[0].mxu0
        %v1085 = vadd.f32 0.0, %v1084
        %v1086 = vpop.f32.mrb[0].mxu0
        %v1087 = vadd.f32 0.0, %v1086
        %v1088 = vpop.f32.mrb[0].mxu0
        %v1089 = vadd.f32 0.0, %v1088
        %v1090 = vpop.f32.mrb[0].mxu0
        %v1091 = vadd.f32 0.0, %v1090
        %1092 = vmatprep.mubr.bf16.mxu0 0
        %1093 = vmatmul.mubr.bf16.gmra.mrb[0].mxu0 %v902
        %v1094 = vpop.f32.mrb[0].mxu0
        %v1095 = vadd.f32 0.0, %v1094
        %v1096 = vpop.f32.mrb[0].mxu0
        %v1097 = vadd.f32 0.0, %v1096
        %v1098 = vpop.f32.mrb[0].mxu0
        %v1099 = vadd.f32 0.0, %v1098
        %v1100 = vpop.f32.mrb[0].mxu0
        %v1101 = vadd.f32 0.0, %v1100
        %1102 = vmatprep.mubr.bf16.mxu0 0
        %1103 = vmatmul.mubr.bf16.gmra.mrb[0].mxu0 %v903
        %v1104 = vpop.f32.mrb[0].mxu0
        %v1105 = vadd.f32 0.0, %v1104
        %v1106 = vpop.f32.mrb[0].mxu0
        %v1107 = vadd.f32 0.0, %v1106
        %v1108 = vpop.f32.mrb[0].mxu0
        %v1109 = vadd.f32 0.0, %v1108
        %v1110 = vpop.f32.mrb[0].mxu0
        %v1111 = vadd.f32 0.0, %v1110
        %1112 = vmatprep.mubr.bf16.mxu0 0
        %1113 = vmatmul.mubr.bf16.gmra.mrb[0].mxu0 %v904
        %v1114 = vpop.f32.mrb[0].mxu0
        %v1115 = vadd.f32 0.0, %v1114
        %v1116 = vpop.f32.mrb[0].mxu0
        %v1117 = vadd.f32 0.0, %v1116
        %v1118 = vpop.f32.mrb[0].mxu0
        %v1119 = vadd.f32 0.0, %v1118
        %v1120 = vpop.f32.mrb[0].mxu0
        %v1121 = vadd.f32 0.0, %v1120
        %1122 = vmatprep.mubr.bf16.mxu0 0
        %1123 = vmatmul.mubr.bf16.gmra.mrb[0].mxu0 %v905
        %v1124 = vpop.f32.mrb[0].mxu0
        %v1125 = vadd.f32 0.0, %v1124
        %v1126 = vpop.f32.mrb[0].mxu0
        %v1127 = vadd.f32 0.0, %v1126
        %v1128 = vpop.f32.mrb[0].mxu0
        %v1129 = vadd.f32 0.0, %v1128
        %v1130 = vpop.f32.mrb[0].mxu0
        %v1131 = vadd.f32 0.0, %v1130
        %1132 = vmatprep.mubr.bf16.mxu0 0
        %1133 = vmatmul.mubr.bf16.gmra.mrb[0].mxu0 %v906
        %v1134 = vpop.f32.mrb[0].mxu0
        %v1135 = vadd.f32 0.0, %v1134
        %v1136 = vpop.f32.mrb[0].mxu0
        %v1137 = vadd.f32 0.0, %v1136
        %v1138 = vpop.f32.mrb[0].mxu0
        %v1139 = vadd.f32 0.0, %v1138
        %v1140 = vpop.f32.mrb[0].mxu0
        %v1141 = vadd.f32 0.0, %v1140
        %1142 = vmatprep.mubr.bf16.mxu0 0
        %1143 = vmatmul.mubr.bf16.gmra.mrb[0].mxu0 %v907
        %v1144 = vpop.f32.mrb[0].mxu0
        %v1145 = vadd.f32 0.0, %v1144
        %v1146 = vpop.f32.mrb[0].mxu0
        %v1147 = vadd.f32 0.0, %v1146
        %v1148 = vpop.f32.mrb[0].mxu0
        %v1149 = vadd.f32 0.0, %v1148
        %v1150 = vpop.f32.mrb[0].mxu0
        %v1151 = vadd.f32 0.0, %v1150
        %1152 = vmatprep.mubr.bf16.mxu0 0
        %1153 = vmatmul.mubr.bf16.gmra.mrb[0].mxu0 %v908
        %v1154 = vpop.f32.mrb[0].mxu0
        %v1155 = vadd.f32 0.0, %v1154
        %v1156 = vpop.f32.mrb[0].mxu0
        %v1157 = vadd.f32 0.0, %v1156
        %v1158 = vpop.f32.mrb[0].mxu0
        %v1159 = vadd.f32 0.0, %v1158
        %v1160 = vpop.f32.mrb[0].mxu0
        %v1161 = vadd.f32 0.0, %v1160
        %1162 = vmatprep.mubr.bf16.mxu0 0
        %1163 = vmatmul.mubr.bf16.gmra.mrb[0].mxu0 %v909
        %v1164 = vpop.f32.mrb[0].mxu0
        %v1165 = vadd.f32 0.0, %v1164
        %v1166 = vpop.f32.mrb[0].mxu0
        %v1167 = vadd.f32 0.0, %v1166
        %v1168 = vpop.f32.mrb[0].mxu0
        %v1169 = vadd.f32 0.0, %v1168
        %v1170 = vpop.f32.mrb[0].mxu0
        %v1171 = vadd.f32 0.0, %v1170
        %1172 = vmatprep.mubr.bf16.mxu0 0
        %1173 = vmatmul.mubr.bf16.gmra.mrb[0].mxu0 %v910
        %v1174 = vpop.f32.mrb[0].mxu0
        %v1175 = vadd.f32 0.0, %v1174
        %v1176 = vpop.f32.mrb[0].mxu0
        %v1177 = vadd.f32 0.0, %v1176
        %v1178 = vpop.f32.mrb[0].mxu0
        %v1179 = vadd.f32 0.0, %v1178
        %v1180 = vpop.f32.mrb[0].mxu0
        %v1181 = vadd.f32 0.0, %v1180
        %1182 = vmatprep.mubr.bf16.mxu0 0
        %1183 = vmatmul.mubr.bf16.gmra.mrb[0].mxu0 %v911
        %v1184 = vpop.f32.mrb[0].mxu0
        %v1185 = vadd.f32 0.0, %v1184
        %v1186 = vpop.f32.mrb[0].mxu0
        %v1187 = vadd.f32 0.0, %v1186
        %v1188 = vpop.f32.mrb[0].mxu0
        %v1189 = vadd.f32 0.0, %v1188
        %v1190 = vpop.f32.mrb[0].mxu0
        %v1191 = vadd.f32 0.0, %v1190
        %1192 = vmatprep.mubr.bf16.mxu0 0
        %1193 = vmatmul.mubr.bf16.gmra.mrb[0].mxu0 %v912
        %v1194 = vpop.f32.mrb[0].mxu0
        %v1195 = vadd.f32 0.0, %v1194
        %v1196 = vpop.f32.mrb[0].mxu0
        %v1197 = vadd.f32 0.0, %v1196
        %v1198 = vpop.f32.mrb[0].mxu0
        %v1199 = vadd.f32 0.0, %v1198
        %v1200 = vpop.f32.mrb[0].mxu0
        %v1201 = vadd.f32 0.0, %v1200
        %1202 = vdwg.mxu0
        %v1203 = vsub.f32 0.0, %v1047
        %v1204 = vsub.f32 0.0, %v1051
        %v1205 = vsub.f32 0.0, %v1057
        %v1206 = vsub.f32 0.0, %v1061
        %v1207 = vsub.f32 0.0, %v1067
        %v1208 = vsub.f32 0.0, %v1071
        %v1209 = vsub.f32 0.0, %v1077
        %v1210 = vsub.f32 0.0, %v1081
        %v1211 = vsub.f32 0.0, %v1087
        %v1212 = vsub.f32 0.0, %v1091
        %v1213 = vsub.f32 0.0, %v1097
        %v1214 = vsub.f32 0.0, %v1101
        %v1215 = vsub.f32 0.0, %v1107
        %v1216 = vsub.f32 0.0, %v1111
        %v1217 = vsub.f32 0.0, %v1117
        %v1218 = vsub.f32 0.0, %v1121
        %v1219 = vsub.f32 0.0, %v1127
        %v1220 = vsub.f32 0.0, %v1131
        %v1221 = vsub.f32 0.0, %v1137
        %v1222 = vsub.f32 0.0, %v1141
        %v1223 = vsub.f32 0.0, %v1147
        %v1224 = vsub.f32 0.0, %v1151
        %v1225 = vsub.f32 0.0, %v1157
        %v1226 = vsub.f32 0.0, %v1161
        %v1227 = vsub.f32 0.0, %v1167
        %v1228 = vsub.f32 0.0, %v1171
        %v1229 = vsub.f32 0.0, %v1177
        %v1230 = vsub.f32 0.0, %v1181
        %v1231 = vsub.f32 0.0, %v1187
        %v1232 = vsub.f32 0.0, %v1191
        %v1233 = vsub.f32 0.0, %v1197
        %v1234 = vsub.f32 0.0, %v1201
        %v1235 = vmul.f32 %v1203, 1.442695
        %v1236 = vpow.pop %v1235
        %v1237 = vmul.f32 %v1204, 1.442695
        %v1238 = vpow.pop %v1237
        %v1239 = vmul.f32 %v1205, 1.442695
        %v1240 = vpow.pop %v1239
        %v1241 = vmul.f32 %v1206, 1.442695
        %v1242 = vpow.pop %v1241
        %v1243 = vmul.f32 %v1207, 1.442695
        %v1244 = vpow.pop %v1243
        %v1245 = vmul.f32 %v1208, 1.442695
        %v1246 = vpow.pop %v1245
        %v1247 = vmul.f32 %v1209, 1.442695
        %v1248 = vpow.pop %v1247
        %v1249 = vmul.f32 %v1210, 1.442695
        %v1250 = vpow.pop %v1249
        %v1251 = vmul.f32 %v1211, 1.442695
        %v1252 = vpow.pop %v1251
        %v1253 = vmul.f32 %v1212, 1.442695
        %v1254 = vpow.pop %v1253
        %v1255 = vmul.f32 %v1213, 1.442695
        %v1256 = vpow.pop %v1255
        %v1257 = vmul.f32 %v1214, 1.442695
        %v1258 = vpow.pop %v1257
        %v1259 = vmul.f32 %v1215, 1.442695
        %v1260 = vpow.pop %v1259
        %v1261 = vmul.f32 %v1216, 1.442695
        %v1262 = vpow.pop %v1261
        %v1263 = vmul.f32 %v1217, 1.442695
        %v1264 = vpow.pop %v1263
        %v1265 = vmul.f32 %v1218, 1.442695
        %v1266 = vpow.pop %v1265
        %v1267 = vmul.f32 %v1219, 1.442695
        %v1268 = vpow.pop %v1267
        %v1269 = vmul.f32 %v1220, 1.442695
        %v1270 = vpow.pop %v1269
        %v1271 = vmul.f32 %v1221, 1.442695
        %v1272 = vpow.pop %v1271
        %v1273 = vmul.f32 %v1222, 1.442695
        %v1274 = vpow.pop %v1273
        %v1275 = vmul.f32 %v1223, 1.442695
        %v1276 = vpow.pop %v1275
        %v1277 = vmul.f32 %v1224, 1.442695
        %v1278 = vpow.pop %v1277
        %v1279 = vmul.f32 %v1225, 1.442695
        %v1280 = vpow.pop %v1279
        %v1281 = vmul.f32 %v1226, 1.442695
        %v1282 = vpow.pop %v1281
        %v1283 = vmul.f32 %v1227, 1.442695
        %v1284 = vpow.pop %v1283
        %v1285 = vmul.f32 %v1228, 1.442695
        %v1286 = vpow.pop %v1285
        %v1287 = vmul.f32 %v1229, 1.442695
        %v1288 = vpow.pop %v1287
        %v1289 = vmul.f32 %v1230, 1.442695
        %v1290 = vpow.pop %v1289
        %v1291 = vmul.f32 %v1231, 1.442695
        %v1292 = vpow.pop %v1291
        %v1293 = vmul.f32 %v1232, 1.442695
        %v1294 = vpow.pop %v1293
        %v1295 = vmul.f32 %v1233, 1.442695
        %v1296 = vpow.pop %v1295
        %v1297 = vmul.f32 %v1234, 1.442695
        %v1298 = vpow.pop %v1297
        %v1299 = vadd.f32 %v1236, 1.0
        %v1300 = vadd.f32 %v1238, 1.0
        %v1301 = vadd.f32 %v1240, 1.0
        %v1302 = vadd.f32 %v1242, 1.0
        %v1303 = vadd.f32 %v1244, 1.0
        %v1304 = vadd.f32 %v1246, 1.0
        %v1305 = vadd.f32 %v1248, 1.0
        %v1306 = vadd.f32 %v1250, 1.0
        %v1307 = vadd.f32 %v1252, 1.0
        %v1308 = vadd.f32 %v1254, 1.0
        %v1309 = vadd.f32 %v1256, 1.0
        %v1310 = vadd.f32 %v1258, 1.0
        %v1311 = vadd.f32 %v1260, 1.0
        %v1312 = vadd.f32 %v1262, 1.0
        %v1313 = vadd.f32 %v1264, 1.0
        %v1314 = vadd.f32 %v1266, 1.0
        %v1315 = vadd.f32 %v1268, 1.0
        %v1316 = vadd.f32 %v1270, 1.0
        %v1317 = vadd.f32 %v1272, 1.0
        %v1318 = vadd.f32 %v1274, 1.0
        %v1319 = vadd.f32 %v1276, 1.0
        %v1320 = vadd.f32 %v1278, 1.0
        %v1321 = vadd.f32 %v1280, 1.0
        %v1322 = vadd.f32 %v1282, 1.0
        %v1323 = vadd.f32 %v1284, 1.0
        %v1324 = vadd.f32 %v1286, 1.0
        %v1325 = vadd.f32 %v1288, 1.0
        %v1326 = vadd.f32 %v1290, 1.0
        %v1327 = vadd.f32 %v1292, 1.0
        %v1328 = vadd.f32 %v1294, 1.0
        %v1329 = vadd.f32 %v1296, 1.0
        %v1330 = vadd.f32 %v1298, 1.0
        %v1331 = vrcp.pop %v1299
        %v1332 = vrcp.pop %v1300
        %v1333 = vrcp.pop %v1301
        %v1334 = vrcp.pop %v1302
        %v1335 = vrcp.pop %v1303
        %v1336 = vrcp.pop %v1304
        %v1337 = vrcp.pop %v1305
        %v1338 = vrcp.pop %v1306
        %v1339 = vrcp.pop %v1307
        %v1340 = vrcp.pop %v1308
        %v1341 = vrcp.pop %v1309
        %v1342 = vrcp.pop %v1310
        %v1343 = vrcp.pop %v1311
        %v1344 = vrcp.pop %v1312
        %v1345 = vrcp.pop %v1313
        %v1346 = vrcp.pop %v1314
        %v1347 = vrcp.pop %v1315
        %v1348 = vrcp.pop %v1316
        %v1349 = vrcp.pop %v1317
        %v1350 = vrcp.pop %v1318
        %v1351 = vrcp.pop %v1319
        %v1352 = vrcp.pop %v1320
        %v1353 = vrcp.pop %v1321
        %v1354 = vrcp.pop %v1322
        %v1355 = vrcp.pop %v1323
        %v1356 = vrcp.pop %v1324
        %v1357 = vrcp.pop %v1325
        %v1358 = vrcp.pop %v1326
        %v1359 = vrcp.pop %v1327
        %v1360 = vrcp.pop %v1328
        %v1361 = vrcp.pop %v1329
        %v1362 = vrcp.pop %v1330
        %s1363 = scalar_lea.vmem %s2, 1
        %v1364 = vld [vmem:[%s1363] sm:$0x1]
        %v1366 = vlaneseq
        %v1367 = vshrl.u32 %v1366, 7
        %v1368 = vsub.s32 0, %v1367
        %v1369 = vrot.slane %v1364, %v1368
        %v1371 = vadd.f32 %v1045, %v1369
        %v1372 = vadd.f32 %v1049, %v1369
        %v1373 = vadd.f32 %v1055, %v1369
        %v1374 = vadd.f32 %v1059, %v1369
        %v1375 = vadd.f32 %v1065, %v1369
        %v1376 = vadd.f32 %v1069, %v1369
        %v1377 = vadd.f32 %v1075, %v1369
        %v1378 = vadd.f32 %v1079, %v1369
        %v1379 = vadd.f32 %v1085, %v1369
        %v1380 = vadd.f32 %v1089, %v1369
        %v1381 = vadd.f32 %v1095, %v1369
        %v1382 = vadd.f32 %v1099, %v1369
        %v1383 = vadd.f32 %v1105, %v1369
        %v1384 = vadd.f32 %v1109, %v1369
        %v1385 = vadd.f32 %v1115, %v1369
        %v1386 = vadd.f32 %v1119, %v1369
        %v1387 = vadd.f32 %v1125, %v1369
        %v1388 = vadd.f32 %v1129, %v1369
        %v1389 = vadd.f32 %v1135, %v1369
        %v1390 = vadd.f32 %v1139, %v1369
        %v1391 = vadd.f32 %v1145, %v1369
        %v1392 = vadd.f32 %v1149, %v1369
        %v1393 = vadd.f32 %v1155, %v1369
        %v1394 = vadd.f32 %v1159, %v1369
        %v1395 = vadd.f32 %v1165, %v1369
        %v1396 = vadd.f32 %v1169, %v1369
        %v1397 = vadd.f32 %v1175, %v1369
        %v1398 = vadd.f32 %v1179, %v1369
        %v1399 = vadd.f32 %v1185, %v1369
        %v1400 = vadd.f32 %v1189, %v1369
        %v1401 = vadd.f32 %v1195, %v1369
        %v1402 = vadd.f32 %v1199, %v1369
        %v1403 = vmul.f32 %v265, %v1371
        %v1404 = vmul.f32 %v266, %v1372
        %v1405 = vmul.f32 %v267, %v1373
        %v1406 = vmul.f32 %v268, %v1374
        %v1407 = vmul.f32 %v269, %v1375
        %v1408 = vmul.f32 %v270, %v1376
        %v1409 = vmul.f32 %v271, %v1377
        %v1410 = vmul.f32 %v272, %v1378
        %v1411 = vmul.f32 %v273, %v1379
        %v1412 = vmul.f32 %v274, %v1380
        %v1413 = vmul.f32 %v275, %v1381
        %v1414 = vmul.f32 %v276, %v1382
        %v1415 = vmul.f32 %v277, %v1383
        %v1416 = vmul.f32 %v278, %v1384
        %v1417 = vmul.f32 %v279, %v1385
        %v1418 = vmul.f32 %v280, %v1386
        %v1419 = vmul.f32 %v281, %v1387
        %v1420 = vmul.f32 %v282, %v1388
        %v1421 = vmul.f32 %v283, %v1389
        %v1422 = vmul.f32 %v284, %v1390
        %v1423 = vmul.f32 %v285, %v1391
        %v1424 = vmul.f32 %v286, %v1392
        %v1425 = vmul.f32 %v287, %v1393
        %v1426 = vmul.f32 %v288, %v1394
        %v1427 = vmul.f32 %v289, %v1395
        %v1428 = vmul.f32 %v290, %v1396
        %v1429 = vmul.f32 %v291, %v1397
        %v1430 = vmul.f32 %v292, %v1398
        %v1431 = vmul.f32 %v293, %v1399
        %v1432 = vmul.f32 %v294, %v1400
        %v1433 = vmul.f32 %v295, %v1401
        %v1434 = vmul.f32 %v296, %v1402
        %v1435 = vmul.f32 %v1403, %v1331
        %v1436 = vmul.f32 %v1404, %v1332
        %v1437 = vmul.f32 %v1405, %v1333
        %v1438 = vmul.f32 %v1406, %v1334
        %v1439 = vmul.f32 %v1407, %v1335
        %v1440 = vmul.f32 %v1408, %v1336
        %v1441 = vmul.f32 %v1409, %v1337
        %v1442 = vmul.f32 %v1410, %v1338
        %v1443 = vmul.f32 %v1411, %v1339
        %v1444 = vmul.f32 %v1412, %v1340
        %v1445 = vmul.f32 %v1413, %v1341
        %v1446 = vmul.f32 %v1414, %v1342
        %v1447 = vmul.f32 %v1415, %v1343
        %v1448 = vmul.f32 %v1416, %v1344
        %v1449 = vmul.f32 %v1417, %v1345
        %v1450 = vmul.f32 %v1418, %v1346
        %v1451 = vmul.f32 %v1419, %v1347
        %v1452 = vmul.f32 %v1420, %v1348
        %v1453 = vmul.f32 %v1421, %v1349
        %v1454 = vmul.f32 %v1422, %v1350
        %v1455 = vmul.f32 %v1423, %v1351
        %v1456 = vmul.f32 %v1424, %v1352
        %v1457 = vmul.f32 %v1425, %v1353
        %v1458 = vmul.f32 %v1426, %v1354
        %v1459 = vmul.f32 %v1427, %v1355
        %v1460 = vmul.f32 %v1428, %v1356
        %v1461 = vmul.f32 %v1429, %v1357
        %v1462 = vmul.f32 %v1430, %v1358
        %v1463 = vmul.f32 %v1431, %v1359
        %v1464 = vmul.f32 %v1432, %v1360
        %v1465 = vmul.f32 %v1433, %v1361
        %v1466 = vmul.f32 %v1434, %v1362
        %v1467 = vadd.f32 %v1435, %v865
        %v1468 = vadd.f32 %v1436, %v866
        %v1469 = vadd.f32 %v1437, %v867
        %v1470 = vadd.f32 %v1438, %v868
        %v1471 = vadd.f32 %v1439, %v869
        %v1472 = vadd.f32 %v1440, %v870
        %v1473 = vadd.f32 %v1441, %v871
        %v1474 = vadd.f32 %v1442, %v872
        %v1475 = vadd.f32 %v1443, %v873
        %v1476 = vadd.f32 %v1444, %v874
        %v1477 = vadd.f32 %v1445, %v875
        %v1478 = vadd.f32 %v1446, %v876
        %v1479 = vadd.f32 %v1447, %v877
        %v1480 = vadd.f32 %v1448, %v878
        %v1481 = vadd.f32 %v1449, %v879
        %v1482 = vadd.f32 %v1450, %v880
        %v1483 = vadd.f32 %v1451, %v881
        %v1484 = vadd.f32 %v1452, %v882
        %v1485 = vadd.f32 %v1453, %v883
        %v1486 = vadd.f32 %v1454, %v884
        %v1487 = vadd.f32 %v1455, %v885
        %v1488 = vadd.f32 %v1456, %v886
        %v1489 = vadd.f32 %v1457, %v887
        %v1490 = vadd.f32 %v1458, %v888
        %v1491 = vadd.f32 %v1459, %v889
        %v1492 = vadd.f32 %v1460, %v890
        %v1493 = vadd.f32 %v1461, %v891
        %v1494 = vadd.f32 %v1462, %v892
        %v1495 = vadd.f32 %v1463, %v893
        %v1496 = vadd.f32 %v1464, %v894
        %v1497 = vadd.f32 %v1465, %v895
        %v1498 = vadd.f32 %v1466, %v896
        %v1499 = vpack.c.bf16 %v1468, %v1467
        %v1500 = vpack.c.bf16 %v1470, %v1469
        %v1501 = vpack.c.bf16 %v1472, %v1471
        %v1502 = vpack.c.bf16 %v1474, %v1473
        %v1503 = vpack.c.bf16 %v1476, %v1475
        %v1504 = vpack.c.bf16 %v1478, %v1477
        %v1505 = vpack.c.bf16 %v1480, %v1479
        %v1506 = vpack.c.bf16 %v1482, %v1481
        %v1507 = vpack.c.bf16 %v1484, %v1483
        %v1508 = vpack.c.bf16 %v1486, %v1485
        %v1509 = vpack.c.bf16 %v1488, %v1487
        %v1510 = vpack.c.bf16 %v1490, %v1489
        %v1511 = vpack.c.bf16 %v1492, %v1491
        %v1512 = vpack.c.bf16 %v1494, %v1493
        %v1513 = vpack.c.bf16 %v1496, %v1495
        %v1514 = vpack.c.bf16 %v1498, %v1497
        %s1515 = scalar_lea.vmem [#allocation5], 256
        %v1516 = vld [vmem:[%s1515] sm:$0xff]
        %v1517 = vld [vmem:[%s1515 + $0x8] sm:$0xff]
        %v1518 = vld [vmem:[%s1515 + $0x10] sm:$0xff]
        %v1519 = vld [vmem:[%s1515 + $0x18] sm:$0xff]
        %v1520 = vld [vmem:[%s1515 + $0x20] sm:$0xff]
        %v1521 = vld [vmem:[%s1515 + $0x28] sm:$0xff]
        %v1522 = vld [vmem:[%s1515 + $0x30] sm:$0xff]
        %v1523 = vld [vmem:[%s1515 + $0x38] sm:$0xff]
        %v1524 = vld [vmem:[%s1515 + $0x40] sm:$0xff]
        %v1525 = vld [vmem:[%s1515 + $0x48] sm:$0xff]
        %v1526 = vld [vmem:[%s1515 + $0x50] sm:$0xff]
        %v1527 = vld [vmem:[%s1515 + $0x58] sm:$0xff]
        %v1528 = vld [vmem:[%s1515 + $0x60] sm:$0xff]
        %v1529 = vld [vmem:[%s1515 + $0x68] sm:$0xff]
        %v1530 = vld [vmem:[%s1515 + $0x70] sm:$0xff]
        %v1531 = vld [vmem:[%s1515 + $0x78] sm:$0xff]
        %v1548 = vunpack.c.l.b16 %v1516
        %v1549 = vunpack.c.h.b16 %v1516
        %v1550 = vunpack.c.l.b16 %v1517
        %v1551 = vunpack.c.h.b16 %v1517
        %v1552 = vunpack.c.l.b16 %v1518
        %v1553 = vunpack.c.h.b16 %v1518
        %v1554 = vunpack.c.l.b16 %v1519
        %v1555 = vunpack.c.h.b16 %v1519
        %v1556 = vunpack.c.l.b16 %v1520
        %v1557 = vunpack.c.h.b16 %v1520
        %v1558 = vunpack.c.l.b16 %v1521
        %v1559 = vunpack.c.h.b16 %v1521
        %v1560 = vunpack.c.l.b16 %v1522
        %v1561 = vunpack.c.h.b16 %v1522
        %v1562 = vunpack.c.l.b16 %v1523
        %v1563 = vunpack.c.h.b16 %v1523
        %v1564 = vunpack.c.l.b16 %v1524
        %v1565 = vunpack.c.h.b16 %v1524
        %v1566 = vunpack.c.l.b16 %v1525
        %v1567 = vunpack.c.h.b16 %v1525
        %v1568 = vunpack.c.l.b16 %v1526
        %v1569 = vunpack.c.h.b16 %v1526
        %v1570 = vunpack.c.l.b16 %v1527
        %v1571 = vunpack.c.h.b16 %v1527
        %v1572 = vunpack.c.l.b16 %v1528
        %v1573 = vunpack.c.h.b16 %v1528
        %v1574 = vunpack.c.l.b16 %v1529
        %v1575 = vunpack.c.h.b16 %v1529
        %v1576 = vunpack.c.l.b16 %v1530
        %v1577 = vunpack.c.h.b16 %v1530
        %v1578 = vunpack.c.l.b16 %v1531
        %v1579 = vunpack.c.h.b16 %v1531
        %v1580 = vpack.c.b16 %v1550, %v1548
        %v1581 = vpack.c.b16 %v1551, %v1549
        %v1582 = vpack.c.b16 %v1554, %v1552
        %v1583 = vpack.c.b16 %v1555, %v1553
        %v1584 = vpack.c.b16 %v1558, %v1556
        %v1585 = vpack.c.b16 %v1559, %v1557
        %v1586 = vpack.c.b16 %v1562, %v1560
        %v1587 = vpack.c.b16 %v1563, %v1561
        %v1588 = vpack.c.b16 %v1566, %v1564
        %v1589 = vpack.c.b16 %v1567, %v1565
        %v1590 = vpack.c.b16 %v1570, %v1568
        %v1591 = vpack.c.b16 %v1571, %v1569
        %v1592 = vpack.c.b16 %v1574, %v1572
        %v1593 = vpack.c.b16 %v1575, %v1573
        %v1594 = vpack.c.b16 %v1578, %v1576
        %v1595 = vpack.c.b16 %v1579, %v1577
        %1612 = vmatprep.subr.bf16.mxu0 %v1581
        %1613 = vmatpush1.bf16.msra.mxu0 %v1580
        %1614 = vmatprep.subr.bf16.mxu0 %v1583
        %1615 = vmatpush1.bf16.msra.mxu0 %v1582
        %1616 = vmatprep.subr.bf16.mxu0 %v1585
        %1617 = vmatpush1.bf16.msra.mxu0 %v1584
        %1618 = vmatprep.subr.bf16.mxu0 %v1587
        %1619 = vmatpush1.bf16.msra.mxu0 %v1586
        %1620 = vmatprep.subr.bf16.mxu0 %v1589
        %1621 = vmatpush1.bf16.msra.mxu0 %v1588
        %1622 = vmatprep.subr.bf16.mxu0 %v1591
        %1623 = vmatpush1.bf16.msra.mxu0 %v1590
        %1624 = vmatprep.subr.bf16.mxu0 %v1593
        %1625 = vmatpush1.bf16.msra.mxu0 %v1592
        %1626 = vmatprep.subr.bf16.mxu0 %v1595
        %1627 = vmatpush1.bf16.msra.mxu0 %v1594
        %1628 = vmatprep.subr.bf16.mxu0 0
        %1629 = vmatpush1.bf16.msra.mxu0 0
        %1630 = vmatprep.subr.bf16.mxu0 0
        %1631 = vmatpush1.bf16.msra.mxu0 0
        %1632 = vmatprep.subr.bf16.mxu0 0
        %1633 = vmatpush1.bf16.msra.mxu0 0
        %1634 = vmatprep.subr.bf16.mxu0 0
        %1635 = vmatpush1.bf16.msra.mxu0 0
        %1636 = vmatprep.subr.bf16.mxu0 0
        %1637 = vmatpush1.bf16.msra.mxu0 0
        %1638 = vmatprep.subr.bf16.mxu0 0
        %1639 = vmatpush1.bf16.msra.mxu0 0
        %1640 = vmatprep.subr.bf16.mxu0 0
        %1641 = vmatpush1.bf16.msra.mxu0 0
        %1642 = vmatprep.subr.bf16.mxu0 0
        %1643 = vmatpush1.bf16.msra.mxu0 0
        %1644 = vmatprep.mubr.bf16.mxu0 0
        %1645 = vmatmul.mubr.bf16.gmra.mrb[0].mxu0 %v1499
        %v1646 = vpop.f32.mrb[0].mxu0
        %v1647 = vadd.f32 0.0, %v1646
        %v1648 = vpop.f32.mrb[0].mxu0
        %v1649 = vadd.f32 0.0, %v1648
        %v1650 = vpop.f32.mrb[0].mxu0
        %v1651 = vadd.f32 0.0, %v1650
        %v1652 = vpop.f32.mrb[0].mxu0
        %v1653 = vadd.f32 0.0, %v1652
        %1654 = vmatprep.mubr.bf16.mxu0 0
        %1655 = vmatmul.mubr.bf16.gmra.mrb[0].mxu0 %v1500
        %v1656 = vpop.f32.mrb[0].mxu0
        %v1657 = vadd.f32 0.0, %v1656
        %v1658 = vpop.f32.mrb[0].mxu0
        %v1659 = vadd.f32 0.0, %v1658
        %v1660 = vpop.f32.mrb[0].mxu0
        %v1661 = vadd.f32 0.0, %v1660
        %v1662 = vpop.f32.mrb[0].mxu0
        %v1663 = vadd.f32 0.0, %v1662
        %1664 = vmatprep.mubr.bf16.mxu0 0
        %1665 = vmatmul.mubr.bf16.gmra.mrb[0].mxu0 %v1501
        %v1666 = vpop.f32.mrb[0].mxu0
        %v1667 = vadd.f32 0.0, %v1666
        %v1668 = vpop.f32.mrb[0].mxu0
        %v1669 = vadd.f32 0.0, %v1668
        %v1670 = vpop.f32.mrb[0].mxu0
        %v1671 = vadd.f32 0.0, %v1670
        %v1672 = vpop.f32.mrb[0].mxu0
        %v1673 = vadd.f32 0.0, %v1672
        %1674 = vmatprep.mubr.bf16.mxu0 0
        %1675 = vmatmul.mubr.bf16.gmra.mrb[0].mxu0 %v1502
        %v1676 = vpop.f32.mrb[0].mxu0
        %v1677 = vadd.f32 0.0, %v1676
        %v1678 = vpop.f32.mrb[0].mxu0
        %v1679 = vadd.f32 0.0, %v1678
        %v1680 = vpop.f32.mrb[0].mxu0
        %v1681 = vadd.f32 0.0, %v1680
        %v1682 = vpop.f32.mrb[0].mxu0
        %v1683 = vadd.f32 0.0, %v1682
        %1684 = vmatprep.mubr.bf16.mxu0 0
        %1685 = vmatmul.mubr.bf16.gmra.mrb[0].mxu0 %v1503
        %v1686 = vpop.f32.mrb[0].mxu0
        %v1687 = vadd.f32 0.0, %v1686
        %v1688 = vpop.f32.mrb[0].mxu0
        %v1689 = vadd.f32 0.0, %v1688
        %v1690 = vpop.f32.mrb[0].mxu0
        %v1691 = vadd.f32 0.0, %v1690
        %v1692 = vpop.f32.mrb[0].mxu0
        %v1693 = vadd.f32 0.0, %v1692
        %1694 = vmatprep.mubr.bf16.mxu0 0
        %1695 = vmatmul.mubr.bf16.gmra.mrb[0].mxu0 %v1504
        %v1696 = vpop.f32.mrb[0].mxu0
        %v1697 = vadd.f32 0.0, %v1696
        %v1698 = vpop.f32.mrb[0].mxu0
        %v1699 = vadd.f32 0.0, %v1698
        %v1700 = vpop.f32.mrb[0].mxu0
        %v1701 = vadd.f32 0.0, %v1700
        %v1702 = vpop.f32.mrb[0].mxu0
        %v1703 = vadd.f32 0.0, %v1702
        %1704 = vmatprep.mubr.bf16.mxu0 0
        %1705 = vmatmul.mubr.bf16.gmra.mrb[0].mxu0 %v1505
        %v1706 = vpop.f32.mrb[0].mxu0
        %v1707 = vadd.f32 0.0, %v1706
        %v1708 = vpop.f32.mrb[0].mxu0
        %v1709 = vadd.f32 0.0, %v1708
        %v1710 = vpop.f32.mrb[0].mxu0
        %v1711 = vadd.f32 0.0, %v1710
        %v1712 = vpop.f32.mrb[0].mxu0
        %v1713 = vadd.f32 0.0, %v1712
        %1714 = vmatprep.mubr.bf16.mxu0 0
        %1715 = vmatmul.mubr.bf16.gmra.mrb[0].mxu0 %v1506
        %v1716 = vpop.f32.mrb[0].mxu0
        %v1717 = vadd.f32 0.0, %v1716
        %v1718 = vpop.f32.mrb[0].mxu0
        %v1719 = vadd.f32 0.0, %v1718
        %v1720 = vpop.f32.mrb[0].mxu0
        %v1721 = vadd.f32 0.0, %v1720
        %v1722 = vpop.f32.mrb[0].mxu0
        %v1723 = vadd.f32 0.0, %v1722
        %1724 = vmatprep.mubr.bf16.mxu0 0
        %1725 = vmatmul.mubr.bf16.gmra.mrb[0].mxu0 %v1507
        %v1726 = vpop.f32.mrb[0].mxu0
        %v1727 = vadd.f32 0.0, %v1726
        %v1728 = vpop.f32.mrb[0].mxu0
        %v1729 = vadd.f32 0.0, %v1728
        %v1730 = vpop.f32.mrb[0].mxu0
        %v1731 = vadd.f32 0.0, %v1730
        %v1732 = vpop.f32.mrb[0].mxu0
        %v1733 = vadd.f32 0.0, %v1732
        %1734 = vmatprep.mubr.bf16.mxu0 0
        %1735 = vmatmul.mubr.bf16.gmra.mrb[0].mxu0 %v1508
        %v1736 = vpop.f32.mrb[0].mxu0
        %v1737 = vadd.f32 0.0, %v1736
        %v1738 = vpop.f32.mrb[0].mxu0
        %v1739 = vadd.f32 0.0, %v1738
        %v1740 = vpop.f32.mrb[0].mxu0
        %v1741 = vadd.f32 0.0, %v1740
        %v1742 = vpop.f32.mrb[0].mxu0
        %v1743 = vadd.f32 0.0, %v1742
        %1744 = vmatprep.mubr.bf16.mxu0 0
        %1745 = vmatmul.mubr.bf16.gmra.mrb[0].mxu0 %v1509
        %v1746 = vpop.f32.mrb[0].mxu0
        %v1747 = vadd.f32 0.0, %v1746
        %v1748 = vpop.f32.mrb[0].mxu0
        %v1749 = vadd.f32 0.0, %v1748
        %v1750 = vpop.f32.mrb[0].mxu0
        %v1751 = vadd.f32 0.0, %v1750
        %v1752 = vpop.f32.mrb[0].mxu0
        %v1753 = vadd.f32 0.0, %v1752
        %1754 = vmatprep.mubr.bf16.mxu0 0
        %1755 = vmatmul.mubr.bf16.gmra.mrb[0].mxu0 %v1510
        %v1756 = vpop.f32.mrb[0].mxu0
        %v1757 = vadd.f32 0.0, %v1756
        %v1758 = vpop.f32.mrb[0].mxu0
        %v1759 = vadd.f32 0.0, %v1758
        %v1760 = vpop.f32.mrb[0].mxu0
        %v1761 = vadd.f32 0.0, %v1760
        %v1762 = vpop.f32.mrb[0].mxu0
        %v1763 = vadd.f32 0.0, %v1762
        %1764 = vmatprep.mubr.bf16.mxu0 0
        %1765 = vmatmul.mubr.bf16.gmra.mrb[0].mxu0 %v1511
        %v1766 = vpop.f32.mrb[0].mxu0
        %v1767 = vadd.f32 0.0, %v1766
        %v1768 = vpop.f32.mrb[0].mxu0
        %v1769 = vadd.f32 0.0, %v1768
        %v1770 = vpop.f32.mrb[0].mxu0
        %v1771 = vadd.f32 0.0, %v1770
        %v1772 = vpop.f32.mrb[0].mxu0
        %v1773 = vadd.f32 0.0, %v1772
        %1774 = vmatprep.mubr.bf16.mxu0 0
        %1775 = vmatmul.mubr.bf16.gmra.mrb[0].mxu0 %v1512
        %v1776 = vpop.f32.mrb[0].mxu0
        %v1777 = vadd.f32 0.0, %v1776
        %v1778 = vpop.f32.mrb[0].mxu0
        %v1779 = vadd.f32 0.0, %v1778
        %v1780 = vpop.f32.mrb[0].mxu0
        %v1781 = vadd.f32 0.0, %v1780
        %v1782 = vpop.f32.mrb[0].mxu0
        %v1783 = vadd.f32 0.0, %v1782
        %1784 = vmatprep.mubr.bf16.mxu0 0
        %1785 = vmatmul.mubr.bf16.gmra.mrb[0].mxu0 %v1513
        %v1786 = vpop.f32.mrb[0].mxu0
        %v1787 = vadd.f32 0.0, %v1786
        %v1788 = vpop.f32.mrb[0].mxu0
        %v1789 = vadd.f32 0.0, %v1788
        %v1790 = vpop.f32.mrb[0].mxu0
        %v1791 = vadd.f32 0.0, %v1790
        %v1792 = vpop.f32.mrb[0].mxu0
        %v1793 = vadd.f32 0.0, %v1792
        %1794 = vmatprep.mubr.bf16.mxu0 0
        %1795 = vmatmul.mubr.bf16.gmra.mrb[0].mxu0 %v1514
        %v1796 = vpop.f32.mrb[0].mxu0
        %v1797 = vadd.f32 0.0, %v1796
        %v1798 = vpop.f32.mrb[0].mxu0
        %v1799 = vadd.f32 0.0, %v1798
        %v1800 = vpop.f32.mrb[0].mxu0
        %v1801 = vadd.f32 0.0, %v1800
        %v1802 = vpop.f32.mrb[0].mxu0
        %v1803 = vadd.f32 0.0, %v1802
        %1804 = vdwg.mxu0
        %v1805 = vsub.f32 0.0, %v1649
        %v1806 = vsub.f32 0.0, %v1653
        %v1807 = vsub.f32 0.0, %v1659
        %v1808 = vsub.f32 0.0, %v1663
        %v1809 = vsub.f32 0.0, %v1669
        %v1810 = vsub.f32 0.0, %v1673
        %v1811 = vsub.f32 0.0, %v1679
        %v1812 = vsub.f32 0.0, %v1683
        %v1813 = vsub.f32 0.0, %v1689
        %v1814 = vsub.f32 0.0, %v1693
        %v1815 = vsub.f32 0.0, %v1699
        %v1816 = vsub.f32 0.0, %v1703
        %v1817 = vsub.f32 0.0, %v1709
        %v1818 = vsub.f32 0.0, %v1713
        %v1819 = vsub.f32 0.0, %v1719
        %v1820 = vsub.f32 0.0, %v1723
        %v1821 = vsub.f32 0.0, %v1729
        %v1822 = vsub.f32 0.0, %v1733
        %v1823 = vsub.f32 0.0, %v1739
        %v1824 = vsub.f32 0.0, %v1743
        %v1825 = vsub.f32 0.0, %v1749
        %v1826 = vsub.f32 0.0, %v1753
        %v1827 = vsub.f32 0.0, %v1759
        %v1828 = vsub.f32 0.0, %v1763
        %v1829 = vsub.f32 0.0, %v1769
        %v1830 = vsub.f32 0.0, %v1773
        %v1831 = vsub.f32 0.0, %v1779
        %v1832 = vsub.f32 0.0, %v1783
        %v1833 = vsub.f32 0.0, %v1789
        %v1834 = vsub.f32 0.0, %v1793
        %v1835 = vsub.f32 0.0, %v1799
        %v1836 = vsub.f32 0.0, %v1803
        %v1837 = vmul.f32 %v1805, 1.442695
        %v1838 = vpow.pop %v1837
        %v1839 = vmul.f32 %v1806, 1.442695
        %v1840 = vpow.pop %v1839
        %v1841 = vmul.f32 %v1807, 1.442695
        %v1842 = vpow.pop %v1841
        %v1843 = vmul.f32 %v1808, 1.442695
        %v1844 = vpow.pop %v1843
        %v1845 = vmul.f32 %v1809, 1.442695
        %v1846 = vpow.pop %v1845
        %v1847 = vmul.f32 %v1810, 1.442695
        %v1848 = vpow.pop %v1847
        %v1849 = vmul.f32 %v1811, 1.442695
        %v1850 = vpow.pop %v1849
        %v1851 = vmul.f32 %v1812, 1.442695
        %v1852 = vpow.pop %v1851
        %v1853 = vmul.f32 %v1813, 1.442695
        %v1854 = vpow.pop %v1853
        %v1855 = vmul.f32 %v1814, 1.442695
        %v1856 = vpow.pop %v1855
        %v1857 = vmul.f32 %v1815, 1.442695
        %v1858 = vpow.pop %v1857
        %v1859 = vmul.f32 %v1816, 1.442695
        %v1860 = vpow.pop %v1859
        %v1861 = vmul.f32 %v1817, 1.442695
        %v1862 = vpow.pop %v1861
        %v1863 = vmul.f32 %v1818, 1.442695
        %v1864 = vpow.pop %v1863
        %v1865 = vmul.f32 %v1819, 1.442695
        %v1866 = vpow.pop %v1865
        %v1867 = vmul.f32 %v1820, 1.442695
        %v1868 = vpow.pop %v1867
        %v1869 = vmul.f32 %v1821, 1.442695
        %v1870 = vpow.pop %v1869
        %v1871 = vmul.f32 %v1822, 1.442695
        %v1872 = vpow.pop %v1871
        %v1873 = vmul.f32 %v1823, 1.442695
        %v1874 = vpow.pop %v1873
        %v1875 = vmul.f32 %v1824, 1.442695
        %v1876 = vpow.pop %v1875
        %v1877 = vmul.f32 %v1825, 1.442695
        %v1878 = vpow.pop %v1877
        %v1879 = vmul.f32 %v1826, 1.442695
        %v1880 = vpow.pop %v1879
        %v1881 = vmul.f32 %v1827, 1.442695
        %v1882 = vpow.pop %v1881
        %v1883 = vmul.f32 %v1828, 1.442695
        %v1884 = vpow.pop %v1883
        %v1885 = vmul.f32 %v1829, 1.442695
        %v1886 = vpow.pop %v1885
        %v1887 = vmul.f32 %v1830, 1.442695
        %v1888 = vpow.pop %v1887
        %v1889 = vmul.f32 %v1831, 1.442695
        %v1890 = vpow.pop %v1889
        %v1891 = vmul.f32 %v1832, 1.442695
        %v1892 = vpow.pop %v1891
        %v1893 = vmul.f32 %v1833, 1.442695
        %v1894 = vpow.pop %v1893
        %v1895 = vmul.f32 %v1834, 1.442695
        %v1896 = vpow.pop %v1895
        %v1897 = vmul.f32 %v1835, 1.442695
        %v1898 = vpow.pop %v1897
        %v1899 = vmul.f32 %v1836, 1.442695
        %v1900 = vpow.pop %v1899
        %v1901 = vadd.f32 %v1838, 1.0
        %v1902 = vadd.f32 %v1840, 1.0
        %v1903 = vadd.f32 %v1842, 1.0
        %v1904 = vadd.f32 %v1844, 1.0
        %v1905 = vadd.f32 %v1846, 1.0
        %v1906 = vadd.f32 %v1848, 1.0
        %v1907 = vadd.f32 %v1850, 1.0
        %v1908 = vadd.f32 %v1852, 1.0
        %v1909 = vadd.f32 %v1854, 1.0
        %v1910 = vadd.f32 %v1856, 1.0
        %v1911 = vadd.f32 %v1858, 1.0
        %v1912 = vadd.f32 %v1860, 1.0
        %v1913 = vadd.f32 %v1862, 1.0
        %v1914 = vadd.f32 %v1864, 1.0
        %v1915 = vadd.f32 %v1866, 1.0
        %v1916 = vadd.f32 %v1868, 1.0
        %v1917 = vadd.f32 %v1870, 1.0
        %v1918 = vadd.f32 %v1872, 1.0
        %v1919 = vadd.f32 %v1874, 1.0
        %v1920 = vadd.f32 %v1876, 1.0
        %v1921 = vadd.f32 %v1878, 1.0
        %v1922 = vadd.f32 %v1880, 1.0
        %v1923 = vadd.f32 %v1882, 1.0
        %v1924 = vadd.f32 %v1884, 1.0
        %v1925 = vadd.f32 %v1886, 1.0
        %v1926 = vadd.f32 %v1888, 1.0
        %v1927 = vadd.f32 %v1890, 1.0
        %v1928 = vadd.f32 %v1892, 1.0
        %v1929 = vadd.f32 %v1894, 1.0
        %v1930 = vadd.f32 %v1896, 1.0
        %v1931 = vadd.f32 %v1898, 1.0
        %v1932 = vadd.f32 %v1900, 1.0
        %v1933 = vrcp.pop %v1901
        %v1934 = vrcp.pop %v1902
        %v1935 = vrcp.pop %v1903
        %v1936 = vrcp.pop %v1904
        %v1937 = vrcp.pop %v1905
        %v1938 = vrcp.pop %v1906
        %v1939 = vrcp.pop %v1907
        %v1940 = vrcp.pop %v1908
        %v1941 = vrcp.pop %v1909
        %v1942 = vrcp.pop %v1910
        %v1943 = vrcp.pop %v1911
        %v1944 = vrcp.pop %v1912
        %v1945 = vrcp.pop %v1913
        %v1946 = vrcp.pop %v1914
        %v1947 = vrcp.pop %v1915
        %v1948 = vrcp.pop %v1916
        %v1949 = vrcp.pop %v1917
        %v1950 = vrcp.pop %v1918
        %v1951 = vrcp.pop %v1919
        %v1952 = vrcp.pop %v1920
        %v1953 = vrcp.pop %v1921
        %v1954 = vrcp.pop %v1922
        %v1955 = vrcp.pop %v1923
        %v1956 = vrcp.pop %v1924
        %v1957 = vrcp.pop %v1925
        %v1958 = vrcp.pop %v1926
        %v1959 = vrcp.pop %v1927
        %v1960 = vrcp.pop %v1928
        %v1961 = vrcp.pop %v1929
        %v1962 = vrcp.pop %v1930
        %v1963 = vrcp.pop %v1931
        %v1964 = vrcp.pop %v1932
        %s1965 = scalar_lea.vmem %s2, 2
        %v1966 = vld [vmem:[%s1965] sm:$0x1]
        %v1968 = vlaneseq
        %v1969 = vshrl.u32 %v1968, 7
        %v1970 = vsub.s32 0, %v1969
        %v1971 = vrot.slane %v1966, %v1970
        %v1973 = vadd.f32 %v1647, %v1971
        %v1974 = vadd.f32 %v1651, %v1971
        %v1975 = vadd.f32 %v1657, %v1971
        %v1976 = vadd.f32 %v1661, %v1971
        %v1977 = vadd.f32 %v1667, %v1971
        %v1978 = vadd.f32 %v1671, %v1971
        %v1979 = vadd.f32 %v1677, %v1971
        %v1980 = vadd.f32 %v1681, %v1971
        %v1981 = vadd.f32 %v1687, %v1971
        %v1982 = vadd.f32 %v1691, %v1971
        %v1983 = vadd.f32 %v1697, %v1971
        %v1984 = vadd.f32 %v1701, %v1971
        %v1985 = vadd.f32 %v1707, %v1971
        %v1986 = vadd.f32 %v1711, %v1971
        %v1987 = vadd.f32 %v1717, %v1971
        %v1988 = vadd.f32 %v1721, %v1971
        %v1989 = vadd.f32 %v1727, %v1971
        %v1990 = vadd.f32 %v1731, %v1971
        %v1991 = vadd.f32 %v1737, %v1971
        %v1992 = vadd.f32 %v1741, %v1971
        %v1993 = vadd.f32 %v1747, %v1971
        %v1994 = vadd.f32 %v1751, %v1971
        %v1995 = vadd.f32 %v1757, %v1971
        %v1996 = vadd.f32 %v1761, %v1971
        %v1997 = vadd.f32 %v1767, %v1971
        %v1998 = vadd.f32 %v1771, %v1971
        %v1999 = vadd.f32 %v1777, %v1971
        %v2000 = vadd.f32 %v1781, %v1971
        %v2001 = vadd.f32 %v1787, %v1971
        %v2002 = vadd.f32 %v1791, %v1971
        %v2003 = vadd.f32 %v1797, %v1971
        %v2004 = vadd.f32 %v1801, %v1971
        %v2005 = vmul.f32 %v265, %v1973
        %v2006 = vmul.f32 %v266, %v1974
        %v2007 = vmul.f32 %v267, %v1975
        %v2008 = vmul.f32 %v268, %v1976
        %v2009 = vmul.f32 %v269, %v1977
        %v2010 = vmul.f32 %v270, %v1978
        %v2011 = vmul.f32 %v271, %v1979
        %v2012 = vmul.f32 %v272, %v1980
        %v2013 = vmul.f32 %v273, %v1981
        %v2014 = vmul.f32 %v274, %v1982
        %v2015 = vmul.f32 %v275, %v1983
        %v2016 = vmul.f32 %v276, %v1984
        %v2017 = vmul.f32 %v277, %v1985
        %v2018 = vmul.f32 %v278, %v1986
        %v2019 = vmul.f32 %v279, %v1987
        %v2020 = vmul.f32 %v280, %v1988
        %v2021 = vmul.f32 %v281, %v1989
        %v2022 = vmul.f32 %v282, %v1990
        %v2023 = vmul.f32 %v283, %v1991
        %v2024 = vmul.f32 %v284, %v1992
        %v2025 = vmul.f32 %v285, %v1993
        %v2026 = vmul.f32 %v286, %v1994
        %v2027 = vmul.f32 %v287, %v1995
        %v2028 = vmul.f32 %v288, %v1996
        %v2029 = vmul.f32 %v289, %v1997
        %v2030 = vmul.f32 %v290, %v1998
        %v2031 = vmul.f32 %v291, %v1999
        %v2032 = vmul.f32 %v292, %v2000
        %v2033 = vmul.f32 %v293, %v2001
        %v2034 = vmul.f32 %v294, %v2002
        %v2035 = vmul.f32 %v295, %v2003
        %v2036 = vmul.f32 %v296, %v2004
        %v2037 = vmul.f32 %v2005, %v1933
        %v2038 = vmul.f32 %v2006, %v1934
        %v2039 = vmul.f32 %v2007, %v1935
        %v2040 = vmul.f32 %v2008, %v1936
        %v2041 = vmul.f32 %v2009, %v1937
        %v2042 = vmul.f32 %v2010, %v1938
        %v2043 = vmul.f32 %v2011, %v1939
        %v2044 = vmul.f32 %v2012, %v1940
        %v2045 = vmul.f32 %v2013, %v1941
        %v2046 = vmul.f32 %v2014, %v1942
        %v2047 = vmul.f32 %v2015, %v1943
        %v2048 = vmul.f32 %v2016, %v1944
        %v2049 = vmul.f32 %v2017, %v1945
        %v2050 = vmul.f32 %v2018, %v1946
        %v2051 = vmul.f32 %v2019, %v1947
        %v2052 = vmul.f32 %v2020, %v1948
        %v2053 = vmul.f32 %v2021, %v1949
        %v2054 = vmul.f32 %v2022, %v1950
        %v2055 = vmul.f32 %v2023, %v1951
        %v2056 = vmul.f32 %v2024, %v1952
        %v2057 = vmul.f32 %v2025, %v1953
        %v2058 = vmul.f32 %v2026, %v1954
        %v2059 = vmul.f32 %v2027, %v1955
        %v2060 = vmul.f32 %v2028, %v1956
        %v2061 = vmul.f32 %v2029, %v1957
        %v2062 = vmul.f32 %v2030, %v1958
        %v2063 = vmul.f32 %v2031, %v1959
        %v2064 = vmul.f32 %v2032, %v1960
        %v2065 = vmul.f32 %v2033, %v1961
        %v2066 = vmul.f32 %v2034, %v1962
        %v2067 = vmul.f32 %v2035, %v1963
        %v2068 = vmul.f32 %v2036, %v1964
        %v2069 = vadd.f32 %v2037, %v1467
        %v2070 = vadd.f32 %v2038, %v1468
        %v2071 = vadd.f32 %v2039, %v1469
        %v2072 = vadd.f32 %v2040, %v1470
        %v2073 = vadd.f32 %v2041, %v1471
        %v2074 = vadd.f32 %v2042, %v1472
        %v2075 = vadd.f32 %v2043, %v1473
        %v2076 = vadd.f32 %v2044, %v1474
        %v2077 = vadd.f32 %v2045, %v1475
        %v2078 = vadd.f32 %v2046, %v1476
        %v2079 = vadd.f32 %v2047, %v1477
        %v2080 = vadd.f32 %v2048, %v1478
        %v2081 = vadd.f32 %v2049, %v1479
        %v2082 = vadd.f32 %v2050, %v1480
        %v2083 = vadd.f32 %v2051, %v1481
        %v2084 = vadd.f32 %v2052, %v1482
        %v2085 = vadd.f32 %v2053, %v1483
        %v2086 = vadd.f32 %v2054, %v1484
        %v2087 = vadd.f32 %v2055, %v1485
        %v2088 = vadd.f32 %v2056, %v1486
        %v2089 = vadd.f32 %v2057, %v1487
        %v2090 = vadd.f32 %v2058, %v1488
        %v2091 = vadd.f32 %v2059, %v1489
        %v2092 = vadd.f32 %v2060, %v1490
        %v2093 = vadd.f32 %v2061, %v1491
        %v2094 = vadd.f32 %v2062, %v1492
        %v2095 = vadd.f32 %v2063, %v1493
        %v2096 = vadd.f32 %v2064, %v1494
        %v2097 = vadd.f32 %v2065, %v1495
        %v2098 = vadd.f32 %v2066, %v1496
        %v2099 = vadd.f32 %v2067, %v1497
        %v2100 = vadd.f32 %v2068, %v1498
        %v2101 = vpack.c.bf16 %v2070, %v2069
        %v2102 = vpack.c.bf16 %v2072, %v2071
        %v2103 = vpack.c.bf16 %v2074, %v2073
        %v2104 = vpack.c.bf16 %v2076, %v2075
        %v2105 = vpack.c.bf16 %v2078, %v2077
        %v2106 = vpack.c.bf16 %v2080, %v2079
        %v2107 = vpack.c.bf16 %v2082, %v2081
        %v2108 = vpack.c.bf16 %v2084, %v2083
        %v2109 = vpack.c.bf16 %v2086, %v2085
        %v2110 = vpack.c.bf16 %v2088, %v2087
        %v2111 = vpack.c.bf16 %v2090, %v2089
        %v2112 = vpack.c.bf16 %v2092, %v2091
        %v2113 = vpack.c.bf16 %v2094, %v2093
        %v2114 = vpack.c.bf16 %v2096, %v2095
        %v2115 = vpack.c.bf16 %v2098, %v2097
        %v2116 = vpack.c.bf16 %v2100, %v2099
        %v2117 = vld [vmem:[%s3] sm:$0xf]
        %v2118 = vld [vmem:[%s3 + $0x4] sm:$0xf]
        %v2119 = vld [vmem:[%s3 + $0x8] sm:$0xf]
        %v2120 = vld [vmem:[%s3 + $0xc] sm:$0xf]
        %v2121 = vld [vmem:[%s3 + $0x10] sm:$0xf]
        %v2122 = vld [vmem:[%s3 + $0x14] sm:$0xf]
        %v2123 = vld [vmem:[%s3 + $0x18] sm:$0xf]
        %v2124 = vld [vmem:[%s3 + $0x1c] sm:$0xf]
        %v2125 = vld [vmem:[%s3 + $0x20] sm:$0xf]
        %v2126 = vld [vmem:[%s3 + $0x24] sm:$0xf]
        %v2127 = vld [vmem:[%s3 + $0x28] sm:$0xf]
        %v2128 = vld [vmem:[%s3 + $0x2c] sm:$0xf]
        %v2129 = vld [vmem:[%s3 + $0x30] sm:$0xf]
        %v2130 = vld [vmem:[%s3 + $0x34] sm:$0xf]
        %v2131 = vld [vmem:[%s3 + $0x38] sm:$0xf]
        %v2132 = vld [vmem:[%s3 + $0x3c] sm:$0xf]
        %v2133 = vld [vmem:[#allocation2] sm:$0x1]
        %v2135 = vlaneseq
        %v2136 = vshrl.u32 %v2135, 7
        %v2137 = vsub.s32 0, %v2136
        %v2138 = vrot.slane %v2133, %v2137
        %v2156 = vunpack.c.l.b16 %v2117
        %v2157 = vunpack.c.l.b16 %v2118
        %v2158 = vunpack.c.l.b16 %v2119
        %v2159 = vunpack.c.l.b16 %v2120
        %v2160 = vunpack.c.l.b16 %v2121
        %v2161 = vunpack.c.l.b16 %v2122
        %v2162 = vunpack.c.l.b16 %v2123
        %v2163 = vunpack.c.l.b16 %v2124
        %v2164 = vunpack.c.l.b16 %v2125
        %v2165 = vunpack.c.l.b16 %v2126
        %v2166 = vunpack.c.l.b16 %v2127
        %v2167 = vunpack.c.l.b16 %v2128
        %v2168 = vunpack.c.l.b16 %v2129
        %v2169 = vunpack.c.l.b16 %v2130
        %v2170 = vunpack.c.l.b16 %v2131
        %v2171 = vunpack.c.l.b16 %v2132
        %v2172 = vpack.c.b16 %v2157, %v2156
        %v2173 = vpack.c.b16 %v2159, %v2158
        %v2174 = vpack.c.b16 %v2161, %v2160
        %v2175 = vpack.c.b16 %v2163, %v2162
        %v2176 = vpack.c.b16 %v2165, %v2164
        %v2177 = vpack.c.b16 %v2167, %v2166
        %v2178 = vpack.c.b16 %v2169, %v2168
        %v2179 = vpack.c.b16 %v2171, %v2170
        %2188 = vmatprep.subr.bf16.mxu0 0
        %2189 = vmatpush1.bf16.msra.mxu0 %v2172
        %2190 = vmatprep.subr.bf16.mxu0 0
        %2191 = vmatpush1.bf16.msra.mxu0 %v2173
        %2192 = vmatprep.subr.bf16.mxu0 0
        %2193 = vmatpush1.bf16.msra.mxu0 %v2174
        %2194 = vmatprep.subr.bf16.mxu0 0
        %2195 = vmatpush1.bf16.msra.mxu0 %v2175
        %2196 = vmatprep.subr.bf16.mxu0 0
        %2197 = vmatpush1.bf16.msra.mxu0 %v2176
        %2198 = vmatprep.subr.bf16.mxu0 0
        %2199 = vmatpush1.bf16.msra.mxu0 %v2177
        %2200 = vmatprep.subr.bf16.mxu0 0
        %2201 = vmatpush1.bf16.msra.mxu0 %v2178
        %2202 = vmatprep.subr.bf16.mxu0 0
        %2203 = vmatpush1.bf16.msra.mxu0 %v2179
        %2204 = vmatprep.subr.bf16.mxu0 0
        %2205 = vmatpush1.bf16.msra.mxu0 0
        %2206 = vmatprep.subr.bf16.mxu0 0
        %2207 = vmatpush1.bf16.msra.mxu0 0
        %2208 = vmatprep.subr.bf16.mxu0 0
        %2209 = vmatpush1.bf16.msra.mxu0 0
        %2210 = vmatprep.subr.bf16.mxu0 0
        %2211 = vmatpush1.bf16.msra.mxu0 0
        %2212 = vmatprep.subr.bf16.mxu0 0
        %2213 = vmatpush1.bf16.msra.mxu0 0
        %2214 = vmatprep.subr.bf16.mxu0 0
        %2215 = vmatpush1.bf16.msra.mxu0 0
        %2216 = vmatprep.subr.bf16.mxu0 0
        %2217 = vmatpush1.bf16.msra.mxu0 0
        %2218 = vmatprep.subr.bf16.mxu0 0
        %2219 = vmatpush1.bf16.msra.mxu0 0
        %2220 = vmatprep.mubr.bf16.mxu0 0
        %2221 = vmatmul.mubr.bf16.gmra.mrb[0].mxu0 %v2101
        %v2222 = vpop.f32.mrb[0].mxu0
        %v2223 = vadd.f32 %v2138, %v2222
        %v2224 = vpop.f32.mrb[0].mxu0
        %v2225 = vpop.f32.mrb[0].mxu0
        %v2226 = vadd.f32 %v2138, %v2225
        %v2227 = vpop.f32.mrb[0].mxu0
        %2228 = vmatprep.mubr.bf16.mxu0 0
        %2229 = vmatmul.mubr.bf16.gmra.mrb[0].mxu0 %v2102
        %v2230 = vpop.f32.mrb[0].mxu0
        %v2231 = vadd.f32 %v2138, %v2230
        %v2232 = vpop.f32.mrb[0].mxu0
        %v2233 = vpop.f32.mrb[0].mxu0
        %v2234 = vadd.f32 %v2138, %v2233
        %v2235 = vpop.f32.mrb[0].mxu0
        %2236 = vmatprep.mubr.bf16.mxu0 0
        %2237 = vmatmul.mubr.bf16.gmra.mrb[0].mxu0 %v2103
        %v2238 = vpop.f32.mrb[0].mxu0
        %v2239 = vadd.f32 %v2138, %v2238
        %v2240 = vpop.f32.mrb[0].mxu0
        %v2241 = vpop.f32.mrb[0].mxu0
        %v2242 = vadd.f32 %v2138, %v2241
        %v2243 = vpop.f32.mrb[0].mxu0
        %2244 = vmatprep.mubr.bf16.mxu0 0
        %2245 = vmatmul.mubr.bf16.gmra.mrb[0].mxu0 %v2104
        %v2246 = vpop.f32.mrb[0].mxu0
        %v2247 = vadd.f32 %v2138, %v2246
        %v2248 = vpop.f32.mrb[0].mxu0
        %v2249 = vpop.f32.mrb[0].mxu0
        %v2250 = vadd.f32 %v2138, %v2249
        %v2251 = vpop.f32.mrb[0].mxu0
        %2252 = vmatprep.mubr.bf16.mxu0 0
        %2253 = vmatmul.mubr.bf16.gmra.mrb[0].mxu0 %v2105
        %v2254 = vpop.f32.mrb[0].mxu0
        %v2255 = vadd.f32 %v2138, %v2254
        %v2256 = vpop.f32.mrb[0].mxu0
        %v2257 = vpop.f32.mrb[0].mxu0
        %v2258 = vadd.f32 %v2138, %v2257
        %v2259 = vpop.f32.mrb[0].mxu0
        %2260 = vmatprep.mubr.bf16.mxu0 0
        %2261 = vmatmul.mubr.bf16.gmra.mrb[0].mxu0 %v2106
        %v2262 = vpop.f32.mrb[0].mxu0
        %v2263 = vadd.f32 %v2138, %v2262
        %v2264 = vpop.f32.mrb[0].mxu0
        %v2265 = vpop.f32.mrb[0].mxu0
        %v2266 = vadd.f32 %v2138, %v2265
        %v2267 = vpop.f32.mrb[0].mxu0
        %2268 = vmatprep.mubr.bf16.mxu0 0
        %2269 = vmatmul.mubr.bf16.gmra.mrb[0].mxu0 %v2107
        %v2270 = vpop.f32.mrb[0].mxu0
        %v2271 = vadd.f32 %v2138, %v2270
        %v2272 = vpop.f32.mrb[0].mxu0
        %v2273 = vpop.f32.mrb[0].mxu0
        %v2274 = vadd.f32 %v2138, %v2273
        %v2275 = vpop.f32.mrb[0].mxu0
        %2276 = vmatprep.mubr.bf16.mxu0 0
        %2277 = vmatmul.mubr.bf16.gmra.mrb[0].mxu0 %v2108
        %v2278 = vpop.f32.mrb[0].mxu0
        %v2279 = vadd.f32 %v2138, %v2278
        %v2280 = vpop.f32.mrb[0].mxu0
        %v2281 = vpop.f32.mrb[0].mxu0
        %v2282 = vadd.f32 %v2138, %v2281
        %v2283 = vpop.f32.mrb[0].mxu0
        %2284 = vmatprep.mubr.bf16.mxu0 0
        %2285 = vmatmul.mubr.bf16.gmra.mrb[0].mxu0 %v2109
        %v2286 = vpop.f32.mrb[0].mxu0
        %v2287 = vadd.f32 %v2138, %v2286
        %v2288 = vpop.f32.mrb[0].mxu0
        %v2289 = vpop.f32.mrb[0].mxu0
        %v2290 = vadd.f32 %v2138, %v2289
        %v2291 = vpop.f32.mrb[0].mxu0
        %2292 = vmatprep.mubr.bf16.mxu0 0
        %2293 = vmatmul.mubr.bf16.gmra.mrb[0].mxu0 %v2110
        %v2294 = vpop.f32.mrb[0].mxu0
        %v2295 = vadd.f32 %v2138, %v2294
        %v2296 = vpop.f32.mrb[0].mxu0
        %v2297 = vpop.f32.mrb[0].mxu0
        %v2298 = vadd.f32 %v2138, %v2297
        %v2299 = vpop.f32.mrb[0].mxu0
        %2300 = vmatprep.mubr.bf16.mxu0 0
        %2301 = vmatmul.mubr.bf16.gmra.mrb[0].mxu0 %v2111
        %v2302 = vpop.f32.mrb[0].mxu0
        %v2303 = vadd.f32 %v2138, %v2302
        %v2304 = vpop.f32.mrb[0].mxu0
        %v2305 = vpop.f32.mrb[0].mxu0
        %v2306 = vadd.f32 %v2138, %v2305
        %v2307 = vpop.f32.mrb[0].mxu0
        %2308 = vmatprep.mubr.bf16.mxu0 0
        %2309 = vmatmul.mubr.bf16.gmra.mrb[0].mxu0 %v2112
        %v2310 = vpop.f32.mrb[0].mxu0
        %v2311 = vadd.f32 %v2138, %v2310
        %v2312 = vpop.f32.mrb[0].mxu0
        %v2313 = vpop.f32.mrb[0].mxu0
        %v2314 = vadd.f32 %v2138, %v2313
        %v2315 = vpop.f32.mrb[0].mxu0
        %2316 = vmatprep.mubr.bf16.mxu0 0
        %2317 = vmatmul.mubr.bf16.gmra.mrb[0].mxu0 %v2113
        %v2318 = vpop.f32.mrb[0].mxu0
        %v2319 = vadd.f32 %v2138, %v2318
        %v2320 = vpop.f32.mrb[0].mxu0
        %v2321 = vpop.f32.mrb[0].mxu0
        %v2322 = vadd.f32 %v2138, %v2321
        %v2323 = vpop.f32.mrb[0].mxu0
        %2324 = vmatprep.mubr.bf16.mxu0 0
        %2325 = vmatmul.mubr.bf16.gmra.mrb[0].mxu0 %v2114
        %v2326 = vpop.f32.mrb[0].mxu0
        %v2327 = vadd.f32 %v2138, %v2326
        %v2328 = vpop.f32.mrb[0].mxu0
        %v2329 = vpop.f32.mrb[0].mxu0
        %v2330 = vadd.f32 %v2138, %v2329
        %v2331 = vpop.f32.mrb[0].mxu0
        %2332 = vmatprep.mubr.bf16.mxu0 0
        %2333 = vmatmul.mubr.bf16.gmra.mrb[0].mxu0 %v2115
        %v2334 = vpop.f32.mrb[0].mxu0
        %v2335 = vadd.f32 %v2138, %v2334
        %v2336 = vpop.f32.mrb[0].mxu0
        %v2337 = vpop.f32.mrb[0].mxu0
        %v2338 = vadd.f32 %v2138, %v2337
        %v2339 = vpop.f32.mrb[0].mxu0
        %2340 = vmatprep.mubr.bf16.mxu0 0
        %2341 = vmatmul.mubr.bf16.gmra.mrb[0].mxu0 %v2116
        %v2342 = vpop.f32.mrb[0].mxu0
        %v2343 = vadd.f32 %v2138, %v2342
        %v2344 = vpop.f32.mrb[0].mxu0
        %v2345 = vpop.f32.mrb[0].mxu0
        %v2346 = vadd.f32 %v2138, %v2345
        %v2347 = vpop.f32.mrb[0].mxu0
        %2348 = vdwg.mxu0
        %vm2349 = vcmask 7168
        %2350 = vst.msk [vmem:[%s262] sm:$0xff] %vm2349, %v2223
        %2351 = vst.msk [vmem:[%s262 + $0x8] sm:$0xff] %vm2349, %v2226
        %2352 = vst.msk [vmem:[%s262 + $0x10] sm:$0xff] %vm2349, %v2231
        %2353 = vst.msk [vmem:[%s262 + $0x18] sm:$0xff] %vm2349, %v2234
        %2354 = vst.msk [vmem:[%s262 + $0x20] sm:$0xff] %vm2349, %v2239
        %2355 = vst.msk [vmem:[%s262 + $0x28] sm:$0xff] %vm2349, %v2242
        %2356 = vst.msk [vmem:[%s262 + $0x30] sm:$0xff] %vm2349, %v2247
        %2357 = vst.msk [vmem:[%s262 + $0x38] sm:$0xff] %vm2349, %v2250
        %2358 = vst.msk [vmem:[%s262 + $0x40] sm:$0xff] %vm2349, %v2255
        %2359 = vst.msk [vmem:[%s262 + $0x48] sm:$0xff] %vm2349, %v2258
        %2360 = vst.msk [vmem:[%s262 + $0x50] sm:$0xff] %vm2349, %v2263
        %2361 = vst.msk [vmem:[%s262 + $0x58] sm:$0xff] %vm2349, %v2266
        %2362 = vst.msk [vmem:[%s262 + $0x60] sm:$0xff] %vm2349, %v2271
        %2363 = vst.msk [vmem:[%s262 + $0x68] sm:$0xff] %vm2349, %v2274
        %2364 = vst.msk [vmem:[%s262 + $0x70] sm:$0xff] %vm2349, %v2279
        %2365 = vst.msk [vmem:[%s262 + $0x78] sm:$0xff] %vm2349, %v2282
        %2366 = vst.msk [vmem:[%s262 + $0x80] sm:$0xff] %vm2349, %v2287
        %2367 = vst.msk [vmem:[%s262 + $0x88] sm:$0xff] %vm2349, %v2290
        %2368 = vst.msk [vmem:[%s262 + $0x90] sm:$0xff] %vm2349, %v2295
        %2369 = vst.msk [vmem:[%s262 + $0x98] sm:$0xff] %vm2349, %v2298
        %2370 = vst.msk [vmem:[%s262 + $0xa0] sm:$0xff] %vm2349, %v2303
        %2371 = vst.msk [vmem:[%s262 + $0xa8] sm:$0xff] %vm2349, %v2306
        %2372 = vst.msk [vmem:[%s262 + $0xb0] sm:$0xff] %vm2349, %v2311
        %2373 = vst.msk [vmem:[%s262 + $0xb8] sm:$0xff] %vm2349, %v2314
        %2374 = vst.msk [vmem:[%s262 + $0xc0] sm:$0xff] %vm2349, %v2319
        %2375 = vst.msk [vmem:[%s262 + $0xc8] sm:$0xff] %vm2349, %v2322
        %2376 = vst.msk [vmem:[%s262 + $0xd0] sm:$0xff] %vm2349, %v2327
        %2377 = vst.msk [vmem:[%s262 + $0xd8] sm:$0xff] %vm2349, %v2330
        %2378 = vst.msk [vmem:[%s262 + $0xe0] sm:$0xff] %vm2349, %v2335
        %2379 = vst.msk [vmem:[%s262 + $0xe8] sm:$0xff] %vm2349, %v2338
        %2380 = vst.msk [vmem:[%s262 + $0xf0] sm:$0xff] %vm2349, %v2343
        %2381 = vst.msk [vmem:[%s262 + $0xf8] sm:$0xff] %vm2349, %v2346
        %s2382 = smul.u32 32, %s22
        %p2383 = scmp.lt.s32.totalorder %s2382, 63
        %s2384 = scalar_select %p2383, %s2382, 63
        %s2385 = smul.addr %s2384, 8
        %s2386 = scalar_lea.vmem %s5, %s2385
        // Predicated region
        $region49: #{tpu_custom_call.1} parent=39 // pred_check
          %p2387 = pneg %p150
        $region50: #{tpu_custom_call.1} parent=39 // pred_check_branch
          %2389 = sbr.rel (%p2387) target = $region52
        $region51: #{tpu_custom_call.1} parent=39 // pred_region
          %s2390 = smul.u32 32, %s22
        $region52: #{tpu_custom_call.1} parent=39 // pred_fallthru
          _
      $region40: #{tpu_custom_call.1} parent=5 // pred_fallthru
        _
      %p2391 = scmp.le.s32.totalorder 2, %s17
      // Predicated region
      $region53: #{tpu_custom_call.1} parent=5 // pred_check
        %p2392 = pneg %p2391
      $region54: #{tpu_custom_call.1} parent=5 // pred_check_branch
        %2394 = sbr.rel (%p2392) target = $region56
      $region55: #{tpu_custom_call.1} parent=5 // pred_region
        %s2395 = ssub.s32 %s17, 2
        // Predicated region
        $region57: #{tpu_custom_call.1} parent=55 // pred_check
          %p2396 = pneg %p156
        $region58: #{tpu_custom_call.1} parent=55 // pred_check_branch
          %2398 = sbr.rel (%p2396) target = $region60
        $region59: #{tpu_custom_call.1} parent=55 // pred_region
          %s2399 = smul.u32 32, %s23
          %p2400 = scmp.lt.s32.totalorder %s2399, 63
          %s2401 = scalar_select %p2400, %s2399, 63
          %s2402 = smul.addr %s2401, 8
          %s2403 = scalar_lea.vmem %s5, %s2402
        $region60: #{tpu_custom_call.1} parent=55 // pred_fallthru
          _
      $region56: #{tpu_custom_call.1} parent=5 // pred_fallthru
        _
    $region6: #{tpu_custom_call.1} parent=1 // loop_footer
      %s21 = sadd.s32 1, %s17
    $region7: #{tpu_custom_call.1} parent=1 // loop_footer_branch
      %16 = sbr.rel target = $region3
    $region8: #{tpu_custom_call.1} parent=1 // loop_exit
      _
    %2404 = vsyncpa [#allocation4], 1
    %s2405 = scalar_lea.sflag [#allocation4], 1
    %2406 = vsyncpa %s2405, 1
    %2407 = vsyncpa [#allocation6], 1

</llo_original>
